<compile_context>
chip_gen: v5e
topology: v5e:2x2
jax: 0.10.0
libtpu: 0.0.40
codegen_flags: <defaults>
</compile_context>

<pallas_src>
import functools

import jax
import jax.numpy as jnp
from jax.experimental import pallas as pl
from jax.experimental.pallas import tpu as pltpu


# --------------------------------------------------------------------------
# Fused kernel
# --------------------------------------------------------------------------
def _basic_block_kernel(x_ref, w1_ref, b1_ref, w2_ref, b2_ref, out_ref,
                        xpad_s, hpad_s, *, H, W, C):
    """relu(conv2_bn(relu(conv1_bn(x))) + x) for one NHWC image.

    x_ref   : (1, H, W, C)      f32   unpadded input tile (also the shortcut)
    w*_ref  : (3, 3, C, C)      bf16  conv weights with BN scale folded in
    b*_ref  : (1, C)            f32   folded BN bias
    out_ref : (1, H, W, C)      f32
    xpad_s  : (H+2, W+2, C)     f32   VMEM scratch, zero-halo padded input
    hpad_s  : (H+2, W+2, C)     f32   VMEM scratch, zero-halo padded h
    """
    # Stage padded input in VMEM (halo handled here, no HBM pad pass).
    # Fully re-initialized every grid step so "parallel" (megacore) sharding
    # of the batch axis stays correct — no cross-iteration scratch state.
    xpad_s[...] = jnp.zeros_like(xpad_s)
    xpad_s[1:H + 1, 1:W + 1, :] = x_ref[0]

    def conv3x3(src_ref, w_ref):
        # 3x3 stride-1 conv as 9 shifted (H*W, C) @ (C, C) matmuls.
        # bf16 MXU inputs, f32 accumulation.
        # TODO(synk): for large H*W*C use a VMEM scratch accumulator; at this
        #             size a live f32 value is neutral (review note).
        acc = jnp.zeros((H * W, C), jnp.float32)
        for kh in range(3):
            for kw in range(3):
                patch = src_ref[kh:kh + H, kw:kw + W, :]
                patch = patch.reshape(H * W, C).astype(jnp.bfloat16)
                acc = acc + jnp.dot(patch, w_ref[kh, kw],
                                    preferred_element_type=jnp.float32)
        return acc  # (H*W, C) f32

    # conv1 + folded BN1 + ReLU  (element-wise epilogue in f32)
    h = jnp.maximum(conv3x3(xpad_s, w1_ref) + b1_ref[0], 0.0)

    # Stage padded intermediate in VMEM — never written to HBM.
    hpad_s[...] = jnp.zeros_like(hpad_s)
    hpad_s[1:H + 1, 1:W + 1, :] = h.reshape(H, W, C)

    # conv2 + folded BN2 + identity shortcut + final ReLU
    y = conv3x3(hpad_s, w2_ref) + b2_ref[0]
    y = y + x_ref[0].reshape(H * W, C)
    out_ref[0] = jnp.maximum(y, 0.0).reshape(H, W, C).astype(out_ref.dtype)


# --------------------------------------------------------------------------
# Wrapper
# --------------------------------------------------------------------------
def fold_bn_into_conv(w_hwio, gamma, beta, mean, var, eps=1e-5):
    """Fold eval-mode BN (affine, running stats) into the conv weights.

    conv(x, W) * scale + bias == conv(x, W * scale) + bias
    Weights are stored in bf16 (halves weight DMA, full-rate MXU); the bias
    stays f32 for the VPU epilogue.
    """
    scale = gamma / jnp.sqrt(var + eps)                       # (Cout,)
    w_folded = (w_hwio * scale[None, None, None, :]).astype(jnp.bfloat16)
    bias = (beta - mean * scale).astype(jnp.float32)[None, :]  # (1, Cout)
    return w_folded, bias


def basic_block_fused(x_nhwc, w1, b1, w2, b2):
    N, H, W, C = x_nhwc.shape
    kernel = functools.partial(_basic_block_kernel, H=H, W=W, C=C)

    flops = int(2 * 2 * 9 * C * C * H * W * N)        # 2 convs, MAC = 2 flops
    bytes_accessed = int(2 * N * H * W * C * 4        # x in + out
                         + (w1.size + w2.size) * 2    # bf16 weights
                         + (b1.size + b2.size) * 4)   # f32 biases

    return pl.pallas_call(
        kernel,
        out_shape=jax.ShapeDtypeStruct((N, H, W, C), jnp.float32),
        grid_spec=pltpu.PrefetchScalarGridSpec(
            num_scalar_prefetch=0,
            grid=(N,),
            in_specs=[
                pl.BlockSpec((1, H, W, C), lambda n: (n, 0, 0, 0)),   # x
                pl.BlockSpec((3, 3, C, C), lambda n: (0, 0, 0, 0)),   # w1
                pl.BlockSpec((1, C), lambda n: (0, 0)),               # b1
                pl.BlockSpec((3, 3, C, C), lambda n: (0, 0, 0, 0)),   # w2
                pl.BlockSpec((1, C), lambda n: (0, 0)),               # b2
            ],
            out_specs=pl.BlockSpec((1, H, W, C), lambda n: (n, 0, 0, 0)),
            scratch_shapes=[
                pltpu.VMEM((H + 2, W + 2, C), jnp.float32),   # padded x
                pltpu.VMEM((H + 2, W + 2, C), jnp.float32),   # padded h
            ]),
        compiler_params=pltpu.CompilerParams(
            dimension_semantics=("parallel",)),
        cost_estimate=pl.CostEstimate(
            flops=flops, transcendentals=0, bytes_accessed=bytes_accessed),
    )(x_nhwc, w1, b1, w2, b2)


def basic_block_forward(x_nchw, params):
    """x_nchw: (N, C, H, W) float32, as in the PyTorch module."""
    x = jnp.transpose(x_nchw, (0, 2, 3, 1))            # NCHW -> NHWC
    w1, b1 = fold_bn_into_conv(params["w1"], *params["bn1"])
    w2, b2 = fold_bn_into_conv(params["w2"], *params["bn2"])
    out = basic_block_fused(x, w1, b1, w2, b2)
    return jnp.transpose(out, (0, 3, 1, 2))            # NHWC -> NCHW


# --------------------------------------------------------------------------
# Pure-JAX reference (same eval-mode BN semantics, f32 everywhere)
# --------------------------------------------------------------------------
def _ref_forward(x_nchw, params):
    def conv(x, w_hwio):
        return jax.lax.conv_general_dilated(
            x, w_hwio, window_strides=(1, 1), padding=((1, 1), (1, 1)),
            dimension_numbers=("NCHW", "HWIO", "NCHW"))

    def bn(x, bn_params):
        g, b, m, v = bn_params
        sc = g / jnp.sqrt(v + 1e-5)
        return x * sc[None, :, None, None] + (b - m * sc)[None, :, None, None]

    h = jax.nn.relu(bn(conv(x_nchw, params["w1"]), params["bn1"]))
    out = bn(conv(h, params["w2"]), params["bn2"]) + x_nchw
    return jax.nn.relu(out)


# --------------------------------------------------------------------------
if __name__ == "__main__":
    N, C, H, W = 2, 4, 16, 16          # in_channels = out_channels = 4
    key = jax.random.PRNGKey(0)
    ks = jax.random.split(key, 10)

    x = jax.random.normal(ks[0], (N, C, H, W), jnp.float32)

    params = {
        # conv weights in HWIO layout (3, 3, Cin, Cout)
        "w1": 0.1 * jax.random.normal(ks[1], (3, 3, C, C), jnp.float32),
        "w2": 0.1 * jax.random.normal(ks[2], (3, 3, C, C), jnp.float32),
        # (gamma, beta, running_mean, running_var)
        "bn1": (1.0 + 0.1 * jax.random.normal(ks[3], (C,), jnp.float32),
                0.1 * jax.random.normal(ks[4], (C,), jnp.float32),
                0.1 * jax.random.normal(ks[5], (C,), jnp.float32),
                1.0 + 0.1 * jax.random.uniform(ks[6], (C,), jnp.float32)),
        "bn2": (1.0 + 0.1 * jax.random.normal(ks[7], (C,), jnp.float32),
                0.1 * jax.random.normal(ks[8], (C,), jnp.float32),
                0.1 * jax.random.normal(ks[9], (C,), jnp.float32),
                jnp.ones((C,), jnp.float32)),
    }

    out = basic_block_forward(x, params)
    out = jax.block_until_ready(out)
    assert out.shape == (N, C, H, W), out.shape

    ref = jax.block_until_ready(_ref_forward(x, params))
    # Tolerance accounts for bf16 MXU inputs (f32 reference).
    assert jnp.allclose(out, ref, atol=2e-2, rtol=2e-2), (
        float(jnp.max(jnp.abs(out - ref))))

    print("KERNEL_OK")
</pallas_src>

<mosaic_0001>
module attributes {stable_mosaic.version = 11 : i64} {
  func.func @_basic_block_kernel(%arg0: i32, %arg1: memref<1x16x16x4xf32, #tpu.memory_space<vmem>>, %arg2: memref<3x3x4x4xbf16, #tpu.memory_space<vmem>>, %arg3: memref<1x4xf32, #tpu.memory_space<vmem>>, %arg4: memref<3x3x4x4xbf16, #tpu.memory_space<vmem>>, %arg5: memref<1x4xf32, #tpu.memory_space<vmem>>, %arg6: memref<1x16x16x4xf32, #tpu.memory_space<vmem>>, %arg7: memref<18x18x4xf32, #tpu.memory_space<vmem>>, %arg8: memref<18x18x4xf32, #tpu.memory_space<vmem>>) attributes {dimension_semantics = [#tpu.dimension_semantics<parallel>], iteration_bounds = array<i64: 2>, scalar_prefetch = 0 : i64, scratch_operands = 2 : i64, tpu.core_type = #tpu.core_type<tc>, window_params = [{transform_indices = @transform_0, window_bounds = array<i64: 1, 16, 16, 4>}, {pipeline_mode = #tpu.pipeline_mode<synchronous>, transform_indices = @transform_1, window_bounds = array<i64: 3, 3, 4, 4>}, {pipeline_mode = #tpu.pipeline_mode<synchronous>, transform_indices = @transform_2, window_bounds = array<i64: 1, 4>}, {pipeline_mode = #tpu.pipeline_mode<synchronous>, transform_indices = @transform_3, window_bounds = array<i64: 3, 3, 4, 4>}, {pipeline_mode = #tpu.pipeline_mode<synchronous>, transform_indices = @transform_4, window_bounds = array<i64: 1, 4>}, {transform_indices = @transform_5, window_bounds = array<i64: 1, 16, 16, 4>}]} {
    %cst = arith.constant 0.000000e+00 : f32
    %0 = vector.broadcast %cst : f32 to vector<18x18x4xf32>
    %c0 = arith.constant 0 : index
    %c0_0 = arith.constant 0 : index
    %c0_1 = arith.constant 0 : index
    %1 = vector.load %arg7[%c0, %c0_0, %c0_1] : memref<18x18x4xf32, #tpu.memory_space<vmem>>, vector<18x18x4xf32>
    tpu.vector_store %arg7[%c0, %c0_0, %c0_1], %0 {strides = array<i32>} : memref<18x18x4xf32, #tpu.memory_space<vmem>>, vector<18x18x4xf32>,
    %c0_2 = arith.constant 0 : index
    %c0_3 = arith.constant 0 : index
    %c0_4 = arith.constant 0 : index
    %c0_5 = arith.constant 0 : index
    %2 = vector.load %arg1[%c0_2, %c0_3, %c0_4, %c0_5] : memref<1x16x16x4xf32, #tpu.memory_space<vmem>>, vector<1x16x16x4xf32>
    %3 = vector.shape_cast %2 : vector<1x16x16x4xf32> to vector<16x16x4xf32>
    %c1 = arith.constant 1 : index
    %c1_6 = arith.constant 1 : index
    %c0_7 = arith.constant 0 : index
    %4 = vector.load %arg7[%c1, %c1_6, %c0_7] : memref<18x18x4xf32, #tpu.memory_space<vmem>>, vector<16x16x4xf32>
    tpu.vector_store %arg7[%c1, %c1_6, %c0_7], %3 {strides = array<i32>} : memref<18x18x4xf32, #tpu.memory_space<vmem>>, vector<16x16x4xf32>,
    %cst_8 = arith.constant 0.000000e+00 : f32
    %5 = vector.broadcast %cst_8 : f32 to vector<256x4xf32>
    %c0_9 = arith.constant 0 : index
    %c0_10 = arith.constant 0 : index
    %c0_11 = arith.constant 0 : index
    %6 = vector.load %arg7[%c0_9, %c0_10, %c0_11] : memref<18x18x4xf32, #tpu.memory_space<vmem>>, vector<16x16x4xf32>
    %7 = vector.shape_cast %6 : vector<16x16x4xf32> to vector<256x4xf32>
    %8 = arith.truncf %7 : vector<256x4xf32> to vector<256x4xbf16>
    %c0_12 = arith.constant 0 : index
    %c0_13 = arith.constant 0 : index
    %c0_14 = arith.constant 0 : index
    %c0_15 = arith.constant 0 : index
    %9 = vector.load %arg2[%c0_12, %c0_13, %c0_14, %c0_15] : memref<3x3x4x4xbf16, #tpu.memory_space<vmem>>, vector<1x1x4x4xbf16>
    %10 = vector.shape_cast %9 : vector<1x1x4x4xbf16> to vector<4x4xbf16>
    %cst_16 = arith.constant dense<0.000000e+00> : vector<256x4xf32>
    %11 = tpu.matmul %8, %10, %cst_16 {dimension_numbers = #tpu.dot_dimension_numbers<[1], [0], [0], [1], [0, 0, 1, 1], [], []>} : vector<256x4xbf16>, vector<4x4xbf16>, vector<256x4xf32> -> vector<256x4xf32>
    %12 = arith.addf %5, %11 : vector<256x4xf32>
    %c0_17 = arith.constant 0 : index
    %c1_18 = arith.constant 1 : index
    %c0_19 = arith.constant 0 : index
    %13 = vector.load %arg7[%c0_17, %c1_18, %c0_19] : memref<18x18x4xf32, #tpu.memory_space<vmem>>, vector<16x16x4xf32>
    %14 = vector.shape_cast %13 : vector<16x16x4xf32> to vector<256x4xf32>
    %15 = arith.truncf %14 : vector<256x4xf32> to vector<256x4xbf16>
    %c0_20 = arith.constant 0 : index
    %c1_21 = arith.constant 1 : index
    %c0_22 = arith.constant 0 : index
    %c0_23 = arith.constant 0 : index
    %16 = vector.load %arg2[%c0_20, %c1_21, %c0_22, %c0_23] : memref<3x3x4x4xbf16, #tpu.memory_space<vmem>>, vector<1x1x4x4xbf16>
    %17 = vector.shape_cast %16 : vector<1x1x4x4xbf16> to vector<4x4xbf16>
    %cst_24 = arith.constant dense<0.000000e+00> : vector<256x4xf32>
    %18 = tpu.matmul %15, %17, %cst_24 {dimension_numbers = #tpu.dot_dimension_numbers<[1], [0], [0], [1], [0, 0, 1, 1], [], []>} : vector<256x4xbf16>, vector<4x4xbf16>, vector<256x4xf32> -> vector<256x4xf32>
    %19 = arith.addf %12, %18 : vector<256x4xf32>
    %c0_25 = arith.constant 0 : index
    %c2 = arith.constant 2 : index
    %c0_26 = arith.constant 0 : index
    %20 = vector.load %arg7[%c0_25, %c2, %c0_26] : memref<18x18x4xf32, #tpu.memory_space<vmem>>, vector<16x16x4xf32>
    %21 = vector.shape_cast %20 : vector<16x16x4xf32> to vector<256x4xf32>
    %22 = arith.truncf %21 : vector<256x4xf32> to vector<256x4xbf16>
    %c0_27 = arith.constant 0 : index
    %c2_28 = arith.constant 2 : index
    %c0_29 = arith.constant 0 : index
    %c0_30 = arith.constant 0 : index
    %23 = vector.load %arg2[%c0_27, %c2_28, %c0_29, %c0_30] : memref<3x3x4x4xbf16, #tpu.memory_space<vmem>>, vector<1x1x4x4xbf16>
    %24 = vector.shape_cast %23 : vector<1x1x4x4xbf16> to vector<4x4xbf16>
    %cst_31 = arith.constant dense<0.000000e+00> : vector<256x4xf32>
    %25 = tpu.matmul %22, %24, %cst_31 {dimension_numbers = #tpu.dot_dimension_numbers<[1], [0], [0], [1], [0, 0, 1, 1], [], []>} : vector<256x4xbf16>, vector<4x4xbf16>, vector<256x4xf32> -> vector<256x4xf32>
    %26 = arith.addf %19, %25 : vector<256x4xf32>
    %c1_32 = arith.constant 1 : index
    %c0_33 = arith.constant 0 : index
    %c0_34 = arith.constant 0 : index
    %27 = vector.load %arg7[%c1_32, %c0_33, %c0_34] : memref<18x18x4xf32, #tpu.memory_space<vmem>>, vector<16x16x4xf32>
    %28 = vector.shape_cast %27 : vector<16x16x4xf32> to vector<256x4xf32>
    %29 = arith.truncf %28 : vector<256x4xf32> to vector<256x4xbf16>
    %c1_35 = arith.constant 1 : index
    %c0_36 = arith.constant 0 : index
    %c0_37 = arith.constant 0 : index
    %c0_38 = arith.constant 0 : index
    %30 = vector.load %arg2[%c1_35, %c0_36, %c0_37, %c0_38] : memref<3x3x4x4xbf16, #tpu.memory_space<vmem>>, vector<1x1x4x4xbf16>
    %31 = vector.shape_cast %30 : vector<1x1x4x4xbf16> to vector<4x4xbf16>
    %cst_39 = arith.constant dense<0.000000e+00> : vector<256x4xf32>
    %32 = tpu.matmul %29, %31, %cst_39 {dimension_numbers = #tpu.dot_dimension_numbers<[1], [0], [0], [1], [0, 0, 1, 1], [], []>} : vector<256x4xbf16>, vector<4x4xbf16>, vector<256x4xf32> -> vector<256x4xf32>
    %33 = arith.addf %26, %32 : vector<256x4xf32>
    %c1_40 = arith.constant 1 : index
    %c1_41 = arith.constant 1 : index
    %c0_42 = arith.constant 0 : index
    %34 = vector.load %arg7[%c1_40, %c1_41, %c0_42] : memref<18x18x4xf32, #tpu.memory_space<vmem>>, vector<16x16x4xf32>
    %35 = vector.shape_cast %34 : vector<16x16x4xf32> to vector<256x4xf32>
    %36 = arith.truncf %35 : vector<256x4xf32> to vector<256x4xbf16>
    %c1_43 = arith.constant 1 : index
    %c1_44 = arith.constant 1 : index
    %c0_45 = arith.constant 0 : index
    %c0_46 = arith.constant 0 : index
    %37 = vector.load %arg2[%c1_43, %c1_44, %c0_45, %c0_46] : memref<3x3x4x4xbf16, #tpu.memory_space<vmem>>, vector<1x1x4x4xbf16>
    %38 = vector.shape_cast %37 : vector<1x1x4x4xbf16> to vector<4x4xbf16>
    %cst_47 = arith.constant dense<0.000000e+00> : vector<256x4xf32>
    %39 = tpu.matmul %36, %38, %cst_47 {dimension_numbers = #tpu.dot_dimension_numbers<[1], [0], [0], [1], [0, 0, 1, 1], [], []>} : vector<256x4xbf16>, vector<4x4xbf16>, vector<256x4xf32> -> vector<256x4xf32>
    %40 = arith.addf %33, %39 : vector<256x4xf32>
    %c1_48 = arith.constant 1 : index
    %c2_49 = arith.constant 2 : index
    %c0_50 = arith.constant 0 : index
    %41 = vector.load %arg7[%c1_48, %c2_49, %c0_50] : memref<18x18x4xf32, #tpu.memory_space<vmem>>, vector<16x16x4xf32>
    %42 = vector.shape_cast %41 : vector<16x16x4xf32> to vector<256x4xf32>
    %43 = arith.truncf %42 : vector<256x4xf32> to vector<256x4xbf16>
    %c1_51 = arith.constant 1 : index
    %c2_52 = arith.constant 2 : index
    %c0_53 = arith.constant 0 : index
    %c0_54 = arith.constant 0 : index
    %44 = vector.load %arg2[%c1_51, %c2_52, %c0_53, %c0_54] : memref<3x3x4x4xbf16, #tpu.memory_space<vmem>>, vector<1x1x4x4xbf16>
    %45 = vector.shape_cast %44 : vector<1x1x4x4xbf16> to vector<4x4xbf16>
    %cst_55 = arith.constant dense<0.000000e+00> : vector<256x4xf32>
    %46 = tpu.matmul %43, %45, %cst_55 {dimension_numbers = #tpu.dot_dimension_numbers<[1], [0], [0], [1], [0, 0, 1, 1], [], []>} : vector<256x4xbf16>, vector<4x4xbf16>, vector<256x4xf32> -> vector<256x4xf32>
    %47 = arith.addf %40, %46 : vector<256x4xf32>
    %c2_56 = arith.constant 2 : index
    %c0_57 = arith.constant 0 : index
    %c0_58 = arith.constant 0 : index
    %48 = vector.load %arg7[%c2_56, %c0_57, %c0_58] : memref<18x18x4xf32, #tpu.memory_space<vmem>>, vector<16x16x4xf32>
    %49 = vector.shape_cast %48 : vector<16x16x4xf32> to vector<256x4xf32>
    %50 = arith.truncf %49 : vector<256x4xf32> to vector<256x4xbf16>
    %c2_59 = arith.constant 2 : index
    %c0_60 = arith.constant 0 : index
    %c0_61 = arith.constant 0 : index
    %c0_62 = arith.constant 0 : index
    %51 = vector.load %arg2[%c2_59, %c0_60, %c0_61, %c0_62] : memref<3x3x4x4xbf16, #tpu.memory_space<vmem>>, vector<1x1x4x4xbf16>
    %52 = vector.shape_cast %51 : vector<1x1x4x4xbf16> to vector<4x4xbf16>
    %cst_63 = arith.constant dense<0.000000e+00> : vector<256x4xf32>
    %53 = tpu.matmul %50, %52, %cst_63 {dimension_numbers = #tpu.dot_dimension_numbers<[1], [0], [0], [1], [0, 0, 1, 1], [], []>} : vector<256x4xbf16>, vector<4x4xbf16>, vector<256x4xf32> -> vector<256x4xf32>
    %54 = arith.addf %47, %53 : vector<256x4xf32>
    %c2_64 = arith.constant 2 : index
    %c1_65 = arith.constant 1 : index
    %c0_66 = arith.constant 0 : index
    %55 = vector.load %arg7[%c2_64, %c1_65, %c0_66] : memref<18x18x4xf32, #tpu.memory_space<vmem>>, vector<16x16x4xf32>
    %56 = vector.shape_cast %55 : vector<16x16x4xf32> to vector<256x4xf32>
    %57 = arith.truncf %56 : vector<256x4xf32> to vector<256x4xbf16>
    %c2_67 = arith.constant 2 : index
    %c1_68 = arith.constant 1 : index
    %c0_69 = arith.constant 0 : index
    %c0_70 = arith.constant 0 : index
    %58 = vector.load %arg2[%c2_67, %c1_68, %c0_69, %c0_70] : memref<3x3x4x4xbf16, #tpu.memory_space<vmem>>, vector<1x1x4x4xbf16>
    %59 = vector.shape_cast %58 : vector<1x1x4x4xbf16> to vector<4x4xbf16>
    %cst_71 = arith.constant dense<0.000000e+00> : vector<256x4xf32>
    %60 = tpu.matmul %57, %59, %cst_71 {dimension_numbers = #tpu.dot_dimension_numbers<[1], [0], [0], [1], [0, 0, 1, 1], [], []>} : vector<256x4xbf16>, vector<4x4xbf16>, vector<256x4xf32> -> vector<256x4xf32>
    %61 = arith.addf %54, %60 : vector<256x4xf32>
    %c2_72 = arith.constant 2 : index
    %c2_73 = arith.constant 2 : index
    %c0_74 = arith.constant 0 : index
    %62 = vector.load %arg7[%c2_72, %c2_73, %c0_74] : memref<18x18x4xf32, #tpu.memory_space<vmem>>, vector<16x16x4xf32>
    %63 = vector.shape_cast %62 : vector<16x16x4xf32> to vector<256x4xf32>
    %64 = arith.truncf %63 : vector<256x4xf32> to vector<256x4xbf16>
    %c2_75 = arith.constant 2 : index
    %c2_76 = arith.constant 2 : index
    %c0_77 = arith.constant 0 : index
    %c0_78 = arith.constant 0 : index
    %65 = vector.load %arg2[%c2_75, %c2_76, %c0_77, %c0_78] : memref<3x3x4x4xbf16, #tpu.memory_space<vmem>>, vector<1x1x4x4xbf16>
    %66 = vector.shape_cast %65 : vector<1x1x4x4xbf16> to vector<4x4xbf16>
    %cst_79 = arith.constant dense<0.000000e+00> : vector<256x4xf32>
    %67 = tpu.matmul %64, %66, %cst_79 {dimension_numbers = #tpu.dot_dimension_numbers<[1], [0], [0], [1], [0, 0, 1, 1], [], []>} : vector<256x4xbf16>, vector<4x4xbf16>, vector<256x4xf32> -> vector<256x4xf32>
    %68 = arith.addf %61, %67 : vector<256x4xf32>
    %c0_80 = arith.constant 0 : index
    %c0_81 = arith.constant 0 : index
    %69 = vector.load %arg3[%c0_80, %c0_81] : memref<1x4xf32, #tpu.memory_space<vmem>>, vector<1x4xf32>
    %70 = vector.shape_cast %69 : vector<1x4xf32> to vector<4xf32>
    %71 = vector.shape_cast %70 : vector<4xf32> to vector<1x4xf32>
    %72 = vector.broadcast %71 : vector<1x4xf32> to vector<256x4xf32>
    %73 = arith.addf %68, %72 : vector<256x4xf32>
    %cst_82 = arith.constant 0.000000e+00 : f32
    %74 = vector.broadcast %cst_82 : f32 to vector<256x4xf32>
    %75 = arith.maximumf %73, %74 : vector<256x4xf32>
    %cst_83 = arith.constant 0.000000e+00 : f32
    %76 = vector.broadcast %cst_83 : f32 to vector<18x18x4xf32>
    %c0_84 = arith.constant 0 : index
    %c0_85 = arith.constant 0 : index
    %c0_86 = arith.constant 0 : index
    %77 = vector.load %arg8[%c0_84, %c0_85, %c0_86] : memref<18x18x4xf32, #tpu.memory_space<vmem>>, vector<18x18x4xf32>
    tpu.vector_store %arg8[%c0_84, %c0_85, %c0_86], %76 {strides = array<i32>} : memref<18x18x4xf32, #tpu.memory_space<vmem>>, vector<18x18x4xf32>,
    %78 = vector.shape_cast %75 : vector<256x4xf32> to vector<16x16x4xf32>
    %c1_87 = arith.constant 1 : index
    %c1_88 = arith.constant 1 : index
    %c0_89 = arith.constant 0 : index
    %79 = vector.load %arg8[%c1_87, %c1_88, %c0_89] : memref<18x18x4xf32, #tpu.memory_space<vmem>>, vector<16x16x4xf32>
    tpu.vector_store %arg8[%c1_87, %c1_88, %c0_89], %78 {strides = array<i32>} : memref<18x18x4xf32, #tpu.memory_space<vmem>>, vector<16x16x4xf32>,
    %cst_90 = arith.constant 0.000000e+00 : f32
    %80 = vector.broadcast %cst_90 : f32 to vector<256x4xf32>
    %c0_91 = arith.constant 0 : index
    %c0_92 = arith.constant 0 : index
    %c0_93 = arith.constant 0 : index
    %81 = vector.load %arg8[%c0_91, %c0_92, %c0_93] : memref<18x18x4xf32, #tpu.memory_space<vmem>>, vector<16x16x4xf32>
    %82 = vector.shape_cast %81 : vector<16x16x4xf32> to vector<256x4xf32>
    %83 = arith.truncf %82 : vector<256x4xf32> to vector<256x4xbf16>
    %c0_94 = arith.constant 0 : index
    %c0_95 = arith.constant 0 : index
    %c0_96 = arith.constant 0 : index
    %c0_97 = arith.constant 0 : index
    %84 = vector.load %arg4[%c0_94, %c0_95, %c0_96, %c0_97] : memref<3x3x4x4xbf16, #tpu.memory_space<vmem>>, vector<1x1x4x4xbf16>
    %85 = vector.shape_cast %84 : vector<1x1x4x4xbf16> to vector<4x4xbf16>
    %cst_98 = arith.constant dense<0.000000e+00> : vector<256x4xf32>
    %86 = tpu.matmul %83, %85, %cst_98 {dimension_numbers = #tpu.dot_dimension_numbers<[1], [0], [0], [1], [0, 0, 1, 1], [], []>} : vector<256x4xbf16>, vector<4x4xbf16>, vector<256x4xf32> -> vector<256x4xf32>
    %87 = arith.addf %80, %86 : vector<256x4xf32>
    %c0_99 = arith.constant 0 : index
    %c1_100 = arith.constant 1 : index
    %c0_101 = arith.constant 0 : index
    %88 = vector.load %arg8[%c0_99, %c1_100, %c0_101] : memref<18x18x4xf32, #tpu.memory_space<vmem>>, vector<16x16x4xf32>
    %89 = vector.shape_cast %88 : vector<16x16x4xf32> to vector<256x4xf32>
    %90 = arith.truncf %89 : vector<256x4xf32> to vector<256x4xbf16>
    %c0_102 = arith.constant 0 : index
    %c1_103 = arith.constant 1 : index
    %c0_104 = arith.constant 0 : index
    %c0_105 = arith.constant 0 : index
    %91 = vector.load %arg4[%c0_102, %c1_103, %c0_104, %c0_105] : memref<3x3x4x4xbf16, #tpu.memory_space<vmem>>, vector<1x1x4x4xbf16>
    %92 = vector.shape_cast %91 : vector<1x1x4x4xbf16> to vector<4x4xbf16>
    %cst_106 = arith.constant dense<0.000000e+00> : vector<256x4xf32>
    %93 = tpu.matmul %90, %92, %cst_106 {dimension_numbers = #tpu.dot_dimension_numbers<[1], [0], [0], [1], [0, 0, 1, 1], [], []>} : vector<256x4xbf16>, vector<4x4xbf16>, vector<256x4xf32> -> vector<256x4xf32>
    %94 = arith.addf %87, %93 : vector<256x4xf32>
    %c0_107 = arith.constant 0 : index
    %c2_108 = arith.constant 2 : index
    %c0_109 = arith.constant 0 : index
    %95 = vector.load %arg8[%c0_107, %c2_108, %c0_109] : memref<18x18x4xf32, #tpu.memory_space<vmem>>, vector<16x16x4xf32>
    %96 = vector.shape_cast %95 : vector<16x16x4xf32> to vector<256x4xf32>
    %97 = arith.truncf %96 : vector<256x4xf32> to vector<256x4xbf16>
    %c0_110 = arith.constant 0 : index
    %c2_111 = arith.constant 2 : index
    %c0_112 = arith.constant 0 : index
    %c0_113 = arith.constant 0 : index
    %98 = vector.load %arg4[%c0_110, %c2_111, %c0_112, %c0_113] : memref<3x3x4x4xbf16, #tpu.memory_space<vmem>>, vector<1x1x4x4xbf16>
    %99 = vector.shape_cast %98 : vector<1x1x4x4xbf16> to vector<4x4xbf16>
    %cst_114 = arith.constant dense<0.000000e+00> : vector<256x4xf32>
    %100 = tpu.matmul %97, %99, %cst_114 {dimension_numbers = #tpu.dot_dimension_numbers<[1], [0], [0], [1], [0, 0, 1, 1], [], []>} : vector<256x4xbf16>, vector<4x4xbf16>, vector<256x4xf32> -> vector<256x4xf32>
    %101 = arith.addf %94, %100 : vector<256x4xf32>
    %c1_115 = arith.constant 1 : index
    %c0_116 = arith.constant 0 : index
    %c0_117 = arith.constant 0 : index
    %102 = vector.load %arg8[%c1_115, %c0_116, %c0_117] : memref<18x18x4xf32, #tpu.memory_space<vmem>>, vector<16x16x4xf32>
    %103 = vector.shape_cast %102 : vector<16x16x4xf32> to vector<256x4xf32>
    %104 = arith.truncf %103 : vector<256x4xf32> to vector<256x4xbf16>
    %c1_118 = arith.constant 1 : index
    %c0_119 = arith.constant 0 : index
    %c0_120 = arith.constant 0 : index
    %c0_121 = arith.constant 0 : index
    %105 = vector.load %arg4[%c1_118, %c0_119, %c0_120, %c0_121] : memref<3x3x4x4xbf16, #tpu.memory_space<vmem>>, vector<1x1x4x4xbf16>
    %106 = vector.shape_cast %105 : vector<1x1x4x4xbf16> to vector<4x4xbf16>
    %cst_122 = arith.constant dense<0.000000e+00> : vector<256x4xf32>
    %107 = tpu.matmul %104, %106, %cst_122 {dimension_numbers = #tpu.dot_dimension_numbers<[1], [0], [0], [1], [0, 0, 1, 1], [], []>} : vector<256x4xbf16>, vector<4x4xbf16>, vector<256x4xf32> -> vector<256x4xf32>
    %108 = arith.addf %101, %107 : vector<256x4xf32>
    %c1_123 = arith.constant 1 : index
    %c1_124 = arith.constant 1 : index
    %c0_125 = arith.constant 0 : index
    %109 = vector.load %arg8[%c1_123, %c1_124, %c0_125] : memref<18x18x4xf32, #tpu.memory_space<vmem>>, vector<16x16x4xf32>
    %110 = vector.shape_cast %109 : vector<16x16x4xf32> to vector<256x4xf32>
    %111 = arith.truncf %110 : vector<256x4xf32> to vector<256x4xbf16>
    %c1_126 = arith.constant 1 : index
    %c1_127 = arith.constant 1 : index
    %c0_128 = arith.constant 0 : index
    %c0_129 = arith.constant 0 : index
    %112 = vector.load %arg4[%c1_126, %c1_127, %c0_128, %c0_129] : memref<3x3x4x4xbf16, #tpu.memory_space<vmem>>, vector<1x1x4x4xbf16>
    %113 = vector.shape_cast %112 : vector<1x1x4x4xbf16> to vector<4x4xbf16>
    %cst_130 = arith.constant dense<0.000000e+00> : vector<256x4xf32>
    %114 = tpu.matmul %111, %113, %cst_130 {dimension_numbers = #tpu.dot_dimension_numbers<[1], [0], [0], [1], [0, 0, 1, 1], [], []>} : vector<256x4xbf16>, vector<4x4xbf16>, vector<256x4xf32> -> vector<256x4xf32>
    %115 = arith.addf %108, %114 : vector<256x4xf32>
    %c1_131 = arith.constant 1 : index
    %c2_132 = arith.constant 2 : index
    %c0_133 = arith.constant 0 : index
    %116 = vector.load %arg8[%c1_131, %c2_132, %c0_133] : memref<18x18x4xf32, #tpu.memory_space<vmem>>, vector<16x16x4xf32>
    %117 = vector.shape_cast %116 : vector<16x16x4xf32> to vector<256x4xf32>
    %118 = arith.truncf %117 : vector<256x4xf32> to vector<256x4xbf16>
    %c1_134 = arith.constant 1 : index
    %c2_135 = arith.constant 2 : index
    %c0_136 = arith.constant 0 : index
    %c0_137 = arith.constant 0 : index
    %119 = vector.load %arg4[%c1_134, %c2_135, %c0_136, %c0_137] : memref<3x3x4x4xbf16, #tpu.memory_space<vmem>>, vector<1x1x4x4xbf16>
    %120 = vector.shape_cast %119 : vector<1x1x4x4xbf16> to vector<4x4xbf16>
    %cst_138 = arith.constant dense<0.000000e+00> : vector<256x4xf32>
    %121 = tpu.matmul %118, %120, %cst_138 {dimension_numbers = #tpu.dot_dimension_numbers<[1], [0], [0], [1], [0, 0, 1, 1], [], []>} : vector<256x4xbf16>, vector<4x4xbf16>, vector<256x4xf32> -> vector<256x4xf32>
    %122 = arith.addf %115, %121 : vector<256x4xf32>
    %c2_139 = arith.constant 2 : index
    %c0_140 = arith.constant 0 : index
    %c0_141 = arith.constant 0 : index
    %123 = vector.load %arg8[%c2_139, %c0_140, %c0_141] : memref<18x18x4xf32, #tpu.memory_space<vmem>>, vector<16x16x4xf32>
    %124 = vector.shape_cast %123 : vector<16x16x4xf32> to vector<256x4xf32>
    %125 = arith.truncf %124 : vector<256x4xf32> to vector<256x4xbf16>
    %c2_142 = arith.constant 2 : index
    %c0_143 = arith.constant 0 : index
    %c0_144 = arith.constant 0 : index
    %c0_145 = arith.constant 0 : index
    %126 = vector.load %arg4[%c2_142, %c0_143, %c0_144, %c0_145] : memref<3x3x4x4xbf16, #tpu.memory_space<vmem>>, vector<1x1x4x4xbf16>
    %127 = vector.shape_cast %126 : vector<1x1x4x4xbf16> to vector<4x4xbf16>
    %cst_146 = arith.constant dense<0.000000e+00> : vector<256x4xf32>
    %128 = tpu.matmul %125, %127, %cst_146 {dimension_numbers = #tpu.dot_dimension_numbers<[1], [0], [0], [1], [0, 0, 1, 1], [], []>} : vector<256x4xbf16>, vector<4x4xbf16>, vector<256x4xf32> -> vector<256x4xf32>
    %129 = arith.addf %122, %128 : vector<256x4xf32>
    %c2_147 = arith.constant 2 : index
    %c1_148 = arith.constant 1 : index
    %c0_149 = arith.constant 0 : index
    %130 = vector.load %arg8[%c2_147, %c1_148, %c0_149] : memref<18x18x4xf32, #tpu.memory_space<vmem>>, vector<16x16x4xf32>
    %131 = vector.shape_cast %130 : vector<16x16x4xf32> to vector<256x4xf32>
    %132 = arith.truncf %131 : vector<256x4xf32> to vector<256x4xbf16>
    %c2_150 = arith.constant 2 : index
    %c1_151 = arith.constant 1 : index
    %c0_152 = arith.constant 0 : index
    %c0_153 = arith.constant 0 : index
    %133 = vector.load %arg4[%c2_150, %c1_151, %c0_152, %c0_153] : memref<3x3x4x4xbf16, #tpu.memory_space<vmem>>, vector<1x1x4x4xbf16>
    %134 = vector.shape_cast %133 : vector<1x1x4x4xbf16> to vector<4x4xbf16>
    %cst_154 = arith.constant dense<0.000000e+00> : vector<256x4xf32>
    %135 = tpu.matmul %132, %134, %cst_154 {dimension_numbers = #tpu.dot_dimension_numbers<[1], [0], [0], [1], [0, 0, 1, 1], [], []>} : vector<256x4xbf16>, vector<4x4xbf16>, vector<256x4xf32> -> vector<256x4xf32>
    %136 = arith.addf %129, %135 : vector<256x4xf32>
    %c2_155 = arith.constant 2 : index
    %c2_156 = arith.constant 2 : index
    %c0_157 = arith.constant 0 : index
    %137 = vector.load %arg8[%c2_155, %c2_156, %c0_157] : memref<18x18x4xf32, #tpu.memory_space<vmem>>, vector<16x16x4xf32>
    %138 = vector.shape_cast %137 : vector<16x16x4xf32> to vector<256x4xf32>
    %139 = arith.truncf %138 : vector<256x4xf32> to vector<256x4xbf16>
    %c2_158 = arith.constant 2 : index
    %c2_159 = arith.constant 2 : index
    %c0_160 = arith.constant 0 : index
    %c0_161 = arith.constant 0 : index
    %140 = vector.load %arg4[%c2_158, %c2_159, %c0_160, %c0_161] : memref<3x3x4x4xbf16, #tpu.memory_space<vmem>>, vector<1x1x4x4xbf16>
    %141 = vector.shape_cast %140 : vector<1x1x4x4xbf16> to vector<4x4xbf16>
    %cst_162 = arith.constant dense<0.000000e+00> : vector<256x4xf32>
    %142 = tpu.matmul %139, %141, %cst_162 {dimension_numbers = #tpu.dot_dimension_numbers<[1], [0], [0], [1], [0, 0, 1, 1], [], []>} : vector<256x4xbf16>, vector<4x4xbf16>, vector<256x4xf32> -> vector<256x4xf32>
    %143 = arith.addf %136, %142 : vector<256x4xf32>
    %c0_163 = arith.constant 0 : index
    %c0_164 = arith.constant 0 : index
    %144 = vector.load %arg5[%c0_163, %c0_164] : memref<1x4xf32, #tpu.memory_space<vmem>>, vector<1x4xf32>
    %145 = vector.shape_cast %144 : vector<1x4xf32> to vector<4xf32>
    %146 = vector.shape_cast %145 : vector<4xf32> to vector<1x4xf32>
    %147 = vector.broadcast %146 : vector<1x4xf32> to vector<256x4xf32>
    %148 = arith.addf %143, %147 : vector<256x4xf32>
    %c0_165 = arith.constant 0 : index
    %c0_166 = arith.constant 0 : index
    %c0_167 = arith.constant 0 : index
    %c0_168 = arith.constant 0 : index
    %149 = vector.load %arg1[%c0_165, %c0_166, %c0_167, %c0_168] : memref<1x16x16x4xf32, #tpu.memory_space<vmem>>, vector<1x16x16x4xf32>
    %150 = vector.shape_cast %149 : vector<1x16x16x4xf32> to vector<16x16x4xf32>
    %151 = vector.shape_cast %150 : vector<16x16x4xf32> to vector<256x4xf32>
    %152 = arith.addf %148, %151 : vector<256x4xf32>
    %cst_169 = arith.constant 0.000000e+00 : f32
    %153 = vector.broadcast %cst_169 : f32 to vector<256x4xf32>
    %154 = arith.maximumf %152, %153 : vector<256x4xf32>
    %155 = vector.shape_cast %154 : vector<256x4xf32> to vector<16x16x4xf32>
    %c0_170 = arith.constant 0 : index
    %c0_171 = arith.constant 0 : index
    %c0_172 = arith.constant 0 : index
    %c0_173 = arith.constant 0 : index
    %156 = vector.load %arg6[%c0_170, %c0_171, %c0_172, %c0_173] : memref<1x16x16x4xf32, #tpu.memory_space<vmem>>, vector<1x16x16x4xf32>
    %157 = vector.shape_cast %156 : vector<1x16x16x4xf32> to vector<16x16x4xf32>
    %158 = vector.shape_cast %155 : vector<16x16x4xf32> to vector<1x16x16x4xf32>
    tpu.vector_store %arg6[%c0_170, %c0_171, %c0_172, %c0_173], %158 {strides = array<i32>} : memref<1x16x16x4xf32, #tpu.memory_space<vmem>>, vector<1x16x16x4xf32>,
    return
  }
  func.func @transform_0(%arg0: i32) -> (i32, i32, i32, i32) {
    %c0_i32 = arith.constant 0 : i32
    %c0_i32_0 = arith.constant 0 : i32
    %c0_i32_1 = arith.constant 0 : i32
    %c0_i32_2 = arith.constant 0 : i32
    return %arg0, %c0_i32, %c0_i32_0, %c0_i32_1 : i32, i32, i32, i32
  }
  func.func @transform_1(%arg0: i32) -> (i32, i32, i32, i32) {
    %c0_i32 = arith.constant 0 : i32
    %c0_i32_0 = arith.constant 0 : i32
    %c0_i32_1 = arith.constant 0 : i32
    %c0_i32_2 = arith.constant 0 : i32
    %c0_i32_3 = arith.constant 0 : i32
    return %c0_i32, %c0_i32_0, %c0_i32_1, %c0_i32_2 : i32, i32, i32, i32
  }
  func.func @transform_2(%arg0: i32) -> (i32, i32) {
    %c0_i32 = arith.constant 0 : i32
    %c0_i32_0 = arith.constant 0 : i32
    %c0_i32_1 = arith.constant 0 : i32
    return %c0_i32, %c0_i32_0 : i32, i32
  }
  func.func @transform_3(%arg0: i32) -> (i32, i32, i32, i32) {
    %c0_i32 = arith.constant 0 : i32
    %c0_i32_0 = arith.constant 0 : i32
    %c0_i32_1 = arith.constant 0 : i32
    %c0_i32_2 = arith.constant 0 : i32
    %c0_i32_3 = arith.constant 0 : i32
    return %c0_i32, %c0_i32_0, %c0_i32_1, %c0_i32_2 : i32, i32, i32, i32
  }
  func.func @transform_4(%arg0: i32) -> (i32, i32) {
    %c0_i32 = arith.constant 0 : i32
    %c0_i32_0 = arith.constant 0 : i32
    %c0_i32_1 = arith.constant 0 : i32
    return %c0_i32, %c0_i32_0 : i32, i32
  }
  func.func @transform_5(%arg0: i32) -> (i32, i32, i32, i32) {
    %c0_i32 = arith.constant 0 : i32
    %c0_i32_0 = arith.constant 0 : i32
    %c0_i32_1 = arith.constant 0 : i32
    %c0_i32_2 = arith.constant 0 : i32
    return %arg0, %c0_i32, %c0_i32_0, %c0_i32_1 : i32, i32, i32, i32
  }
}

</mosaic_0001>

<llo_original>
// kernel: tpu_custom_call.1
$region0: #{tpu_custom_call.1}
  #allocation0 [shape = 'u32[]', space=smem, size = 0x4, offset = 0x4, fixed_abs, tag = 'smem constant byte address 0x4 - core index']
  #allocation1 [shape = 'u32[72,128]{1,0:T(1,128)}', space=vmem, size = 0x9000, scoped, tag = 'internal scratch']
  #allocation2 [shape = 'f32[18,18,4]{2,1,0:T(8,128)}', space=vmem, size = 0x36000, scoped, tag = 'scratch operand']
  #allocation3 [shape = 'f32[18,18,4]{2,1,0:T(8,128)}', space=vmem, size = 0x36000, scoped, tag = 'scratch operand']
  %s0 = inlined_call_operand.vmem [shape: f32[2,16,16,4], index: 0, kind: input, shape index: {}]
  %s1 = inlined_call_operand.vmem [shape: bf16[3,3,4,4], index: 1, kind: input, shape index: {}]
  %s2 = inlined_call_operand.vmem [shape: f32[1,4], index: 2, kind: input, shape index: {}]
  %s3 = inlined_call_operand.vmem [shape: bf16[3,3,4,4], index: 3, kind: input, shape index: {}]
  %s4 = inlined_call_operand.vmem [shape: f32[1,4], index: 4, kind: input, shape index: {}]
  %s5 = inlined_call_operand.vmem [shape: f32[2,16,16,4], index: 5, kind: output, shape index: {}]
  %s6 = sld [smem:[#allocation0]]
  $region53: #{tpu_custom_call.1} parent=0
    _
  %s8 = ssub.s32 1, %s6
  %s9 = scalar_select 0, %s8, %s6
  loop: start=0, step=1, limit=4
  $region2: #{tpu_custom_call.1} parent=0 // loop_pre_header
    _
  $region3: #{tpu_custom_call.1} parent=0 // loop_header
    %s11 = sphi 0, %s15
    %p12 = scmp.ge.s32.totalorder %s11, 4
    %s21 = sphi 0, %s23
    %s24 = sphi 0, %s21
    %s25 = sphi 0, %s24
    %s41 = sphi 0, %s25
    %s45 = sphi 0, %s45
    %s47 = sphi 0, %s45
    %s48 = sphi 0, %s47
    %s62 = sphi 0, %s48
    %s66 = sphi 0, %s66
    %s68 = sphi 0, %s66
    %s69 = sphi 0, %s68
    %s83 = sphi 0, %s69
    %s87 = sphi 0, %s87
    %s89 = sphi 0, %s87
    %s90 = sphi 0, %s89
    %s104 = sphi 0, %s90
    %s108 = sphi 0, %s108
    %s110 = sphi 0, %s108
    %s111 = sphi 0, %s110
    %s125 = sphi 0, %s111
    %s131 = sphi 0, %s133
    %s134 = sphi 0, %s131
    %s135 = sphi 0, %s134
    %s151 = sphi 0, %s135
  $region4: #{tpu_custom_call.1} parent=0 // loop_header_branch
    %14 = sbr.rel (%p12) target = $region8
  $region5: #{tpu_custom_call.1} parent=0 // loop_body
    %s16 = ssub.s32 %s11, 1
    %s17 = ssub.s32 %s11, 2
    %s18 = sadd.s32 %s11, 1
    %s19 = ssub.s32 %s11, %s18
    %p20 = scmp.eq.s32.totalorder %s19, 0
    %s22 = sadd.s32 %s21, 1
    %s23 = scalar_select %p20, %s21, %s22
    %p26 = pneg %p20
    %p27 = scmp.eq.s32.totalorder %s11, 1
    %p28 = por %p26, %p27
    %p29 = scmp.ne.s32.totalorder %s21, %s24
    %p30 = scmp.eq.s32.totalorder %s11, 0
    %p31 = por %p29, %p30
    %p32 = scmp.ne.s32.totalorder %s21, %s24
    %p33 = scmp.eq.s32.totalorder %s16, 1
    %p34 = por %p32, %p33
    %p35 = scmp.ne.s32.totalorder %s24, %s25
    %p36 = scmp.eq.s32.totalorder %s16, 0
    %p37 = por %p35, %p36
    %p38 = scmp.ne.s32.totalorder %s24, %s25
    %p39 = scmp.eq.s32.totalorder %s17, 1
    %p40 = por %p38, %p39
    %p42 = scmp.ne.s32.totalorder %s25, %s41
    %p43 = scmp.eq.s32.totalorder %s17, 0
    %p44 = por %p42, %p43
    %s46 = sadd.s32 %s45, 1
    %p49 = scmp.eq.s32.totalorder %s11, 1
    %p50 = scmp.ne.s32.totalorder %s45, %s47
    %p51 = scmp.eq.s32.totalorder %s11, 0
    %p52 = por %p50, %p51
    %p53 = scmp.ne.s32.totalorder %s45, %s47
    %p54 = scmp.eq.s32.totalorder %s16, 1
    %p55 = por %p53, %p54
    %p56 = scmp.ne.s32.totalorder %s47, %s48
    %p57 = scmp.eq.s32.totalorder %s16, 0
    %p58 = por %p56, %p57
    %p59 = scmp.ne.s32.totalorder %s47, %s48
    %p60 = scmp.eq.s32.totalorder %s17, 1
    %p61 = por %p59, %p60
    %p63 = scmp.ne.s32.totalorder %s48, %s62
    %p64 = scmp.eq.s32.totalorder %s17, 0
    %p65 = por %p63, %p64
    %s67 = sadd.s32 %s66, 1
    %p70 = scmp.eq.s32.totalorder %s11, 1
    %p71 = scmp.ne.s32.totalorder %s66, %s68
    %p72 = scmp.eq.s32.totalorder %s11, 0
    %p73 = por %p71, %p72
    %p74 = scmp.ne.s32.totalorder %s66, %s68
    %p75 = scmp.eq.s32.totalorder %s16, 1
    %p76 = por %p74, %p75
    %p77 = scmp.ne.s32.totalorder %s68, %s69
    %p78 = scmp.eq.s32.totalorder %s16, 0
    %p79 = por %p77, %p78
    %p80 = scmp.ne.s32.totalorder %s68, %s69
    %p81 = scmp.eq.s32.totalorder %s17, 1
    %p82 = por %p80, %p81
    %p84 = scmp.ne.s32.totalorder %s69, %s83
    %p85 = scmp.eq.s32.totalorder %s17, 0
    %p86 = por %p84, %p85
    %s88 = sadd.s32 %s87, 1
    %p91 = scmp.eq.s32.totalorder %s11, 1
    %p92 = scmp.ne.s32.totalorder %s87, %s89
    %p93 = scmp.eq.s32.totalorder %s11, 0
    %p94 = por %p92, %p93
    %p95 = scmp.ne.s32.totalorder %s87, %s89
    %p96 = scmp.eq.s32.totalorder %s16, 1
    %p97 = por %p95, %p96
    %p98 = scmp.ne.s32.totalorder %s89, %s90
    %p99 = scmp.eq.s32.totalorder %s16, 0
    %p100 = por %p98, %p99
    %p101 = scmp.ne.s32.totalorder %s89, %s90
    %p102 = scmp.eq.s32.totalorder %s17, 1
    %p103 = por %p101, %p102
    %p105 = scmp.ne.s32.totalorder %s90, %s104
    %p106 = scmp.eq.s32.totalorder %s17, 0
    %p107 = por %p105, %p106
    %s109 = sadd.s32 %s108, 1
    %p112 = scmp.eq.s32.totalorder %s11, 1
    %p113 = scmp.ne.s32.totalorder %s108, %s110
    %p114 = scmp.eq.s32.totalorder %s11, 0
    %p115 = por %p113, %p114
    %p116 = scmp.ne.s32.totalorder %s108, %s110
    %p117 = scmp.eq.s32.totalorder %s16, 1
    %p118 = por %p116, %p117
    %p119 = scmp.ne.s32.totalorder %s110, %s111
    %p120 = scmp.eq.s32.totalorder %s16, 0
    %p121 = por %p119, %p120
    %p122 = scmp.ne.s32.totalorder %s110, %s111
    %p123 = scmp.eq.s32.totalorder %s17, 1
    %p124 = por %p122, %p123
    %p126 = scmp.ne.s32.totalorder %s111, %s125
    %p127 = scmp.eq.s32.totalorder %s17, 0
    %p128 = por %p126, %p127
    %s129 = ssub.s32 %s11, %s18
    %p130 = scmp.eq.s32.totalorder %s129, 0
    %s132 = sadd.s32 %s131, 1
    %s133 = scalar_select %p130, %s131, %s132
    %p136 = pneg %p130
    %p137 = scmp.eq.s32.totalorder %s11, 1
    %p138 = por %p136, %p137
    %p139 = scmp.ne.s32.totalorder %s131, %s134
    %p140 = scmp.eq.s32.totalorder %s11, 0
    %p141 = por %p139, %p140
    %p142 = scmp.ne.s32.totalorder %s131, %s134
    %p143 = scmp.eq.s32.totalorder %s16, 1
    %p144 = por %p142, %p143
    %p145 = scmp.ne.s32.totalorder %s134, %s135
    %p146 = scmp.eq.s32.totalorder %s16, 0
    %p147 = por %p145, %p146
    %p148 = scmp.ne.s32.totalorder %s134, %s135
    %p149 = scmp.eq.s32.totalorder %s17, 1
    %p150 = por %p148, %p149
    %p152 = scmp.ne.s32.totalorder %s135, %s151
    %p153 = scmp.eq.s32.totalorder %s17, 0
    %p154 = por %p152, %p153
    %p155 = scmp.le.s32.totalorder 1, %s11
    %p156 = scmp.lt.s32.totalorder %s11, 3
    %p157 = pnand %p155, %p156
    %p158 = pneg %p157
    // Predicated region
    $region9: #{tpu_custom_call.1} parent=5 // pred_check
      _
    $region10: #{tpu_custom_call.1} parent=5 // pred_check_branch
      %160 = sbr.rel (%p157) target = $region12
    $region11: #{tpu_custom_call.1} parent=5 // pred_region
      %s161 = ssub.s32 %s11, 1
      // Predicated region
      $region13: #{tpu_custom_call.1} parent=11 // pred_check
        %p162 = pneg %p58
      $region14: #{tpu_custom_call.1} parent=11 // pred_check_branch
        %164 = sbr.rel (%p162) target = $region16
      $region15: #{tpu_custom_call.1} parent=11 // pred_region
        _
      $region16: #{tpu_custom_call.1} parent=11 // pred_fallthru
        _
      // Predicated region
      $region17: #{tpu_custom_call.1} parent=11 // pred_check
        %p165 = pneg %p79
      $region18: #{tpu_custom_call.1} parent=11 // pred_check_branch
        %167 = sbr.rel (%p165) target = $region20
      $region19: #{tpu_custom_call.1} parent=11 // pred_region
        _
      $region20: #{tpu_custom_call.1} parent=11 // pred_fallthru
        _
      // Predicated region
      $region21: #{tpu_custom_call.1} parent=11 // pred_check
        %p168 = pneg %p100
      $region22: #{tpu_custom_call.1} parent=11 // pred_check_branch
        %170 = sbr.rel (%p168) target = $region24
      $region23: #{tpu_custom_call.1} parent=11 // pred_region
        _
      $region24: #{tpu_custom_call.1} parent=11 // pred_fallthru
        _
      // Predicated region
      $region25: #{tpu_custom_call.1} parent=11 // pred_check
        %p171 = pneg %p121
      $region26: #{tpu_custom_call.1} parent=11 // pred_check_branch
        %173 = sbr.rel (%p171) target = $region28
      $region27: #{tpu_custom_call.1} parent=11 // pred_region
        _
      $region28: #{tpu_custom_call.1} parent=11 // pred_fallthru
        _
    $region12: #{tpu_custom_call.1} parent=5 // pred_fallthru
      _
    %p174 = scmp.lt.s32.totalorder %s11, 2
    // Predicated region
    $region29: #{tpu_custom_call.1} parent=5 // pred_check
      %p175 = pneg %p174
    $region30: #{tpu_custom_call.1} parent=5 // pred_check_branch
      %177 = sbr.rel (%p175) target = $region32
    $region31: #{tpu_custom_call.1} parent=5 // pred_region
      // Predicated region
      $region33: #{tpu_custom_call.1} parent=31 // pred_check
        %p178 = pneg %p31
      $region34: #{tpu_custom_call.1} parent=31 // pred_check_branch
        %180 = sbr.rel (%p178) target = $region36
      $region35: #{tpu_custom_call.1} parent=31 // pred_region
        %p181 = scmp.lt.s32.totalorder %s11, 1
        %s182 = scalar_select %p181, %s11, 1
        %s183 = smul.addr %s182, 32
        %s184 = smul.addr %s183, 8
        %s185 = scalar_lea.vmem %s0, %s184
      $region36: #{tpu_custom_call.1} parent=31 // pred_fallthru
        _
    $region32: #{tpu_custom_call.1} parent=5 // pred_fallthru
      _
    %p186 = scmp.le.s32.totalorder 1, %s11
    %p187 = scmp.lt.s32.totalorder %s11, 3
    %p188 = pnand %p186, %p187
    %p189 = pneg %p188
    // Predicated region
    $region37: #{tpu_custom_call.1} parent=5 // pred_check
      _
    $region38: #{tpu_custom_call.1} parent=5 // pred_check_branch
      %191 = sbr.rel (%p188) target = $region40
    $region39: #{tpu_custom_call.1} parent=5 // pred_region
      %s192 = ssub.s32 %s11, 1
      %p193 = scmp.lt.s32.totalorder %s16, 1
      %s194 = scalar_select %p193, %s16, 1
      %s195 = smul.addr %s194, 32
      %s196 = smul.addr %s195, 8
      %s197 = scalar_lea.vmem %s0, %s196
      %p198 = pneg %p37
      %p199 = pneg %p34
      %p200 = pneg %p58
      %p201 = pneg %p55
      %p202 = pneg %p79
      %p203 = pneg %p76
      %p204 = pneg %p100
      %p205 = pneg %p97
      %p206 = pneg %p121
      %p207 = pneg %p118
      %p208 = pneg %p147
      %p209 = pneg %p144
      %p210 = scmp.lt.s32.totalorder %s16, 1
      %s211 = scalar_select %p210, %s16, 1
      %s212 = smul.addr %s211, 32
      %s213 = smul.addr %s212, 8
      %s214 = scalar_lea.vmem %s5, %s213
      %p215 = scmp.lt.s32.totalorder %s16, 1
      %s216 = scalar_select %p215, %s16, 1
      %s217 = smul.addr %s216, 32
      %s218 = smul.addr %s217, 8
      %s219 = scalar_lea.vmem %s0, %s218
      %p220 = scmp.lt.s32.totalorder %s16, 1
      %s221 = scalar_select %p220, %s16, 1
      %s222 = smul.addr %s221, 32
      %s223 = smul.addr %s222, 8
      %s224 = scalar_lea.vmem %s5, %s223
      %vm226 = vcmask 31744
      %227 = vst.msk [vmem:[#allocation2] sm:$0xff] %vm226, 0.0
      %228 = vst.msk [vmem:[#allocation2 + $0x8] sm:$0xff] %vm226, 0.0
      %vm229 = vcmask 25600
      %230 = vst.msk [vmem:[#allocation2 + $0x10] sm:$0x3] %vm229, 0.0
      %231 = vst.msk [vmem:[#allocation2 + $0x18] sm:$0xff] %vm226, 0.0
      %232 = vst.msk [vmem:[#allocation2 + $0x20] sm:$0xff] %vm226, 0.0
      %233 = vst.msk [vmem:[#allocation2 + $0x28] sm:$0x3] %vm229, 0.0
      %234 = vst.msk [vmem:[#allocation2 + $0x30] sm:$0xff] %vm226, 0.0
      %235 = vst.msk [vmem:[#allocation2 + $0x38] sm:$0xff] %vm226, 0.0
      %236 = vst.msk [vmem:[#allocation2 + $0x40] sm:$0x3] %vm229, 0.0
      %237 = vst.msk [vmem:[#allocation2 + $0x48] sm:$0xff] %vm226, 0.0
      %238 = vst.msk [vmem:[#allocation2 + $0x50] sm:$0xff] %vm226, 0.0
      %239 = vst.msk [vmem:[#allocation2 + $0x58] sm:$0x3] %vm229, 0.0
      %240 = vst.msk [vmem:[#allocation2 + $0x60] sm:$0xff] %vm226, 0.0
      %241 = vst.msk [vmem:[#allocation2 + $0x68] sm:$0xff] %vm226, 0.0
      %242 = vst.msk [vmem:[#allocation2 + $0x70] sm:$0x3] %vm229, 0.0
      %243 = vst.msk [vmem:[#allocation2 + $0x78] sm:$0xff] %vm226, 0.0
      %244 = vst.msk [vmem:[#allocation2 + $0x80] sm:$0xff] %vm226, 0.0
      %245 = vst.msk [vmem:[#allocation2 + $0x88] sm:$0x3] %vm229, 0.0
      %246 = vst.msk [vmem:[#allocation2 + $0x90] sm:$0xff] %vm226, 0.0
      %247 = vst.msk [vmem:[#allocation2 + $0x98] sm:$0xff] %vm226, 0.0
      %248 = vst.msk [vmem:[#allocation2 + $0xa0] sm:$0x3] %vm229, 0.0
      %249 = vst.msk [vmem:[#allocation2 + $0xa8] sm:$0xff] %vm226, 0.0
      %250 = vst.msk [vmem:[#allocation2 + $0xb0] sm:$0xff] %vm226, 0.0
      %251 = vst.msk [vmem:[#allocation2 + $0xb8] sm:$0x3] %vm229, 0.0
      %252 = vst.msk [vmem:[#allocation2 + $0xc0] sm:$0xff] %vm226, 0.0
      %253 = vst.msk [vmem:[#allocation2 + $0xc8] sm:$0xff] %vm226, 0.0
      %254 = vst.msk [vmem:[#allocation2 + $0xd0] sm:$0x3] %vm229, 0.0
      %255 = vst.msk [vmem:[#allocation2 + $0xd8] sm:$0xff] %vm226, 0.0
      %256 = vst.msk [vmem:[#allocation2 + $0xe0] sm:$0xff] %vm226, 0.0
      %257 = vst.msk [vmem:[#allocation2 + $0xe8] sm:$0x3] %vm229, 0.0
      %258 = vst.msk [vmem:[#allocation2 + $0xf0] sm:$0xff] %vm226, 0.0
      %259 = vst.msk [vmem:[#allocation2 + $0xf8] sm:$0xff] %vm226, 0.0
      %260 = vst.msk [vmem:[#allocation2 + $0x100] sm:$0x3] %vm229, 0.0
      %261 = vst.msk [vmem:[#allocation2 + $0x108] sm:$0xff] %vm226, 0.0
      %262 = vst.msk [vmem:[#allocation2 + $0x110] sm:$0xff] %vm226, 0.0
      %263 = vst.msk [vmem:[#allocation2 + $0x118] sm:$0x3] %vm229, 0.0
      %264 = vst.msk [vmem:[#allocation2 + $0x120] sm:$0xff] %vm226, 0.0
      %265 = vst.msk [vmem:[#allocation2 + $0x128] sm:$0xff] %vm226, 0.0
      %266 = vst.msk [vmem:[#allocation2 + $0x130] sm:$0x3] %vm229, 0.0
      %267 = vst.msk [vmem:[#allocation2 + $0x138] sm:$0xff] %vm226, 0.0
      %268 = vst.msk [vmem:[#allocation2 + $0x140] sm:$0xff] %vm226, 0.0
      %269 = vst.msk [vmem:[#allocation2 + $0x148] sm:$0x3] %vm229, 0.0
      %270 = vst.msk [vmem:[#allocation2 + $0x150] sm:$0xff] %vm226, 0.0
      %271 = vst.msk [vmem:[#allocation2 + $0x158] sm:$0xff] %vm226, 0.0
      %272 = vst.msk [vmem:[#allocation2 + $0x160] sm:$0x3] %vm229, 0.0
      %273 = vst.msk [vmem:[#allocation2 + $0x168] sm:$0xff] %vm226, 0.0
      %274 = vst.msk [vmem:[#allocation2 + $0x170] sm:$0xff] %vm226, 0.0
      %275 = vst.msk [vmem:[#allocation2 + $0x178] sm:$0x3] %vm229, 0.0
      %276 = vst.msk [vmem:[#allocation2 + $0x180] sm:$0xff] %vm226, 0.0
      %277 = vst.msk [vmem:[#allocation2 + $0x188] sm:$0xff] %vm226, 0.0
      %278 = vst.msk [vmem:[#allocation2 + $0x190] sm:$0x3] %vm229, 0.0
      %279 = vst.msk [vmem:[#allocation2 + $0x198] sm:$0xff] %vm226, 0.0
      %280 = vst.msk [vmem:[#allocation2 + $0x1a0] sm:$0xff] %vm226, 0.0
      %281 = vst.msk [vmem:[#allocation2 + $0x1a8] sm:$0x3] %vm229, 0.0
      %v282 = vld [vmem:[%s219] sm:$0xff]
      %v283 = vld [vmem:[%s219 + $0x8] sm:$0xff]
      %v284 = vld [vmem:[%s219 + $0x10] sm:$0xff]
      %v285 = vld [vmem:[%s219 + $0x18] sm:$0xff]
      %v286 = vld [vmem:[%s219 + $0x20] sm:$0xff]
      %v287 = vld [vmem:[%s219 + $0x28] sm:$0xff]
      %v288 = vld [vmem:[%s219 + $0x30] sm:$0xff]
      %v289 = vld [vmem:[%s219 + $0x38] sm:$0xff]
      %v290 = vld [vmem:[%s219 + $0x40] sm:$0xff]
      %v291 = vld [vmem:[%s219 + $0x48] sm:$0xff]
      %v292 = vld [vmem:[%s219 + $0x50] sm:$0xff]
      %v293 = vld [vmem:[%s219 + $0x58] sm:$0xff]
      %v294 = vld [vmem:[%s219 + $0x60] sm:$0xff]
      %v295 = vld [vmem:[%s219 + $0x68] sm:$0xff]
      %v296 = vld [vmem:[%s219 + $0x70] sm:$0xff]
      %v297 = vld [vmem:[%s219 + $0x78] sm:$0xff]
      %v298 = vld [vmem:[%s219 + $0x80] sm:$0xff]
      %v299 = vld [vmem:[%s219 + $0x88] sm:$0xff]
      %v300 = vld [vmem:[%s219 + $0x90] sm:$0xff]
      %v301 = vld [vmem:[%s219 + $0x98] sm:$0xff]
      %v302 = vld [vmem:[%s219 + $0xa0] sm:$0xff]
      %v303 = vld [vmem:[%s219 + $0xa8] sm:$0xff]
      %v304 = vld [vmem:[%s219 + $0xb0] sm:$0xff]
      %v305 = vld [vmem:[%s219 + $0xb8] sm:$0xff]
      %v306 = vld [vmem:[%s219 + $0xc0] sm:$0xff]
      %v307 = vld [vmem:[%s219 + $0xc8] sm:$0xff]
      %v308 = vld [vmem:[%s219 + $0xd0] sm:$0xff]
      %v309 = vld [vmem:[%s219 + $0xd8] sm:$0xff]
      %v310 = vld [vmem:[%s219 + $0xe0] sm:$0xff]
      %v311 = vld [vmem:[%s219 + $0xe8] sm:$0xff]
      %v312 = vld [vmem:[%s219 + $0xf0] sm:$0xff]
      %v313 = vld [vmem:[%s219 + $0xf8] sm:$0xff]
      %s314 = scalar_lea.vmem [#allocation2], 24
      %315 = vst.msk [vmem:[%s314 + $0x1] sm:$0xff] %vm226, %v282
      %316 = vst.msk [vmem:[%s314 + $0x9] sm:$0xff] %vm226, %v283
      %317 = vst.msk [vmem:[%s314 + $0x19] sm:$0xff] %vm226, %v284
      %318 = vst.msk [vmem:[%s314 + $0x21] sm:$0xff] %vm226, %v285
      %319 = vst.msk [vmem:[%s314 + $0x31] sm:$0xff] %vm226, %v286
      %320 = vst.msk [vmem:[%s314 + $0x39] sm:$0xff] %vm226, %v287
      %321 = vst.msk [vmem:[%s314 + $0x49] sm:$0xff] %vm226, %v288
      %322 = vst.msk [vmem:[%s314 + $0x51] sm:$0xff] %vm226, %v289
      %323 = vst.msk [vmem:[%s314 + $0x61] sm:$0xff] %vm226, %v290
      %324 = vst.msk [vmem:[%s314 + $0x69] sm:$0xff] %vm226, %v291
      %325 = vst.msk [vmem:[%s314 + $0x79] sm:$0xff] %vm226, %v292
      %326 = vst.msk [vmem:[%s314 + $0x81] sm:$0xff] %vm226, %v293
      %327 = vst.msk [vmem:[%s314 + $0x91] sm:$0xff] %vm226, %v294
      %328 = vst.msk [vmem:[%s314 + $0x99] sm:$0xff] %vm226, %v295
      %329 = vst.msk [vmem:[%s314 + $0xa9] sm:$0xff] %vm226, %v296
      %330 = vst.msk [vmem:[%s314 + $0xb1] sm:$0xff] %vm226, %v297
      %331 = vst.msk [vmem:[%s314 + $0xc1] sm:$0xff] %vm226, %v298
      %332 = vst.msk [vmem:[%s314 + $0xc9] sm:$0xff] %vm226, %v299
      %333 = vst.msk [vmem:[%s314 + $0xd9] sm:$0xff] %vm226, %v300
      %334 = vst.msk [vmem:[%s314 + $0xe1] sm:$0xff] %vm226, %v301
      %335 = vst.msk [vmem:[%s314 + $0xf1] sm:$0xff] %vm226, %v302
      %336 = vst.msk [vmem:[%s314 + $0xf9] sm:$0xff] %vm226, %v303
      %337 = vst.msk [vmem:[%s314 + $0x109] sm:$0xff] %vm226, %v304
      %338 = vst.msk [vmem:[%s314 + $0x111] sm:$0xff] %vm226, %v305
      %339 = vst.msk [vmem:[%s314 + $0x121] sm:$0xff] %vm226, %v306
      %340 = vst.msk [vmem:[%s314 + $0x129] sm:$0xff] %vm226, %v307
      %341 = vst.msk [vmem:[%s314 + $0x139] sm:$0xff] %vm226, %v308
      %342 = vst.msk [vmem:[%s314 + $0x141] sm:$0xff] %vm226, %v309
      %343 = vst.msk [vmem:[%s314 + $0x151] sm:$0xff] %vm226, %v310
      %344 = vst.msk [vmem:[%s314 + $0x159] sm:$0xff] %vm226, %v311
      %345 = vst.msk [vmem:[%s314 + $0x169] sm:$0xff] %vm226, %v312
      %346 = vst.msk [vmem:[%s314 + $0x171] sm:$0xff] %vm226, %v313
      %v347 = vld [vmem:[#allocation2] sm:$0xff]
      %v348 = vld [vmem:[#allocation2 + $0x8] sm:$0xff]
      %v349 = vld [vmem:[#allocation2 + $0x18] sm:$0xff]
      %v350 = vld [vmem:[#allocation2 + $0x20] sm:$0xff]
      %v351 = vld [vmem:[#allocation2 + $0x30] sm:$0xff]
      %v352 = vld [vmem:[#allocation2 + $0x38] sm:$0xff]
      %v353 = vld [vmem:[#allocation2 + $0x48] sm:$0xff]
      %v354 = vld [vmem:[#allocation2 + $0x50] sm:$0xff]
      %v355 = vld [vmem:[#allocation2 + $0x60] sm:$0xff]
      %v356 = vld [vmem:[#allocation2 + $0x68] sm:$0xff]
      %v357 = vld [vmem:[#allocation2 + $0x78] sm:$0xff]
      %v358 = vld [vmem:[#allocation2 + $0x80] sm:$0xff]
      %v359 = vld [vmem:[#allocation2 + $0x90] sm:$0xff]
      %v360 = vld [vmem:[#allocation2 + $0x98] sm:$0xff]
      %v361 = vld [vmem:[#allocation2 + $0xa8] sm:$0xff]
      %v362 = vld [vmem:[#allocation2 + $0xb0] sm:$0xff]
      %v363 = vld [vmem:[#allocation2 + $0xc0] sm:$0xff]
      %v364 = vld [vmem:[#allocation2 + $0xc8] sm:$0xff]
      %v365 = vld [vmem:[#allocation2 + $0xd8] sm:$0xff]
      %v366 = vld [vmem:[#allocation2 + $0xe0] sm:$0xff]
      %v367 = vld [vmem:[#allocation2 + $0xf0] sm:$0xff]
      %v368 = vld [vmem:[#allocation2 + $0xf8] sm:$0xff]
      %v369 = vld [vmem:[#allocation2 + $0x108] sm:$0xff]
      %v370 = vld [vmem:[#allocation2 + $0x110] sm:$0xff]
      %v371 = vld [vmem:[#allocation2 + $0x120] sm:$0xff]
      %v372 = vld [vmem:[#allocation2 + $0x128] sm:$0xff]
      %v373 = vld [vmem:[#allocation2 + $0x138] sm:$0xff]
      %v374 = vld [vmem:[#allocation2 + $0x140] sm:$0xff]
      %v375 = vld [vmem:[#allocation2 + $0x150] sm:$0xff]
      %v376 = vld [vmem:[#allocation2 + $0x158] sm:$0xff]
      %v377 = vld [vmem:[#allocation2 + $0x168] sm:$0xff]
      %v378 = vld [vmem:[#allocation2 + $0x170] sm:$0xff]
      %v379 = vpack.c.bf16 %v348, %v347
      %v380 = vpack.c.bf16 %v350, %v349
      %v381 = vpack.c.bf16 %v352, %v351
      %v382 = vpack.c.bf16 %v354, %v353
      %v383 = vpack.c.bf16 %v356, %v355
      %v384 = vpack.c.bf16 %v358, %v357
      %v385 = vpack.c.bf16 %v360, %v359
      %v386 = vpack.c.bf16 %v362, %v361
      %v387 = vpack.c.bf16 %v364, %v363
      %v388 = vpack.c.bf16 %v366, %v365
      %v389 = vpack.c.bf16 %v368, %v367
      %v390 = vpack.c.bf16 %v370, %v369
      %v391 = vpack.c.bf16 %v372, %v371
      %v392 = vpack.c.bf16 %v374, %v373
      %v393 = vpack.c.bf16 %v376, %v375
      %v394 = vpack.c.bf16 %v378, %v377
      %v395 = vld [vmem:[%s1] sm:$0x3]
      %v396 = vld [vmem:[#allocation2 + $0x1] sm:$0xff]
      %v397 = vld [vmem:[#allocation2 + $0x9] sm:$0xff]
      %v398 = vld [vmem:[#allocation2 + $0x19] sm:$0xff]
      %v399 = vld [vmem:[#allocation2 + $0x21] sm:$0xff]
      %v400 = vld [vmem:[#allocation2 + $0x31] sm:$0xff]
      %v401 = vld [vmem:[#allocation2 + $0x39] sm:$0xff]
      %v402 = vld [vmem:[#allocation2 + $0x49] sm:$0xff]
      %v403 = vld [vmem:[#allocation2 + $0x51] sm:$0xff]
      %v404 = vld [vmem:[#allocation2 + $0x61] sm:$0xff]
      %v405 = vld [vmem:[#allocation2 + $0x69] sm:$0xff]
      %v406 = vld [vmem:[#allocation2 + $0x79] sm:$0xff]
      %v407 = vld [vmem:[#allocation2 + $0x81] sm:$0xff]
      %v408 = vld [vmem:[#allocation2 + $0x91] sm:$0xff]
      %v409 = vld [vmem:[#allocation2 + $0x99] sm:$0xff]
      %v410 = vld [vmem:[#allocation2 + $0xa9] sm:$0xff]
      %v411 = vld [vmem:[#allocation2 + $0xb1] sm:$0xff]
      %v412 = vld [vmem:[#allocation2 + $0xc1] sm:$0xff]
      %v413 = vld [vmem:[#allocation2 + $0xc9] sm:$0xff]
      %v414 = vld [vmem:[#allocation2 + $0xd9] sm:$0xff]
      %v415 = vld [vmem:[#allocation2 + $0xe1] sm:$0xff]
      %v416 = vld [vmem:[#allocation2 + $0xf1] sm:$0xff]
      %v417 = vld [vmem:[#allocation2 + $0xf9] sm:$0xff]
      %v418 = vld [vmem:[#allocation2 + $0x109] sm:$0xff]
      %v419 = vld [vmem:[#allocation2 + $0x111] sm:$0xff]
      %v420 = vld [vmem:[#allocation2 + $0x121] sm:$0xff]
      %v421 = vld [vmem:[#allocation2 + $0x129] sm:$0xff]
      %v422 = vld [vmem:[#allocation2 + $0x139] sm:$0xff]
      %v423 = vld [vmem:[#allocation2 + $0x141] sm:$0xff]
      %v424 = vld [vmem:[#allocation2 + $0x151] sm:$0xff]
      %v425 = vld [vmem:[#allocation2 + $0x159] sm:$0xff]
      %v426 = vld [vmem:[#allocation2 + $0x169] sm:$0xff]
      %v427 = vld [vmem:[#allocation2 + $0x171] sm:$0xff]
      %v428 = vpack.c.bf16 %v397, %v396
      %v429 = vpack.c.bf16 %v399, %v398
      %v430 = vpack.c.bf16 %v401, %v400
      %v431 = vpack.c.bf16 %v403, %v402
      %v432 = vpack.c.bf16 %v405, %v404
      %v433 = vpack.c.bf16 %v407, %v406
      %v434 = vpack.c.bf16 %v409, %v408
      %v435 = vpack.c.bf16 %v411, %v410
      %v436 = vpack.c.bf16 %v413, %v412
      %v437 = vpack.c.bf16 %v415, %v414
      %v438 = vpack.c.bf16 %v417, %v416
      %v439 = vpack.c.bf16 %v419, %v418
      %v440 = vpack.c.bf16 %v421, %v420
      %v441 = vpack.c.bf16 %v423, %v422
      %v442 = vpack.c.bf16 %v425, %v424
      %v443 = vpack.c.bf16 %v427, %v426
      %s444 = scalar_lea.vmem %s1, 2
      %v445 = vld [vmem:[%s444] sm:$0x3]
      %v447 = vsel %vm226, %v428, 0
      %v450 = vsel %vm226, %v429, 0
      %v453 = vsel %vm226, %v430, 0
      %v456 = vsel %vm226, %v431, 0
      %v459 = vsel %vm226, %v432, 0
      %v462 = vsel %vm226, %v433, 0
      %v465 = vsel %vm226, %v434, 0
      %v468 = vsel %vm226, %v435, 0
      %v471 = vsel %vm226, %v436, 0
      %v474 = vsel %vm226, %v437, 0
      %v477 = vsel %vm226, %v438, 0
      %v480 = vsel %vm226, %v439, 0
      %v483 = vsel %vm226, %v440, 0
      %v486 = vsel %vm226, %v441, 0
      %v489 = vsel %vm226, %v442, 0
      %v492 = vsel %vm226, %v443, 0
      %vm494 = vcmask 1041408
      %v496 = vsel %vm494, %v445, 0
      %498 = vmatpush.bf16.msra.mxu0 0
      %499 = vmatpush.bf16.msra.mxu0 0
      %500 = vmatpush.bf16.msra.mxu0 0
      %501 = vmatpush.bf16.msra.mxu0 0
      %502 = vmatpush.bf16.msra.mxu0 0
      %503 = vmatpush.bf16.msra.mxu0 0
      %504 = vmatpush.bf16.msra.mxu0 0
      %505 = vmatpush.bf16.msra.mxu0 %v496
      %506 = vmatmul.bf16.gmra.mxu0 %v447
      %v507 = vpop.f32.mrf.mxu0
      %v508 = vadd.f32 0.0, %v507
      %v509 = vpop.f32.mrf.mxu0
      %v510 = vadd.f32 0.0, %v509
      %511 = vmatmul.bf16.gmra.mxu0 %v450
      %v512 = vpop.f32.mrf.mxu0
      %v513 = vadd.f32 0.0, %v512
      %v514 = vpop.f32.mrf.mxu0
      %v515 = vadd.f32 0.0, %v514
      %516 = vmatmul.bf16.gmra.mxu0 %v453
      %v517 = vpop.f32.mrf.mxu0
      %v518 = vadd.f32 0.0, %v517
      %v519 = vpop.f32.mrf.mxu0
      %v520 = vadd.f32 0.0, %v519
      %521 = vmatmul.bf16.gmra.mxu0 %v456
      %v522 = vpop.f32.mrf.mxu0
      %v523 = vadd.f32 0.0, %v522
      %v524 = vpop.f32.mrf.mxu0
      %v525 = vadd.f32 0.0, %v524
      %526 = vmatmul.bf16.gmra.mxu0 %v459
      %v527 = vpop.f32.mrf.mxu0
      %v528 = vadd.f32 0.0, %v527
      %v529 = vpop.f32.mrf.mxu0
      %v530 = vadd.f32 0.0, %v529
      %531 = vmatmul.bf16.gmra.mxu0 %v462
      %v532 = vpop.f32.mrf.mxu0
      %v533 = vadd.f32 0.0, %v532
      %v534 = vpop.f32.mrf.mxu0
      %v535 = vadd.f32 0.0, %v534
      %536 = vmatmul.bf16.gmra.mxu0 %v465
      %v537 = vpop.f32.mrf.mxu0
      %v538 = vadd.f32 0.0, %v537
      %v539 = vpop.f32.mrf.mxu0
      %v540 = vadd.f32 0.0, %v539
      %541 = vmatmul.bf16.gmra.mxu0 %v468
      %v542 = vpop.f32.mrf.mxu0
      %v543 = vadd.f32 0.0, %v542
      %v544 = vpop.f32.mrf.mxu0
      %v545 = vadd.f32 0.0, %v544
      %546 = vmatmul.bf16.gmra.mxu0 %v471
      %v547 = vpop.f32.mrf.mxu0
      %v548 = vadd.f32 0.0, %v547
      %v549 = vpop.f32.mrf.mxu0
      %v550 = vadd.f32 0.0, %v549
      %551 = vmatmul.bf16.gmra.mxu0 %v474
      %v552 = vpop.f32.mrf.mxu0
      %v553 = vadd.f32 0.0, %v552
      %v554 = vpop.f32.mrf.mxu0
      %v555 = vadd.f32 0.0, %v554
      %556 = vmatmul.bf16.gmra.mxu0 %v477
      %v557 = vpop.f32.mrf.mxu0
      %v558 = vadd.f32 0.0, %v557
      %v559 = vpop.f32.mrf.mxu0
      %v560 = vadd.f32 0.0, %v559
      %561 = vmatmul.bf16.gmra.mxu0 %v480
      %v562 = vpop.f32.mrf.mxu0
      %v563 = vadd.f32 0.0, %v562
      %v564 = vpop.f32.mrf.mxu0
      %v565 = vadd.f32 0.0, %v564
      %566 = vmatmul.bf16.gmra.mxu0 %v483
      %v567 = vpop.f32.mrf.mxu0
      %v568 = vadd.f32 0.0, %v567
      %v569 = vpop.f32.mrf.mxu0
      %v570 = vadd.f32 0.0, %v569
      %571 = vmatmul.bf16.gmra.mxu0 %v486
      %v572 = vpop.f32.mrf.mxu0
      %v573 = vadd.f32 0.0, %v572
      %v574 = vpop.f32.mrf.mxu0
      %v575 = vadd.f32 0.0, %v574
      %576 = vmatmul.bf16.gmra.mxu0 %v489
      %v577 = vpop.f32.mrf.mxu0
      %v578 = vadd.f32 0.0, %v577
      %v579 = vpop.f32.mrf.mxu0
      %v580 = vadd.f32 0.0, %v579
      %581 = vmatmul.bf16.gmra.mxu0 %v492
      %v582 = vpop.f32.mrf.mxu0
      %v583 = vadd.f32 0.0, %v582
      %v584 = vpop.f32.mrf.mxu0
      %v585 = vadd.f32 0.0, %v584
      %586 = vdwg.mxu0
      %v588 = vsel %vm226, %v379, 0
      %v591 = vsel %vm226, %v380, 0
      %v594 = vsel %vm226, %v381, 0
      %v597 = vsel %vm226, %v382, 0
      %v600 = vsel %vm226, %v383, 0
      %v603 = vsel %vm226, %v384, 0
      %v606 = vsel %vm226, %v385, 0
      %v609 = vsel %vm226, %v386, 0
      %v612 = vsel %vm226, %v387, 0
      %v615 = vsel %vm226, %v388, 0
      %v618 = vsel %vm226, %v389, 0
      %v621 = vsel %vm226, %v390, 0
      %v624 = vsel %vm226, %v391, 0
      %v627 = vsel %vm226, %v392, 0
      %v630 = vsel %vm226, %v393, 0
      %v633 = vsel %vm226, %v394, 0
      %v636 = vsel %vm494, %v395, 0
      %638 = vmatpush.bf16.msra.mxu0 0
      %639 = vmatpush.bf16.msra.mxu0 0
      %640 = vmatpush.bf16.msra.mxu0 0
      %641 = vmatpush.bf16.msra.mxu0 0
      %642 = vmatpush.bf16.msra.mxu0 0
      %643 = vmatpush.bf16.msra.mxu0 0
      %644 = vmatpush.bf16.msra.mxu0 0
      %645 = vmatpush.bf16.msra.mxu0 %v636
      %646 = vmatmul.bf16.gmra.mxu0 %v588
      %v647 = vpop.f32.mrf.mxu0
      %v648 = vadd.f32 %v508, %v647
      %v649 = vpop.f32.mrf.mxu0
      %v650 = vadd.f32 %v510, %v649
      %651 = vmatmul.bf16.gmra.mxu0 %v591
      %v652 = vpop.f32.mrf.mxu0
      %v653 = vadd.f32 %v513, %v652
      %v654 = vpop.f32.mrf.mxu0
      %v655 = vadd.f32 %v515, %v654
      %656 = vmatmul.bf16.gmra.mxu0 %v594
      %v657 = vpop.f32.mrf.mxu0
      %v658 = vadd.f32 %v518, %v657
      %v659 = vpop.f32.mrf.mxu0
      %v660 = vadd.f32 %v520, %v659
      %661 = vmatmul.bf16.gmra.mxu0 %v597
      %v662 = vpop.f32.mrf.mxu0
      %v663 = vadd.f32 %v523, %v662
      %v664 = vpop.f32.mrf.mxu0
      %v665 = vadd.f32 %v525, %v664
      %666 = vmatmul.bf16.gmra.mxu0 %v600
      %v667 = vpop.f32.mrf.mxu0
      %v668 = vadd.f32 %v528, %v667
      %v669 = vpop.f32.mrf.mxu0
      %v670 = vadd.f32 %v530, %v669
      %671 = vmatmul.bf16.gmra.mxu0 %v603
      %v672 = vpop.f32.mrf.mxu0
      %v673 = vadd.f32 %v533, %v672
      %v674 = vpop.f32.mrf.mxu0
      %v675 = vadd.f32 %v535, %v674
      %676 = vmatmul.bf16.gmra.mxu0 %v606
      %v677 = vpop.f32.mrf.mxu0
      %v678 = vadd.f32 %v538, %v677
      %v679 = vpop.f32.mrf.mxu0
      %v680 = vadd.f32 %v540, %v679
      %681 = vmatmul.bf16.gmra.mxu0 %v609
      %v682 = vpop.f32.mrf.mxu0
      %v683 = vadd.f32 %v543, %v682
      %v684 = vpop.f32.mrf.mxu0
      %v685 = vadd.f32 %v545, %v684
      %686 = vmatmul.bf16.gmra.mxu0 %v612
      %v687 = vpop.f32.mrf.mxu0
      %v688 = vadd.f32 %v548, %v687
      %v689 = vpop.f32.mrf.mxu0
      %v690 = vadd.f32 %v550, %v689
      %691 = vmatmul.bf16.gmra.mxu0 %v615
      %v692 = vpop.f32.mrf.mxu0
      %v693 = vadd.f32 %v553, %v692
      %v694 = vpop.f32.mrf.mxu0
      %v695 = vadd.f32 %v555, %v694
      %696 = vmatmul.bf16.gmra.mxu0 %v618
      %v697 = vpop.f32.mrf.mxu0
      %v698 = vadd.f32 %v558, %v697
      %v699 = vpop.f32.mrf.mxu0
      %v700 = vadd.f32 %v560, %v699
      %701 = vmatmul.bf16.gmra.mxu0 %v621
      %v702 = vpop.f32.mrf.mxu0
      %v703 = vadd.f32 %v563, %v702
      %v704 = vpop.f32.mrf.mxu0
      %v705 = vadd.f32 %v565, %v704
      %706 = vmatmul.bf16.gmra.mxu0 %v624
      %v707 = vpop.f32.mrf.mxu0
      %v708 = vadd.f32 %v568, %v707
      %v709 = vpop.f32.mrf.mxu0
      %v710 = vadd.f32 %v570, %v709
      %711 = vmatmul.bf16.gmra.mxu0 %v627
      %v712 = vpop.f32.mrf.mxu0
      %v713 = vadd.f32 %v573, %v712
      %v714 = vpop.f32.mrf.mxu0
      %v715 = vadd.f32 %v575, %v714
      %716 = vmatmul.bf16.gmra.mxu0 %v630
      %v717 = vpop.f32.mrf.mxu0
      %v718 = vadd.f32 %v578, %v717
      %v719 = vpop.f32.mrf.mxu0
      %v720 = vadd.f32 %v580, %v719
      %721 = vmatmul.bf16.gmra.mxu0 %v633
      %v722 = vpop.f32.mrf.mxu0
      %v723 = vadd.f32 %v583, %v722
      %v724 = vpop.f32.mrf.mxu0
      %v725 = vadd.f32 %v585, %v724
      %726 = vdwg.mxu0
      %v727 = vld [vmem:[#allocation2 + $0x2] sm:$0xff]
      %v728 = vld [vmem:[#allocation2 + $0xa] sm:$0xff]
      %v729 = vld [vmem:[#allocation2 + $0x1a] sm:$0xff]
      %v730 = vld [vmem:[#allocation2 + $0x22] sm:$0xff]
      %v731 = vld [vmem:[#allocation2 + $0x32] sm:$0xff]
      %v732 = vld [vmem:[#allocation2 + $0x3a] sm:$0xff]
      %v733 = vld [vmem:[#allocation2 + $0x4a] sm:$0xff]
      %v734 = vld [vmem:[#allocation2 + $0x52] sm:$0xff]
      %v735 = vld [vmem:[#allocation2 + $0x62] sm:$0xff]
      %v736 = vld [vmem:[#allocation2 + $0x6a] sm:$0xff]
      %v737 = vld [vmem:[#allocation2 + $0x7a] sm:$0xff]
      %v738 = vld [vmem:[#allocation2 + $0x82] sm:$0xff]
      %v739 = vld [vmem:[#allocation2 + $0x92] sm:$0xff]
      %v740 = vld [vmem:[#allocation2 + $0x9a] sm:$0xff]
      %v741 = vld [vmem:[#allocation2 + $0xaa] sm:$0xff]
      %v742 = vld [vmem:[#allocation2 + $0xb2] sm:$0xff]
      %v743 = vld [vmem:[#allocation2 + $0xc2] sm:$0xff]
      %v744 = vld [vmem:[#allocation2 + $0xca] sm:$0xff]
      %v745 = vld [vmem:[#allocation2 + $0xda] sm:$0xff]
      %v746 = vld [vmem:[#allocation2 + $0xe2] sm:$0xff]
      %v747 = vld [vmem:[#allocation2 + $0xf2] sm:$0xff]
      %v748 = vld [vmem:[#allocation2 + $0xfa] sm:$0xff]
      %v749 = vld [vmem:[#allocation2 + $0x10a] sm:$0xff]
      %v750 = vld [vmem:[#allocation2 + $0x112] sm:$0xff]
      %v751 = vld [vmem:[#allocation2 + $0x122] sm:$0xff]
      %v752 = vld [vmem:[#allocation2 + $0x12a] sm:$0xff]
      %v753 = vld [vmem:[#allocation2 + $0x13a] sm:$0xff]
      %v754 = vld [vmem:[#allocation2 + $0x142] sm:$0xff]
      %v755 = vld [vmem:[#allocation2 + $0x152] sm:$0xff]
      %v756 = vld [vmem:[#allocation2 + $0x15a] sm:$0xff]
      %v757 = vld [vmem:[#allocation2 + $0x16a] sm:$0xff]
      %v758 = vld [vmem:[#allocation2 + $0x172] sm:$0xff]
      %v759 = vpack.c.bf16 %v728, %v727
      %v760 = vpack.c.bf16 %v730, %v729
      %v761 = vpack.c.bf16 %v732, %v731
      %v762 = vpack.c.bf16 %v734, %v733
      %v763 = vpack.c.bf16 %v736, %v735
      %v764 = vpack.c.bf16 %v738, %v737
      %v765 = vpack.c.bf16 %v740, %v739
      %v766 = vpack.c.bf16 %v742, %v741
      %v767 = vpack.c.bf16 %v744, %v743
      %v768 = vpack.c.bf16 %v746, %v745
      %v769 = vpack.c.bf16 %v748, %v747
      %v770 = vpack.c.bf16 %v750, %v749
      %v771 = vpack.c.bf16 %v752, %v751
      %v772 = vpack.c.bf16 %v754, %v753
      %v773 = vpack.c.bf16 %v756, %v755
      %v774 = vpack.c.bf16 %v758, %v757
      %s775 = scalar_lea.vmem %s1, 4
      %v776 = vld [vmem:[%s775] sm:$0x3]
      %v778 = vsel %vm226, %v759, 0
      %v781 = vsel %vm226, %v760, 0
      %v784 = vsel %vm226, %v761, 0
      %v787 = vsel %vm226, %v762, 0
      %v790 = vsel %vm226, %v763, 0
      %v793 = vsel %vm226, %v764, 0
      %v796 = vsel %vm226, %v765, 0
      %v799 = vsel %vm226, %v766, 0
      %v802 = vsel %vm226, %v767, 0
      %v805 = vsel %vm226, %v768, 0
      %v808 = vsel %vm226, %v769, 0
      %v811 = vsel %vm226, %v770, 0
      %v814 = vsel %vm226, %v771, 0
      %v817 = vsel %vm226, %v772, 0
      %v820 = vsel %vm226, %v773, 0
      %v823 = vsel %vm226, %v774, 0
      %v826 = vsel %vm494, %v776, 0
      %828 = vmatpush.bf16.msra.mxu0 0
      %829 = vmatpush.bf16.msra.mxu0 0
      %830 = vmatpush.bf16.msra.mxu0 0
      %831 = vmatpush.bf16.msra.mxu0 0
      %832 = vmatpush.bf16.msra.mxu0 0
      %833 = vmatpush.bf16.msra.mxu0 0
      %834 = vmatpush.bf16.msra.mxu0 0
      %835 = vmatpush.bf16.msra.mxu0 %v826
      %836 = vmatmul.bf16.gmra.mxu0 %v778
      %v837 = vpop.f32.mrf.mxu0
      %v838 = vadd.f32 0.0, %v837
      %v839 = vpop.f32.mrf.mxu0
      %v840 = vadd.f32 0.0, %v839
      %841 = vmatmul.bf16.gmra.mxu0 %v781
      %v842 = vpop.f32.mrf.mxu0
      %v843 = vadd.f32 0.0, %v842
      %v844 = vpop.f32.mrf.mxu0
      %v845 = vadd.f32 0.0, %v844
      %846 = vmatmul.bf16.gmra.mxu0 %v784
      %v847 = vpop.f32.mrf.mxu0
      %v848 = vadd.f32 0.0, %v847
      %v849 = vpop.f32.mrf.mxu0
      %v850 = vadd.f32 0.0, %v849
      %851 = vmatmul.bf16.gmra.mxu0 %v787
      %v852 = vpop.f32.mrf.mxu0
      %v853 = vadd.f32 0.0, %v852
      %v854 = vpop.f32.mrf.mxu0
      %v855 = vadd.f32 0.0, %v854
      %856 = vmatmul.bf16.gmra.mxu0 %v790
      %v857 = vpop.f32.mrf.mxu0
      %v858 = vadd.f32 0.0, %v857
      %v859 = vpop.f32.mrf.mxu0
      %v860 = vadd.f32 0.0, %v859
      %861 = vmatmul.bf16.gmra.mxu0 %v793
      %v862 = vpop.f32.mrf.mxu0
      %v863 = vadd.f32 0.0, %v862
      %v864 = vpop.f32.mrf.mxu0
      %v865 = vadd.f32 0.0, %v864
      %866 = vmatmul.bf16.gmra.mxu0 %v796
      %v867 = vpop.f32.mrf.mxu0
      %v868 = vadd.f32 0.0, %v867
      %v869 = vpop.f32.mrf.mxu0
      %v870 = vadd.f32 0.0, %v869
      %871 = vmatmul.bf16.gmra.mxu0 %v799
      %v872 = vpop.f32.mrf.mxu0
      %v873 = vadd.f32 0.0, %v872
      %v874 = vpop.f32.mrf.mxu0
      %v875 = vadd.f32 0.0, %v874
      %876 = vmatmul.bf16.gmra.mxu0 %v802
      %v877 = vpop.f32.mrf.mxu0
      %v878 = vadd.f32 0.0, %v877
      %v879 = vpop.f32.mrf.mxu0
      %v880 = vadd.f32 0.0, %v879
      %881 = vmatmul.bf16.gmra.mxu0 %v805
      %v882 = vpop.f32.mrf.mxu0
      %v883 = vadd.f32 0.0, %v882
      %v884 = vpop.f32.mrf.mxu0
      %v885 = vadd.f32 0.0, %v884
      %886 = vmatmul.bf16.gmra.mxu0 %v808
      %v887 = vpop.f32.mrf.mxu0
      %v888 = vadd.f32 0.0, %v887
      %v889 = vpop.f32.mrf.mxu0
      %v890 = vadd.f32 0.0, %v889
      %891 = vmatmul.bf16.gmra.mxu0 %v811
      %v892 = vpop.f32.mrf.mxu0
      %v893 = vadd.f32 0.0, %v892
      %v894 = vpop.f32.mrf.mxu0
      %v895 = vadd.f32 0.0, %v894
      %896 = vmatmul.bf16.gmra.mxu0 %v814
      %v897 = vpop.f32.mrf.mxu0
      %v898 = vadd.f32 0.0, %v897
      %v899 = vpop.f32.mrf.mxu0
      %v900 = vadd.f32 0.0, %v899
      %901 = vmatmul.bf16.gmra.mxu0 %v817
      %v902 = vpop.f32.mrf.mxu0
      %v903 = vadd.f32 0.0, %v902
      %v904 = vpop.f32.mrf.mxu0
      %v905 = vadd.f32 0.0, %v904
      %906 = vmatmul.bf16.gmra.mxu0 %v820
      %v907 = vpop.f32.mrf.mxu0
      %v908 = vadd.f32 0.0, %v907
      %v909 = vpop.f32.mrf.mxu0
      %v910 = vadd.f32 0.0, %v909
      %911 = vmatmul.bf16.gmra.mxu0 %v823
      %v912 = vpop.f32.mrf.mxu0
      %v913 = vadd.f32 0.0, %v912
      %v914 = vpop.f32.mrf.mxu0
      %v915 = vadd.f32 0.0, %v914
      %916 = vdwg.mxu0
      %v917 = vadd.f32 %v648, %v838
      %v918 = vadd.f32 %v650, %v840
      %v919 = vadd.f32 %v653, %v843
      %v920 = vadd.f32 %v655, %v845
      %v921 = vadd.f32 %v658, %v848
      %v922 = vadd.f32 %v660, %v850
      %v923 = vadd.f32 %v663, %v853
      %v924 = vadd.f32 %v665, %v855
      %v925 = vadd.f32 %v668, %v858
      %v926 = vadd.f32 %v670, %v860
      %v927 = vadd.f32 %v673, %v863
      %v928 = vadd.f32 %v675, %v865
      %v929 = vadd.f32 %v678, %v868
      %v930 = vadd.f32 %v680, %v870
      %v931 = vadd.f32 %v683, %v873
      %v932 = vadd.f32 %v685, %v875
      %v933 = vadd.f32 %v688, %v878
      %v934 = vadd.f32 %v690, %v880
      %v935 = vadd.f32 %v693, %v883
      %v936 = vadd.f32 %v695, %v885
      %v937 = vadd.f32 %v698, %v888
      %v938 = vadd.f32 %v700, %v890
      %v939 = vadd.f32 %v703, %v893
      %v940 = vadd.f32 %v705, %v895
      %v941 = vadd.f32 %v708, %v898
      %v942 = vadd.f32 %v710, %v900
      %v943 = vadd.f32 %v713, %v903
      %v944 = vadd.f32 %v715, %v905
      %v945 = vadd.f32 %v718, %v908
      %v946 = vadd.f32 %v720, %v910
      %v947 = vadd.f32 %v723, %v913
      %v948 = vadd.f32 %v725, %v915
      %v949 = vld [vmem:[%s314] sm:$0xff]
      %v950 = vld [vmem:[%s314 + $0x8] sm:$0xff]
      %v951 = vld [vmem:[%s314 + $0x18] sm:$0xff]
      %v952 = vld [vmem:[%s314 + $0x20] sm:$0xff]
      %v953 = vld [vmem:[%s314 + $0x30] sm:$0xff]
      %v954 = vld [vmem:[%s314 + $0x38] sm:$0xff]
      %v955 = vld [vmem:[%s314 + $0x48] sm:$0xff]
      %v956 = vld [vmem:[%s314 + $0x50] sm:$0xff]
      %v957 = vld [vmem:[%s314 + $0x60] sm:$0xff]
      %v958 = vld [vmem:[%s314 + $0x68] sm:$0xff]
      %v959 = vld [vmem:[%s314 + $0x78] sm:$0xff]
      %v960 = vld [vmem:[%s314 + $0x80] sm:$0xff]
      %v961 = vld [vmem:[%s314 + $0x90] sm:$0xff]
      %v962 = vld [vmem:[%s314 + $0x98] sm:$0xff]
      %v963 = vld [vmem:[%s314 + $0xa8] sm:$0xff]
      %v964 = vld [vmem:[%s314 + $0xb0] sm:$0xff]
      %v965 = vld [vmem:[%s314 + $0xc0] sm:$0xff]
      %v966 = vld [vmem:[%s314 + $0xc8] sm:$0xff]
      %v967 = vld [vmem:[%s314 + $0xd8] sm:$0xff]
      %v968 = vld [vmem:[%s314 + $0xe0] sm:$0xff]
      %v969 = vld [vmem:[%s314 + $0xf0] sm:$0xff]
      %v970 = vld [vmem:[%s314 + $0xf8] sm:$0xff]
      %v971 = vld [vmem:[%s314 + $0x108] sm:$0xff]
      %v972 = vld [vmem:[%s314 + $0x110] sm:$0xff]
      %v973 = vld [vmem:[%s314 + $0x120] sm:$0xff]
      %v974 = vld [vmem:[%s314 + $0x128] sm:$0xff]
      %v975 = vld [vmem:[%s314 + $0x138] sm:$0xff]
      %v976 = vld [vmem:[%s314 + $0x140] sm:$0xff]
      %v977 = vld [vmem:[%s314 + $0x150] sm:$0xff]
      %v978 = vld [vmem:[%s314 + $0x158] sm:$0xff]
      %v979 = vld [vmem:[%s314 + $0x168] sm:$0xff]
      %v980 = vld [vmem:[%s314 + $0x170] sm:$0xff]
      %v981 = vpack.c.bf16 %v950, %v949
      %v982 = vpack.c.bf16 %v952, %v951
      %v983 = vpack.c.bf16 %v954, %v953
      %v984 = vpack.c.bf16 %v956, %v955
      %v985 = vpack.c.bf16 %v958, %v957
      %v986 = vpack.c.bf16 %v960, %v959
      %v987 = vpack.c.bf16 %v962, %v961
      %v988 = vpack.c.bf16 %v964, %v963
      %v989 = vpack.c.bf16 %v966, %v965
      %v990 = vpack.c.bf16 %v968, %v967
      %v991 = vpack.c.bf16 %v970, %v969
      %v992 = vpack.c.bf16 %v972, %v971
      %v993 = vpack.c.bf16 %v974, %v973
      %v994 = vpack.c.bf16 %v976, %v975
      %v995 = vpack.c.bf16 %v978, %v977
      %v996 = vpack.c.bf16 %v980, %v979
      %s997 = scalar_lea.vmem %s1, 6
      %v998 = vld [vmem:[%s997] sm:$0x3]
      %v1000 = vsel %vm226, %v981, 0
      %v1003 = vsel %vm226, %v982, 0
      %v1006 = vsel %vm226, %v983, 0
      %v1009 = vsel %vm226, %v984, 0
      %v1012 = vsel %vm226, %v985, 0
      %v1015 = vsel %vm226, %v986, 0
      %v1018 = vsel %vm226, %v987, 0
      %v1021 = vsel %vm226, %v988, 0
      %v1024 = vsel %vm226, %v989, 0
      %v1027 = vsel %vm226, %v990, 0
      %v1030 = vsel %vm226, %v991, 0
      %v1033 = vsel %vm226, %v992, 0
      %v1036 = vsel %vm226, %v993, 0
      %v1039 = vsel %vm226, %v994, 0
      %v1042 = vsel %vm226, %v995, 0
      %v1045 = vsel %vm226, %v996, 0
      %v1048 = vsel %vm494, %v998, 0
      %1050 = vmatpush.bf16.msra.mxu0 0
      %1051 = vmatpush.bf16.msra.mxu0 0
      %1052 = vmatpush.bf16.msra.mxu0 0
      %1053 = vmatpush.bf16.msra.mxu0 0
      %1054 = vmatpush.bf16.msra.mxu0 0
      %1055 = vmatpush.bf16.msra.mxu0 0
      %1056 = vmatpush.bf16.msra.mxu0 0
      %1057 = vmatpush.bf16.msra.mxu0 %v1048
      %1058 = vmatmul.bf16.gmra.mxu0 %v1000
      %v1059 = vpop.f32.mrf.mxu0
      %v1060 = vadd.f32 0.0, %v1059
      %v1061 = vpop.f32.mrf.mxu0
      %v1062 = vadd.f32 0.0, %v1061
      %1063 = vmatmul.bf16.gmra.mxu0 %v1003
      %v1064 = vpop.f32.mrf.mxu0
      %v1065 = vadd.f32 0.0, %v1064
      %v1066 = vpop.f32.mrf.mxu0
      %v1067 = vadd.f32 0.0, %v1066
      %1068 = vmatmul.bf16.gmra.mxu0 %v1006
      %v1069 = vpop.f32.mrf.mxu0
      %v1070 = vadd.f32 0.0, %v1069
      %v1071 = vpop.f32.mrf.mxu0
      %v1072 = vadd.f32 0.0, %v1071
      %1073 = vmatmul.bf16.gmra.mxu0 %v1009
      %v1074 = vpop.f32.mrf.mxu0
      %v1075 = vadd.f32 0.0, %v1074
      %v1076 = vpop.f32.mrf.mxu0
      %v1077 = vadd.f32 0.0, %v1076
      %1078 = vmatmul.bf16.gmra.mxu0 %v1012
      %v1079 = vpop.f32.mrf.mxu0
      %v1080 = vadd.f32 0.0, %v1079
      %v1081 = vpop.f32.mrf.mxu0
      %v1082 = vadd.f32 0.0, %v1081
      %1083 = vmatmul.bf16.gmra.mxu0 %v1015
      %v1084 = vpop.f32.mrf.mxu0
      %v1085 = vadd.f32 0.0, %v1084
      %v1086 = vpop.f32.mrf.mxu0
      %v1087 = vadd.f32 0.0, %v1086
      %1088 = vmatmul.bf16.gmra.mxu0 %v1018
      %v1089 = vpop.f32.mrf.mxu0
      %v1090 = vadd.f32 0.0, %v1089
      %v1091 = vpop.f32.mrf.mxu0
      %v1092 = vadd.f32 0.0, %v1091
      %1093 = vmatmul.bf16.gmra.mxu0 %v1021
      %v1094 = vpop.f32.mrf.mxu0
      %v1095 = vadd.f32 0.0, %v1094
      %v1096 = vpop.f32.mrf.mxu0
      %v1097 = vadd.f32 0.0, %v1096
      %1098 = vmatmul.bf16.gmra.mxu0 %v1024
      %v1099 = vpop.f32.mrf.mxu0
      %v1100 = vadd.f32 0.0, %v1099
      %v1101 = vpop.f32.mrf.mxu0
      %v1102 = vadd.f32 0.0, %v1101
      %1103 = vmatmul.bf16.gmra.mxu0 %v1027
      %v1104 = vpop.f32.mrf.mxu0
      %v1105 = vadd.f32 0.0, %v1104
      %v1106 = vpop.f32.mrf.mxu0
      %v1107 = vadd.f32 0.0, %v1106
      %1108 = vmatmul.bf16.gmra.mxu0 %v1030
      %v1109 = vpop.f32.mrf.mxu0
      %v1110 = vadd.f32 0.0, %v1109
      %v1111 = vpop.f32.mrf.mxu0
      %v1112 = vadd.f32 0.0, %v1111
      %1113 = vmatmul.bf16.gmra.mxu0 %v1033
      %v1114 = vpop.f32.mrf.mxu0
      %v1115 = vadd.f32 0.0, %v1114
      %v1116 = vpop.f32.mrf.mxu0
      %v1117 = vadd.f32 0.0, %v1116
      %1118 = vmatmul.bf16.gmra.mxu0 %v1036
      %v1119 = vpop.f32.mrf.mxu0
      %v1120 = vadd.f32 0.0, %v1119
      %v1121 = vpop.f32.mrf.mxu0
      %v1122 = vadd.f32 0.0, %v1121
      %1123 = vmatmul.bf16.gmra.mxu0 %v1039
      %v1124 = vpop.f32.mrf.mxu0
      %v1125 = vadd.f32 0.0, %v1124
      %v1126 = vpop.f32.mrf.mxu0
      %v1127 = vadd.f32 0.0, %v1126
      %1128 = vmatmul.bf16.gmra.mxu0 %v1042
      %v1129 = vpop.f32.mrf.mxu0
      %v1130 = vadd.f32 0.0, %v1129
      %v1131 = vpop.f32.mrf.mxu0
      %v1132 = vadd.f32 0.0, %v1131
      %1133 = vmatmul.bf16.gmra.mxu0 %v1045
      %v1134 = vpop.f32.mrf.mxu0
      %v1135 = vadd.f32 0.0, %v1134
      %v1136 = vpop.f32.mrf.mxu0
      %v1137 = vadd.f32 0.0, %v1136
      %1138 = vdwg.mxu0
      %v1139 = vadd.f32 %v917, %v1060
      %v1140 = vadd.f32 %v918, %v1062
      %v1141 = vadd.f32 %v919, %v1065
      %v1142 = vadd.f32 %v920, %v1067
      %v1143 = vadd.f32 %v921, %v1070
      %v1144 = vadd.f32 %v922, %v1072
      %v1145 = vadd.f32 %v923, %v1075
      %v1146 = vadd.f32 %v924, %v1077
      %v1147 = vadd.f32 %v925, %v1080
      %v1148 = vadd.f32 %v926, %v1082
      %v1149 = vadd.f32 %v927, %v1085
      %v1150 = vadd.f32 %v928, %v1087
      %v1151 = vadd.f32 %v929, %v1090
      %v1152 = vadd.f32 %v930, %v1092
      %v1153 = vadd.f32 %v931, %v1095
      %v1154 = vadd.f32 %v932, %v1097
      %v1155 = vadd.f32 %v933, %v1100
      %v1156 = vadd.f32 %v934, %v1102
      %v1157 = vadd.f32 %v935, %v1105
      %v1158 = vadd.f32 %v936, %v1107
      %v1159 = vadd.f32 %v937, %v1110
      %v1160 = vadd.f32 %v938, %v1112
      %v1161 = vadd.f32 %v939, %v1115
      %v1162 = vadd.f32 %v940, %v1117
      %v1163 = vadd.f32 %v941, %v1120
      %v1164 = vadd.f32 %v942, %v1122
      %v1165 = vadd.f32 %v943, %v1125
      %v1166 = vadd.f32 %v944, %v1127
      %v1167 = vadd.f32 %v945, %v1130
      %v1168 = vadd.f32 %v946, %v1132
      %v1169 = vadd.f32 %v947, %v1135
      %v1170 = vadd.f32 %v948, %v1137
      %v1171 = vld [vmem:[%s314 + $0x1] sm:$0xff]
      %v1172 = vld [vmem:[%s314 + $0x9] sm:$0xff]
      %v1173 = vld [vmem:[%s314 + $0x19] sm:$0xff]
      %v1174 = vld [vmem:[%s314 + $0x21] sm:$0xff]
      %v1175 = vld [vmem:[%s314 + $0x31] sm:$0xff]
      %v1176 = vld [vmem:[%s314 + $0x39] sm:$0xff]
      %v1177 = vld [vmem:[%s314 + $0x49] sm:$0xff]
      %v1178 = vld [vmem:[%s314 + $0x51] sm:$0xff]
      %v1179 = vld [vmem:[%s314 + $0x61] sm:$0xff]
      %v1180 = vld [vmem:[%s314 + $0x69] sm:$0xff]
      %v1181 = vld [vmem:[%s314 + $0x79] sm:$0xff]
      %v1182 = vld [vmem:[%s314 + $0x81] sm:$0xff]
      %v1183 = vld [vmem:[%s314 + $0x91] sm:$0xff]
      %v1184 = vld [vmem:[%s314 + $0x99] sm:$0xff]
      %v1185 = vld [vmem:[%s314 + $0xa9] sm:$0xff]
      %v1186 = vld [vmem:[%s314 + $0xb1] sm:$0xff]
      %v1187 = vld [vmem:[%s314 + $0xc1] sm:$0xff]
      %v1188 = vld [vmem:[%s314 + $0xc9] sm:$0xff]
      %v1189 = vld [vmem:[%s314 + $0xd9] sm:$0xff]
      %v1190 = vld [vmem:[%s314 + $0xe1] sm:$0xff]
      %v1191 = vld [vmem:[%s314 + $0xf1] sm:$0xff]
      %v1192 = vld [vmem:[%s314 + $0xf9] sm:$0xff]
      %v1193 = vld [vmem:[%s314 + $0x109] sm:$0xff]
      %v1194 = vld [vmem:[%s314 + $0x111] sm:$0xff]
      %v1195 = vld [vmem:[%s314 + $0x121] sm:$0xff]
      %v1196 = vld [vmem:[%s314 + $0x129] sm:$0xff]
      %v1197 = vld [vmem:[%s314 + $0x139] sm:$0xff]
      %v1198 = vld [vmem:[%s314 + $0x141] sm:$0xff]
      %v1199 = vld [vmem:[%s314 + $0x151] sm:$0xff]
      %v1200 = vld [vmem:[%s314 + $0x159] sm:$0xff]
      %v1201 = vld [vmem:[%s314 + $0x169] sm:$0xff]
      %v1202 = vld [vmem:[%s314 + $0x171] sm:$0xff]
      %v1203 = vpack.c.bf16 %v1172, %v1171
      %v1204 = vpack.c.bf16 %v1174, %v1173
      %v1205 = vpack.c.bf16 %v1176, %v1175
      %v1206 = vpack.c.bf16 %v1178, %v1177
      %v1207 = vpack.c.bf16 %v1180, %v1179
      %v1208 = vpack.c.bf16 %v1182, %v1181
      %v1209 = vpack.c.bf16 %v1184, %v1183
      %v1210 = vpack.c.bf16 %v1186, %v1185
      %v1211 = vpack.c.bf16 %v1188, %v1187
      %v1212 = vpack.c.bf16 %v1190, %v1189
      %v1213 = vpack.c.bf16 %v1192, %v1191
      %v1214 = vpack.c.bf16 %v1194, %v1193
      %v1215 = vpack.c.bf16 %v1196, %v1195
      %v1216 = vpack.c.bf16 %v1198, %v1197
      %v1217 = vpack.c.bf16 %v1200, %v1199
      %v1218 = vpack.c.bf16 %v1202, %v1201
      %s1219 = scalar_lea.vmem %s1, 8
      %v1220 = vld [vmem:[%s1219] sm:$0x3]
      %v1222 = vsel %vm226, %v1203, 0
      %v1225 = vsel %vm226, %v1204, 0
      %v1228 = vsel %vm226, %v1205, 0
      %v1231 = vsel %vm226, %v1206, 0
      %v1234 = vsel %vm226, %v1207, 0
      %v1237 = vsel %vm226, %v1208, 0
      %v1240 = vsel %vm226, %v1209, 0
      %v1243 = vsel %vm226, %v1210, 0
      %v1246 = vsel %vm226, %v1211, 0
      %v1249 = vsel %vm226, %v1212, 0
      %v1252 = vsel %vm226, %v1213, 0
      %v1255 = vsel %vm226, %v1214, 0
      %v1258 = vsel %vm226, %v1215, 0
      %v1261 = vsel %vm226, %v1216, 0
      %v1264 = vsel %vm226, %v1217, 0
      %v1267 = vsel %vm226, %v1218, 0
      %v1270 = vsel %vm494, %v1220, 0
      %1272 = vmatpush.bf16.msra.mxu0 0
      %1273 = vmatpush.bf16.msra.mxu0 0
      %1274 = vmatpush.bf16.msra.mxu0 0
      %1275 = vmatpush.bf16.msra.mxu0 0
      %1276 = vmatpush.bf16.msra.mxu0 0
      %1277 = vmatpush.bf16.msra.mxu0 0
      %1278 = vmatpush.bf16.msra.mxu0 0
      %1279 = vmatpush.bf16.msra.mxu0 %v1270
      %1280 = vmatmul.bf16.gmra.mxu0 %v1222
      %v1281 = vpop.f32.mrf.mxu0
      %v1282 = vadd.f32 0.0, %v1281
      %v1283 = vpop.f32.mrf.mxu0
      %v1284 = vadd.f32 0.0, %v1283
      %1285 = vmatmul.bf16.gmra.mxu0 %v1225
      %v1286 = vpop.f32.mrf.mxu0
      %v1287 = vadd.f32 0.0, %v1286
      %v1288 = vpop.f32.mrf.mxu0
      %v1289 = vadd.f32 0.0, %v1288
      %1290 = vmatmul.bf16.gmra.mxu0 %v1228
      %v1291 = vpop.f32.mrf.mxu0
      %v1292 = vadd.f32 0.0, %v1291
      %v1293 = vpop.f32.mrf.mxu0
      %v1294 = vadd.f32 0.0, %v1293
      %1295 = vmatmul.bf16.gmra.mxu0 %v1231
      %v1296 = vpop.f32.mrf.mxu0
      %v1297 = vadd.f32 0.0, %v1296
      %v1298 = vpop.f32.mrf.mxu0
      %v1299 = vadd.f32 0.0, %v1298
      %1300 = vmatmul.bf16.gmra.mxu0 %v1234
      %v1301 = vpop.f32.mrf.mxu0
      %v1302 = vadd.f32 0.0, %v1301
      %v1303 = vpop.f32.mrf.mxu0
      %v1304 = vadd.f32 0.0, %v1303
      %1305 = vmatmul.bf16.gmra.mxu0 %v1237
      %v1306 = vpop.f32.mrf.mxu0
      %v1307 = vadd.f32 0.0, %v1306
      %v1308 = vpop.f32.mrf.mxu0
      %v1309 = vadd.f32 0.0, %v1308
      %1310 = vmatmul.bf16.gmra.mxu0 %v1240
      %v1311 = vpop.f32.mrf.mxu0
      %v1312 = vadd.f32 0.0, %v1311
      %v1313 = vpop.f32.mrf.mxu0
      %v1314 = vadd.f32 0.0, %v1313
      %1315 = vmatmul.bf16.gmra.mxu0 %v1243
      %v1316 = vpop.f32.mrf.mxu0
      %v1317 = vadd.f32 0.0, %v1316
      %v1318 = vpop.f32.mrf.mxu0
      %v1319 = vadd.f32 0.0, %v1318
      %1320 = vmatmul.bf16.gmra.mxu0 %v1246
      %v1321 = vpop.f32.mrf.mxu0
      %v1322 = vadd.f32 0.0, %v1321
      %v1323 = vpop.f32.mrf.mxu0
      %v1324 = vadd.f32 0.0, %v1323
      %1325 = vmatmul.bf16.gmra.mxu0 %v1249
      %v1326 = vpop.f32.mrf.mxu0
      %v1327 = vadd.f32 0.0, %v1326
      %v1328 = vpop.f32.mrf.mxu0
      %v1329 = vadd.f32 0.0, %v1328
      %1330 = vmatmul.bf16.gmra.mxu0 %v1252
      %v1331 = vpop.f32.mrf.mxu0
      %v1332 = vadd.f32 0.0, %v1331
      %v1333 = vpop.f32.mrf.mxu0
      %v1334 = vadd.f32 0.0, %v1333
      %1335 = vmatmul.bf16.gmra.mxu0 %v1255
      %v1336 = vpop.f32.mrf.mxu0
      %v1337 = vadd.f32 0.0, %v1336
      %v1338 = vpop.f32.mrf.mxu0
      %v1339 = vadd.f32 0.0, %v1338
      %1340 = vmatmul.bf16.gmra.mxu0 %v1258
      %v1341 = vpop.f32.mrf.mxu0
      %v1342 = vadd.f32 0.0, %v1341
      %v1343 = vpop.f32.mrf.mxu0
      %v1344 = vadd.f32 0.0, %v1343
      %1345 = vmatmul.bf16.gmra.mxu0 %v1261
      %v1346 = vpop.f32.mrf.mxu0
      %v1347 = vadd.f32 0.0, %v1346
      %v1348 = vpop.f32.mrf.mxu0
      %v1349 = vadd.f32 0.0, %v1348
      %1350 = vmatmul.bf16.gmra.mxu0 %v1264
      %v1351 = vpop.f32.mrf.mxu0
      %v1352 = vadd.f32 0.0, %v1351
      %v1353 = vpop.f32.mrf.mxu0
      %v1354 = vadd.f32 0.0, %v1353
      %1355 = vmatmul.bf16.gmra.mxu0 %v1267
      %v1356 = vpop.f32.mrf.mxu0
      %v1357 = vadd.f32 0.0, %v1356
      %v1358 = vpop.f32.mrf.mxu0
      %v1359 = vadd.f32 0.0, %v1358
      %1360 = vdwg.mxu0
      %v1361 = vadd.f32 %v1139, %v1282
      %v1362 = vadd.f32 %v1140, %v1284
      %v1363 = vadd.f32 %v1141, %v1287
      %v1364 = vadd.f32 %v1142, %v1289
      %v1365 = vadd.f32 %v1143, %v1292
      %v1366 = vadd.f32 %v1144, %v1294
      %v1367 = vadd.f32 %v1145, %v1297
      %v1368 = vadd.f32 %v1146, %v1299
      %v1369 = vadd.f32 %v1147, %v1302
      %v1370 = vadd.f32 %v1148, %v1304
      %v1371 = vadd.f32 %v1149, %v1307
      %v1372 = vadd.f32 %v1150, %v1309
      %v1373 = vadd.f32 %v1151, %v1312
      %v1374 = vadd.f32 %v1152, %v1314
      %v1375 = vadd.f32 %v1153, %v1317
      %v1376 = vadd.f32 %v1154, %v1319
      %v1377 = vadd.f32 %v1155, %v1322
      %v1378 = vadd.f32 %v1156, %v1324
      %v1379 = vadd.f32 %v1157, %v1327
      %v1380 = vadd.f32 %v1158, %v1329
      %v1381 = vadd.f32 %v1159, %v1332
      %v1382 = vadd.f32 %v1160, %v1334
      %v1383 = vadd.f32 %v1161, %v1337
      %v1384 = vadd.f32 %v1162, %v1339
      %v1385 = vadd.f32 %v1163, %v1342
      %v1386 = vadd.f32 %v1164, %v1344
      %v1387 = vadd.f32 %v1165, %v1347
      %v1388 = vadd.f32 %v1166, %v1349
      %v1389 = vadd.f32 %v1167, %v1352
      %v1390 = vadd.f32 %v1168, %v1354
      %v1391 = vadd.f32 %v1169, %v1357
      %v1392 = vadd.f32 %v1170, %v1359
      %v1393 = vld [vmem:[%s314 + $0x2] sm:$0xff]
      %v1394 = vld [vmem:[%s314 + $0xa] sm:$0xff]
      %v1395 = vld [vmem:[%s314 + $0x1a] sm:$0xff]
      %v1396 = vld [vmem:[%s314 + $0x22] sm:$0xff]
      %v1397 = vld [vmem:[%s314 + $0x32] sm:$0xff]
      %v1398 = vld [vmem:[%s314 + $0x3a] sm:$0xff]
      %v1399 = vld [vmem:[%s314 + $0x4a] sm:$0xff]
      %v1400 = vld [vmem:[%s314 + $0x52] sm:$0xff]
      %v1401 = vld [vmem:[%s314 + $0x62] sm:$0xff]
      %v1402 = vld [vmem:[%s314 + $0x6a] sm:$0xff]
      %v1403 = vld [vmem:[%s314 + $0x7a] sm:$0xff]
      %v1404 = vld [vmem:[%s314 + $0x82] sm:$0xff]
      %v1405 = vld [vmem:[%s314 + $0x92] sm:$0xff]
      %v1406 = vld [vmem:[%s314 + $0x9a] sm:$0xff]
      %v1407 = vld [vmem:[%s314 + $0xaa] sm:$0xff]
      %v1408 = vld [vmem:[%s314 + $0xb2] sm:$0xff]
      %v1409 = vld [vmem:[%s314 + $0xc2] sm:$0xff]
      %v1410 = vld [vmem:[%s314 + $0xca] sm:$0xff]
      %v1411 = vld [vmem:[%s314 + $0xda] sm:$0xff]
      %v1412 = vld [vmem:[%s314 + $0xe2] sm:$0xff]
      %v1413 = vld [vmem:[%s314 + $0xf2] sm:$0xff]
      %v1414 = vld [vmem:[%s314 + $0xfa] sm:$0xff]
      %v1415 = vld [vmem:[%s314 + $0x10a] sm:$0xff]
      %v1416 = vld [vmem:[%s314 + $0x112] sm:$0xff]
      %v1417 = vld [vmem:[%s314 + $0x122] sm:$0xff]
      %v1418 = vld [vmem:[%s314 + $0x12a] sm:$0xff]
      %v1419 = vld [vmem:[%s314 + $0x13a] sm:$0xff]
      %v1420 = vld [vmem:[%s314 + $0x142] sm:$0xff]
      %v1421 = vld [vmem:[%s314 + $0x152] sm:$0xff]
      %v1422 = vld [vmem:[%s314 + $0x15a] sm:$0xff]
      %v1423 = vld [vmem:[%s314 + $0x16a] sm:$0xff]
      %v1424 = vld [vmem:[%s314 + $0x172] sm:$0xff]
      %v1425 = vpack.c.bf16 %v1394, %v1393
      %v1426 = vpack.c.bf16 %v1396, %v1395
      %v1427 = vpack.c.bf16 %v1398, %v1397
      %v1428 = vpack.c.bf16 %v1400, %v1399
      %v1429 = vpack.c.bf16 %v1402, %v1401
      %v1430 = vpack.c.bf16 %v1404, %v1403
      %v1431 = vpack.c.bf16 %v1406, %v1405
      %v1432 = vpack.c.bf16 %v1408, %v1407
      %v1433 = vpack.c.bf16 %v1410, %v1409
      %v1434 = vpack.c.bf16 %v1412, %v1411
      %v1435 = vpack.c.bf16 %v1414, %v1413
      %v1436 = vpack.c.bf16 %v1416, %v1415
      %v1437 = vpack.c.bf16 %v1418, %v1417
      %v1438 = vpack.c.bf16 %v1420, %v1419
      %v1439 = vpack.c.bf16 %v1422, %v1421
      %v1440 = vpack.c.bf16 %v1424, %v1423
      %s1441 = scalar_lea.vmem %s1, 10
      %v1442 = vld [vmem:[%s1441] sm:$0x3]
      %v1444 = vsel %vm226, %v1425, 0
      %v1447 = vsel %vm226, %v1426, 0
      %v1450 = vsel %vm226, %v1427, 0
      %v1453 = vsel %vm226, %v1428, 0
      %v1456 = vsel %vm226, %v1429, 0
      %v1459 = vsel %vm226, %v1430, 0
      %v1462 = vsel %vm226, %v1431, 0
      %v1465 = vsel %vm226, %v1432, 0
      %v1468 = vsel %vm226, %v1433, 0
      %v1471 = vsel %vm226, %v1434, 0
      %v1474 = vsel %vm226, %v1435, 0
      %v1477 = vsel %vm226, %v1436, 0
      %v1480 = vsel %vm226, %v1437, 0
      %v1483 = vsel %vm226, %v1438, 0
      %v1486 = vsel %vm226, %v1439, 0
      %v1489 = vsel %vm226, %v1440, 0
      %v1492 = vsel %vm494, %v1442, 0
      %1494 = vmatpush.bf16.msra.mxu0 0
      %1495 = vmatpush.bf16.msra.mxu0 0
      %1496 = vmatpush.bf16.msra.mxu0 0
      %1497 = vmatpush.bf16.msra.mxu0 0
      %1498 = vmatpush.bf16.msra.mxu0 0
      %1499 = vmatpush.bf16.msra.mxu0 0
      %1500 = vmatpush.bf16.msra.mxu0 0
      %1501 = vmatpush.bf16.msra.mxu0 %v1492
      %1502 = vmatmul.bf16.gmra.mxu0 %v1444
      %v1503 = vpop.f32.mrf.mxu0
      %v1504 = vadd.f32 0.0, %v1503
      %v1505 = vpop.f32.mrf.mxu0
      %v1506 = vadd.f32 0.0, %v1505
      %1507 = vmatmul.bf16.gmra.mxu0 %v1447
      %v1508 = vpop.f32.mrf.mxu0
      %v1509 = vadd.f32 0.0, %v1508
      %v1510 = vpop.f32.mrf.mxu0
      %v1511 = vadd.f32 0.0, %v1510
      %1512 = vmatmul.bf16.gmra.mxu0 %v1450
      %v1513 = vpop.f32.mrf.mxu0
      %v1514 = vadd.f32 0.0, %v1513
      %v1515 = vpop.f32.mrf.mxu0
      %v1516 = vadd.f32 0.0, %v1515
      %1517 = vmatmul.bf16.gmra.mxu0 %v1453
      %v1518 = vpop.f32.mrf.mxu0
      %v1519 = vadd.f32 0.0, %v1518
      %v1520 = vpop.f32.mrf.mxu0
      %v1521 = vadd.f32 0.0, %v1520
      %1522 = vmatmul.bf16.gmra.mxu0 %v1456
      %v1523 = vpop.f32.mrf.mxu0
      %v1524 = vadd.f32 0.0, %v1523
      %v1525 = vpop.f32.mrf.mxu0
      %v1526 = vadd.f32 0.0, %v1525
      %1527 = vmatmul.bf16.gmra.mxu0 %v1459
      %v1528 = vpop.f32.mrf.mxu0
      %v1529 = vadd.f32 0.0, %v1528
      %v1530 = vpop.f32.mrf.mxu0
      %v1531 = vadd.f32 0.0, %v1530
      %1532 = vmatmul.bf16.gmra.mxu0 %v1462
      %v1533 = vpop.f32.mrf.mxu0
      %v1534 = vadd.f32 0.0, %v1533
      %v1535 = vpop.f32.mrf.mxu0
      %v1536 = vadd.f32 0.0, %v1535
      %1537 = vmatmul.bf16.gmra.mxu0 %v1465
      %v1538 = vpop.f32.mrf.mxu0
      %v1539 = vadd.f32 0.0, %v1538
      %v1540 = vpop.f32.mrf.mxu0
      %v1541 = vadd.f32 0.0, %v1540
      %1542 = vmatmul.bf16.gmra.mxu0 %v1468
      %v1543 = vpop.f32.mrf.mxu0
      %v1544 = vadd.f32 0.0, %v1543
      %v1545 = vpop.f32.mrf.mxu0
      %v1546 = vadd.f32 0.0, %v1545
      %1547 = vmatmul.bf16.gmra.mxu0 %v1471
      %v1548 = vpop.f32.mrf.mxu0
      %v1549 = vadd.f32 0.0, %v1548
      %v1550 = vpop.f32.mrf.mxu0
      %v1551 = vadd.f32 0.0, %v1550
      %1552 = vmatmul.bf16.gmra.mxu0 %v1474
      %v1553 = vpop.f32.mrf.mxu0
      %v1554 = vadd.f32 0.0, %v1553
      %v1555 = vpop.f32.mrf.mxu0
      %v1556 = vadd.f32 0.0, %v1555
      %1557 = vmatmul.bf16.gmra.mxu0 %v1477
      %v1558 = vpop.f32.mrf.mxu0
      %v1559 = vadd.f32 0.0, %v1558
      %v1560 = vpop.f32.mrf.mxu0
      %v1561 = vadd.f32 0.0, %v1560
      %1562 = vmatmul.bf16.gmra.mxu0 %v1480
      %v1563 = vpop.f32.mrf.mxu0
      %v1564 = vadd.f32 0.0, %v1563
      %v1565 = vpop.f32.mrf.mxu0
      %v1566 = vadd.f32 0.0, %v1565
      %1567 = vmatmul.bf16.gmra.mxu0 %v1483
      %v1568 = vpop.f32.mrf.mxu0
      %v1569 = vadd.f32 0.0, %v1568
      %v1570 = vpop.f32.mrf.mxu0
      %v1571 = vadd.f32 0.0, %v1570
      %1572 = vmatmul.bf16.gmra.mxu0 %v1486
      %v1573 = vpop.f32.mrf.mxu0
      %v1574 = vadd.f32 0.0, %v1573
      %v1575 = vpop.f32.mrf.mxu0
      %v1576 = vadd.f32 0.0, %v1575
      %1577 = vmatmul.bf16.gmra.mxu0 %v1489
      %v1578 = vpop.f32.mrf.mxu0
      %v1579 = vadd.f32 0.0, %v1578
      %v1580 = vpop.f32.mrf.mxu0
      %v1581 = vadd.f32 0.0, %v1580
      %1582 = vdwg.mxu0
      %v1583 = vadd.f32 %v1361, %v1504
      %v1584 = vadd.f32 %v1362, %v1506
      %v1585 = vadd.f32 %v1363, %v1509
      %v1586 = vadd.f32 %v1364, %v1511
      %v1587 = vadd.f32 %v1365, %v1514
      %v1588 = vadd.f32 %v1366, %v1516
      %v1589 = vadd.f32 %v1367, %v1519
      %v1590 = vadd.f32 %v1368, %v1521
      %v1591 = vadd.f32 %v1369, %v1524
      %v1592 = vadd.f32 %v1370, %v1526
      %v1593 = vadd.f32 %v1371, %v1529
      %v1594 = vadd.f32 %v1372, %v1531
      %v1595 = vadd.f32 %v1373, %v1534
      %v1596 = vadd.f32 %v1374, %v1536
      %v1597 = vadd.f32 %v1375, %v1539
      %v1598 = vadd.f32 %v1376, %v1541
      %v1599 = vadd.f32 %v1377, %v1544
      %v1600 = vadd.f32 %v1378, %v1546
      %v1601 = vadd.f32 %v1379, %v1549
      %v1602 = vadd.f32 %v1380, %v1551
      %v1603 = vadd.f32 %v1381, %v1554
      %v1604 = vadd.f32 %v1382, %v1556
      %v1605 = vadd.f32 %v1383, %v1559
      %v1606 = vadd.f32 %v1384, %v1561
      %v1607 = vadd.f32 %v1385, %v1564
      %v1608 = vadd.f32 %v1386, %v1566
      %v1609 = vadd.f32 %v1387, %v1569
      %v1610 = vadd.f32 %v1388, %v1571
      %v1611 = vadd.f32 %v1389, %v1574
      %v1612 = vadd.f32 %v1390, %v1576
      %v1613 = vadd.f32 %v1391, %v1579
      %v1614 = vadd.f32 %v1392, %v1581
      %s1615 = scalar_lea.vmem [#allocation2], 48
      %v1616 = vld [vmem:[%s1615] sm:$0xff]
      %v1617 = vld [vmem:[%s1615 + $0x8] sm:$0xff]
      %v1618 = vld [vmem:[%s1615 + $0x18] sm:$0xff]
      %v1619 = vld [vmem:[%s1615 + $0x20] sm:$0xff]
      %v1620 = vld [vmem:[%s1615 + $0x30] sm:$0xff]
      %v1621 = vld [vmem:[%s1615 + $0x38] sm:$0xff]
      %v1622 = vld [vmem:[%s1615 + $0x48] sm:$0xff]
      %v1623 = vld [vmem:[%s1615 + $0x50] sm:$0xff]
      %v1624 = vld [vmem:[%s1615 + $0x60] sm:$0xff]
      %v1625 = vld [vmem:[%s1615 + $0x68] sm:$0xff]
      %v1626 = vld [vmem:[%s1615 + $0x78] sm:$0xff]
      %v1627 = vld [vmem:[%s1615 + $0x80] sm:$0xff]
      %v1628 = vld [vmem:[%s1615 + $0x90] sm:$0xff]
      %v1629 = vld [vmem:[%s1615 + $0x98] sm:$0xff]
      %v1630 = vld [vmem:[%s1615 + $0xa8] sm:$0xff]
      %v1631 = vld [vmem:[%s1615 + $0xb0] sm:$0xff]
      %v1632 = vld [vmem:[%s1615 + $0xc0] sm:$0xff]
      %v1633 = vld [vmem:[%s1615 + $0xc8] sm:$0xff]
      %v1634 = vld [vmem:[%s1615 + $0xd8] sm:$0xff]
      %v1635 = vld [vmem:[%s1615 + $0xe0] sm:$0xff]
      %v1636 = vld [vmem:[%s1615 + $0xf0] sm:$0xff]
      %v1637 = vld [vmem:[%s1615 + $0xf8] sm:$0xff]
      %v1638 = vld [vmem:[%s1615 + $0x108] sm:$0xff]
      %v1639 = vld [vmem:[%s1615 + $0x110] sm:$0xff]
      %v1640 = vld [vmem:[%s1615 + $0x120] sm:$0xff]
      %v1641 = vld [vmem:[%s1615 + $0x128] sm:$0xff]
      %v1642 = vld [vmem:[%s1615 + $0x138] sm:$0xff]
      %v1643 = vld [vmem:[%s1615 + $0x140] sm:$0xff]
      %v1644 = vld [vmem:[%s1615 + $0x150] sm:$0xff]
      %v1645 = vld [vmem:[%s1615 + $0x158] sm:$0xff]
      %v1646 = vld [vmem:[%s1615 + $0x168] sm:$0xff]
      %v1647 = vld [vmem:[%s1615 + $0x170] sm:$0xff]
      %v1648 = vpack.c.bf16 %v1617, %v1616
      %v1649 = vpack.c.bf16 %v1619, %v1618
      %v1650 = vpack.c.bf16 %v1621, %v1620
      %v1651 = vpack.c.bf16 %v1623, %v1622
      %v1652 = vpack.c.bf16 %v1625, %v1624
      %v1653 = vpack.c.bf16 %v1627, %v1626
      %v1654 = vpack.c.bf16 %v1629, %v1628
      %v1655 = vpack.c.bf16 %v1631, %v1630
      %v1656 = vpack.c.bf16 %v1633, %v1632
      %v1657 = vpack.c.bf16 %v1635, %v1634
      %v1658 = vpack.c.bf16 %v1637, %v1636
      %v1659 = vpack.c.bf16 %v1639, %v1638
      %v1660 = vpack.c.bf16 %v1641, %v1640
      %v1661 = vpack.c.bf16 %v1643, %v1642
      %v1662 = vpack.c.bf16 %v1645, %v1644
      %v1663 = vpack.c.bf16 %v1647, %v1646
      %s1664 = scalar_lea.vmem %s1, 12
      %v1665 = vld [vmem:[%s1664] sm:$0x3]
      %v1667 = vsel %vm226, %v1648, 0
      %v1670 = vsel %vm226, %v1649, 0
      %v1673 = vsel %vm226, %v1650, 0
      %v1676 = vsel %vm226, %v1651, 0
      %v1679 = vsel %vm226, %v1652, 0
      %v1682 = vsel %vm226, %v1653, 0
      %v1685 = vsel %vm226, %v1654, 0
      %v1688 = vsel %vm226, %v1655, 0
      %v1691 = vsel %vm226, %v1656, 0
      %v1694 = vsel %vm226, %v1657, 0
      %v1697 = vsel %vm226, %v1658, 0
      %v1700 = vsel %vm226, %v1659, 0
      %v1703 = vsel %vm226, %v1660, 0
      %v1706 = vsel %vm226, %v1661, 0
      %v1709 = vsel %vm226, %v1662, 0
      %v1712 = vsel %vm226, %v1663, 0
      %v1715 = vsel %vm494, %v1665, 0
      %1717 = vmatpush.bf16.msra.mxu0 0
      %1718 = vmatpush.bf16.msra.mxu0 0
      %1719 = vmatpush.bf16.msra.mxu0 0
      %1720 = vmatpush.bf16.msra.mxu0 0
      %1721 = vmatpush.bf16.msra.mxu0 0
      %1722 = vmatpush.bf16.msra.mxu0 0
      %1723 = vmatpush.bf16.msra.mxu0 0
      %1724 = vmatpush.bf16.msra.mxu0 %v1715
      %1725 = vmatmul.bf16.gmra.mxu0 %v1667
      %v1726 = vpop.f32.mrf.mxu0
      %v1727 = vadd.f32 0.0, %v1726
      %v1728 = vpop.f32.mrf.mxu0
      %v1729 = vadd.f32 0.0, %v1728
      %1730 = vmatmul.bf16.gmra.mxu0 %v1670
      %v1731 = vpop.f32.mrf.mxu0
      %v1732 = vadd.f32 0.0, %v1731
      %v1733 = vpop.f32.mrf.mxu0
      %v1734 = vadd.f32 0.0, %v1733
      %1735 = vmatmul.bf16.gmra.mxu0 %v1673
      %v1736 = vpop.f32.mrf.mxu0
      %v1737 = vadd.f32 0.0, %v1736
      %v1738 = vpop.f32.mrf.mxu0
      %v1739 = vadd.f32 0.0, %v1738
      %1740 = vmatmul.bf16.gmra.mxu0 %v1676
      %v1741 = vpop.f32.mrf.mxu0
      %v1742 = vadd.f32 0.0, %v1741
      %v1743 = vpop.f32.mrf.mxu0
      %v1744 = vadd.f32 0.0, %v1743
      %1745 = vmatmul.bf16.gmra.mxu0 %v1679
      %v1746 = vpop.f32.mrf.mxu0
      %v1747 = vadd.f32 0.0, %v1746
      %v1748 = vpop.f32.mrf.mxu0
      %v1749 = vadd.f32 0.0, %v1748
      %1750 = vmatmul.bf16.gmra.mxu0 %v1682
      %v1751 = vpop.f32.mrf.mxu0
      %v1752 = vadd.f32 0.0, %v1751
      %v1753 = vpop.f32.mrf.mxu0
      %v1754 = vadd.f32 0.0, %v1753
      %1755 = vmatmul.bf16.gmra.mxu0 %v1685
      %v1756 = vpop.f32.mrf.mxu0
      %v1757 = vadd.f32 0.0, %v1756
      %v1758 = vpop.f32.mrf.mxu0
      %v1759 = vadd.f32 0.0, %v1758
      %1760 = vmatmul.bf16.gmra.mxu0 %v1688
      %v1761 = vpop.f32.mrf.mxu0
      %v1762 = vadd.f32 0.0, %v1761
      %v1763 = vpop.f32.mrf.mxu0
      %v1764 = vadd.f32 0.0, %v1763
      %1765 = vmatmul.bf16.gmra.mxu0 %v1691
      %v1766 = vpop.f32.mrf.mxu0
      %v1767 = vadd.f32 0.0, %v1766
      %v1768 = vpop.f32.mrf.mxu0
      %v1769 = vadd.f32 0.0, %v1768
      %1770 = vmatmul.bf16.gmra.mxu0 %v1694
      %v1771 = vpop.f32.mrf.mxu0
      %v1772 = vadd.f32 0.0, %v1771
      %v1773 = vpop.f32.mrf.mxu0
      %v1774 = vadd.f32 0.0, %v1773
      %1775 = vmatmul.bf16.gmra.mxu0 %v1697
      %v1776 = vpop.f32.mrf.mxu0
      %v1777 = vadd.f32 0.0, %v1776
      %v1778 = vpop.f32.mrf.mxu0
      %v1779 = vadd.f32 0.0, %v1778
      %1780 = vmatmul.bf16.gmra.mxu0 %v1700
      %v1781 = vpop.f32.mrf.mxu0
      %v1782 = vadd.f32 0.0, %v1781
      %v1783 = vpop.f32.mrf.mxu0
      %v1784 = vadd.f32 0.0, %v1783
      %1785 = vmatmul.bf16.gmra.mxu0 %v1703
      %v1786 = vpop.f32.mrf.mxu0
      %v1787 = vadd.f32 0.0, %v1786
      %v1788 = vpop.f32.mrf.mxu0
      %v1789 = vadd.f32 0.0, %v1788
      %1790 = vmatmul.bf16.gmra.mxu0 %v1706
      %v1791 = vpop.f32.mrf.mxu0
      %v1792 = vadd.f32 0.0, %v1791
      %v1793 = vpop.f32.mrf.mxu0
      %v1794 = vadd.f32 0.0, %v1793
      %1795 = vmatmul.bf16.gmra.mxu0 %v1709
      %v1796 = vpop.f32.mrf.mxu0
      %v1797 = vadd.f32 0.0, %v1796
      %v1798 = vpop.f32.mrf.mxu0
      %v1799 = vadd.f32 0.0, %v1798
      %1800 = vmatmul.bf16.gmra.mxu0 %v1712
      %v1801 = vpop.f32.mrf.mxu0
      %v1802 = vadd.f32 0.0, %v1801
      %v1803 = vpop.f32.mrf.mxu0
      %v1804 = vadd.f32 0.0, %v1803
      %1805 = vdwg.mxu0
      %v1806 = vadd.f32 %v1583, %v1727
      %v1807 = vadd.f32 %v1584, %v1729
      %v1808 = vadd.f32 %v1585, %v1732
      %v1809 = vadd.f32 %v1586, %v1734
      %v1810 = vadd.f32 %v1587, %v1737
      %v1811 = vadd.f32 %v1588, %v1739
      %v1812 = vadd.f32 %v1589, %v1742
      %v1813 = vadd.f32 %v1590, %v1744
      %v1814 = vadd.f32 %v1591, %v1747
      %v1815 = vadd.f32 %v1592, %v1749
      %v1816 = vadd.f32 %v1593, %v1752
      %v1817 = vadd.f32 %v1594, %v1754
      %v1818 = vadd.f32 %v1595, %v1757
      %v1819 = vadd.f32 %v1596, %v1759
      %v1820 = vadd.f32 %v1597, %v1762
      %v1821 = vadd.f32 %v1598, %v1764
      %v1822 = vadd.f32 %v1599, %v1767
      %v1823 = vadd.f32 %v1600, %v1769
      %v1824 = vadd.f32 %v1601, %v1772
      %v1825 = vadd.f32 %v1602, %v1774
      %v1826 = vadd.f32 %v1603, %v1777
      %v1827 = vadd.f32 %v1604, %v1779
      %v1828 = vadd.f32 %v1605, %v1782
      %v1829 = vadd.f32 %v1606, %v1784
      %v1830 = vadd.f32 %v1607, %v1787
      %v1831 = vadd.f32 %v1608, %v1789
      %v1832 = vadd.f32 %v1609, %v1792
      %v1833 = vadd.f32 %v1610, %v1794
      %v1834 = vadd.f32 %v1611, %v1797
      %v1835 = vadd.f32 %v1612, %v1799
      %v1836 = vadd.f32 %v1613, %v1802
      %v1837 = vadd.f32 %v1614, %v1804
      %v1838 = vld [vmem:[%s1615 + $0x1] sm:$0xff]
      %v1839 = vld [vmem:[%s1615 + $0x9] sm:$0xff]
      %v1840 = vld [vmem:[%s1615 + $0x19] sm:$0xff]
      %v1841 = vld [vmem:[%s1615 + $0x21] sm:$0xff]
      %v1842 = vld [vmem:[%s1615 + $0x31] sm:$0xff]
      %v1843 = vld [vmem:[%s1615 + $0x39] sm:$0xff]
      %v1844 = vld [vmem:[%s1615 + $0x49] sm:$0xff]
      %v1845 = vld [vmem:[%s1615 + $0x51] sm:$0xff]
      %v1846 = vld [vmem:[%s1615 + $0x61] sm:$0xff]
      %v1847 = vld [vmem:[%s1615 + $0x69] sm:$0xff]
      %v1848 = vld [vmem:[%s1615 + $0x79] sm:$0xff]
      %v1849 = vld [vmem:[%s1615 + $0x81] sm:$0xff]
      %v1850 = vld [vmem:[%s1615 + $0x91] sm:$0xff]
      %v1851 = vld [vmem:[%s1615 + $0x99] sm:$0xff]
      %v1852 = vld [vmem:[%s1615 + $0xa9] sm:$0xff]
      %v1853 = vld [vmem:[%s1615 + $0xb1] sm:$0xff]
      %v1854 = vld [vmem:[%s1615 + $0xc1] sm:$0xff]
      %v1855 = vld [vmem:[%s1615 + $0xc9] sm:$0xff]
      %v1856 = vld [vmem:[%s1615 + $0xd9] sm:$0xff]
      %v1857 = vld [vmem:[%s1615 + $0xe1] sm:$0xff]
      %v1858 = vld [vmem:[%s1615 + $0xf1] sm:$0xff]
      %v1859 = vld [vmem:[%s1615 + $0xf9] sm:$0xff]
      %v1860 = vld [vmem:[%s1615 + $0x109] sm:$0xff]
      %v1861 = vld [vmem:[%s1615 + $0x111] sm:$0xff]
      %v1862 = vld [vmem:[%s1615 + $0x121] sm:$0xff]
      %v1863 = vld [vmem:[%s1615 + $0x129] sm:$0xff]
      %v1864 = vld [vmem:[%s1615 + $0x139] sm:$0xff]
      %v1865 = vld [vmem:[%s1615 + $0x141] sm:$0xff]
      %v1866 = vld [vmem:[%s1615 + $0x151] sm:$0xff]
      %v1867 = vld [vmem:[%s1615 + $0x159] sm:$0xff]
      %v1868 = vld [vmem:[%s1615 + $0x169] sm:$0xff]
      %v1869 = vld [vmem:[%s1615 + $0x171] sm:$0xff]
      %v1870 = vpack.c.bf16 %v1839, %v1838
      %v1871 = vpack.c.bf16 %v1841, %v1840
      %v1872 = vpack.c.bf16 %v1843, %v1842
      %v1873 = vpack.c.bf16 %v1845, %v1844
      %v1874 = vpack.c.bf16 %v1847, %v1846
      %v1875 = vpack.c.bf16 %v1849, %v1848
      %v1876 = vpack.c.bf16 %v1851, %v1850
      %v1877 = vpack.c.bf16 %v1853, %v1852
      %v1878 = vpack.c.bf16 %v1855, %v1854
      %v1879 = vpack.c.bf16 %v1857, %v1856
      %v1880 = vpack.c.bf16 %v1859, %v1858
      %v1881 = vpack.c.bf16 %v1861, %v1860
      %v1882 = vpack.c.bf16 %v1863, %v1862
      %v1883 = vpack.c.bf16 %v1865, %v1864
      %v1884 = vpack.c.bf16 %v1867, %v1866
      %v1885 = vpack.c.bf16 %v1869, %v1868
      %s1886 = scalar_lea.vmem %s1, 14
      %v1887 = vld [vmem:[%s1886] sm:$0x3]
      %v1889 = vsel %vm226, %v1870, 0
      %v1892 = vsel %vm226, %v1871, 0
      %v1895 = vsel %vm226, %v1872, 0
      %v1898 = vsel %vm226, %v1873, 0
      %v1901 = vsel %vm226, %v1874, 0
      %v1904 = vsel %vm226, %v1875, 0
      %v1907 = vsel %vm226, %v1876, 0
      %v1910 = vsel %vm226, %v1877, 0
      %v1913 = vsel %vm226, %v1878, 0
      %v1916 = vsel %vm226, %v1879, 0
      %v1919 = vsel %vm226, %v1880, 0
      %v1922 = vsel %vm226, %v1881, 0
      %v1925 = vsel %vm226, %v1882, 0
      %v1928 = vsel %vm226, %v1883, 0
      %v1931 = vsel %vm226, %v1884, 0
      %v1934 = vsel %vm226, %v1885, 0
      %v1937 = vsel %vm494, %v1887, 0
      %1939 = vmatpush.bf16.msra.mxu0 0
      %1940 = vmatpush.bf16.msra.mxu0 0
      %1941 = vmatpush.bf16.msra.mxu0 0
      %1942 = vmatpush.bf16.msra.mxu0 0
      %1943 = vmatpush.bf16.msra.mxu0 0
      %1944 = vmatpush.bf16.msra.mxu0 0
      %1945 = vmatpush.bf16.msra.mxu0 0
      %1946 = vmatpush.bf16.msra.mxu0 %v1937
      %1947 = vmatmul.bf16.gmra.mxu0 %v1889
      %v1948 = vpop.f32.mrf.mxu0
      %v1949 = vadd.f32 0.0, %v1948
      %v1950 = vpop.f32.mrf.mxu0
      %v1951 = vadd.f32 0.0, %v1950
      %1952 = vmatmul.bf16.gmra.mxu0 %v1892
      %v1953 = vpop.f32.mrf.mxu0
      %v1954 = vadd.f32 0.0, %v1953
      %v1955 = vpop.f32.mrf.mxu0
      %v1956 = vadd.f32 0.0, %v1955
      %1957 = vmatmul.bf16.gmra.mxu0 %v1895
      %v1958 = vpop.f32.mrf.mxu0
      %v1959 = vadd.f32 0.0, %v1958
      %v1960 = vpop.f32.mrf.mxu0
      %v1961 = vadd.f32 0.0, %v1960
      %1962 = vmatmul.bf16.gmra.mxu0 %v1898
      %v1963 = vpop.f32.mrf.mxu0
      %v1964 = vadd.f32 0.0, %v1963
      %v1965 = vpop.f32.mrf.mxu0
      %v1966 = vadd.f32 0.0, %v1965
      %1967 = vmatmul.bf16.gmra.mxu0 %v1901
      %v1968 = vpop.f32.mrf.mxu0
      %v1969 = vadd.f32 0.0, %v1968
      %v1970 = vpop.f32.mrf.mxu0
      %v1971 = vadd.f32 0.0, %v1970
      %1972 = vmatmul.bf16.gmra.mxu0 %v1904
      %v1973 = vpop.f32.mrf.mxu0
      %v1974 = vadd.f32 0.0, %v1973
      %v1975 = vpop.f32.mrf.mxu0
      %v1976 = vadd.f32 0.0, %v1975
      %1977 = vmatmul.bf16.gmra.mxu0 %v1907
      %v1978 = vpop.f32.mrf.mxu0
      %v1979 = vadd.f32 0.0, %v1978
      %v1980 = vpop.f32.mrf.mxu0
      %v1981 = vadd.f32 0.0, %v1980
      %1982 = vmatmul.bf16.gmra.mxu0 %v1910
      %v1983 = vpop.f32.mrf.mxu0
      %v1984 = vadd.f32 0.0, %v1983
      %v1985 = vpop.f32.mrf.mxu0
      %v1986 = vadd.f32 0.0, %v1985
      %1987 = vmatmul.bf16.gmra.mxu0 %v1913
      %v1988 = vpop.f32.mrf.mxu0
      %v1989 = vadd.f32 0.0, %v1988
      %v1990 = vpop.f32.mrf.mxu0
      %v1991 = vadd.f32 0.0, %v1990
      %1992 = vmatmul.bf16.gmra.mxu0 %v1916
      %v1993 = vpop.f32.mrf.mxu0
      %v1994 = vadd.f32 0.0, %v1993
      %v1995 = vpop.f32.mrf.mxu0
      %v1996 = vadd.f32 0.0, %v1995
      %1997 = vmatmul.bf16.gmra.mxu0 %v1919
      %v1998 = vpop.f32.mrf.mxu0
      %v1999 = vadd.f32 0.0, %v1998
      %v2000 = vpop.f32.mrf.mxu0
      %v2001 = vadd.f32 0.0, %v2000
      %2002 = vmatmul.bf16.gmra.mxu0 %v1922
      %v2003 = vpop.f32.mrf.mxu0
      %v2004 = vadd.f32 0.0, %v2003
      %v2005 = vpop.f32.mrf.mxu0
      %v2006 = vadd.f32 0.0, %v2005
      %2007 = vmatmul.bf16.gmra.mxu0 %v1925
      %v2008 = vpop.f32.mrf.mxu0
      %v2009 = vadd.f32 0.0, %v2008
      %v2010 = vpop.f32.mrf.mxu0
      %v2011 = vadd.f32 0.0, %v2010
      %2012 = vmatmul.bf16.gmra.mxu0 %v1928
      %v2013 = vpop.f32.mrf.mxu0
      %v2014 = vadd.f32 0.0, %v2013
      %v2015 = vpop.f32.mrf.mxu0
      %v2016 = vadd.f32 0.0, %v2015
      %2017 = vmatmul.bf16.gmra.mxu0 %v1931
      %v2018 = vpop.f32.mrf.mxu0
      %v2019 = vadd.f32 0.0, %v2018
      %v2020 = vpop.f32.mrf.mxu0
      %v2021 = vadd.f32 0.0, %v2020
      %2022 = vmatmul.bf16.gmra.mxu0 %v1934
      %v2023 = vpop.f32.mrf.mxu0
      %v2024 = vadd.f32 0.0, %v2023
      %v2025 = vpop.f32.mrf.mxu0
      %v2026 = vadd.f32 0.0, %v2025
      %2027 = vdwg.mxu0
      %v2028 = vadd.f32 %v1806, %v1949
      %v2029 = vadd.f32 %v1807, %v1951
      %v2030 = vadd.f32 %v1808, %v1954
      %v2031 = vadd.f32 %v1809, %v1956
      %v2032 = vadd.f32 %v1810, %v1959
      %v2033 = vadd.f32 %v1811, %v1961
      %v2034 = vadd.f32 %v1812, %v1964
      %v2035 = vadd.f32 %v1813, %v1966
      %v2036 = vadd.f32 %v1814, %v1969
      %v2037 = vadd.f32 %v1815, %v1971
      %v2038 = vadd.f32 %v1816, %v1974
      %v2039 = vadd.f32 %v1817, %v1976
      %v2040 = vadd.f32 %v1818, %v1979
      %v2041 = vadd.f32 %v1819, %v1981
      %v2042 = vadd.f32 %v1820, %v1984
      %v2043 = vadd.f32 %v1821, %v1986
      %v2044 = vadd.f32 %v1822, %v1989
      %v2045 = vadd.f32 %v1823, %v1991
      %v2046 = vadd.f32 %v1824, %v1994
      %v2047 = vadd.f32 %v1825, %v1996
      %v2048 = vadd.f32 %v1826, %v1999
      %v2049 = vadd.f32 %v1827, %v2001
      %v2050 = vadd.f32 %v1828, %v2004
      %v2051 = vadd.f32 %v1829, %v2006
      %v2052 = vadd.f32 %v1830, %v2009
      %v2053 = vadd.f32 %v1831, %v2011
      %v2054 = vadd.f32 %v1832, %v2014
      %v2055 = vadd.f32 %v1833, %v2016
      %v2056 = vadd.f32 %v1834, %v2019
      %v2057 = vadd.f32 %v1835, %v2021
      %v2058 = vadd.f32 %v1836, %v2024
      %v2059 = vadd.f32 %v1837, %v2026
      %v2060 = vld [vmem:[%s1615 + $0x2] sm:$0xff]
      %v2061 = vld [vmem:[%s1615 + $0xa] sm:$0xff]
      %v2062 = vld [vmem:[%s1615 + $0x1a] sm:$0xff]
      %v2063 = vld [vmem:[%s1615 + $0x22] sm:$0xff]
      %v2064 = vld [vmem:[%s1615 + $0x32] sm:$0xff]
      %v2065 = vld [vmem:[%s1615 + $0x3a] sm:$0xff]
      %v2066 = vld [vmem:[%s1615 + $0x4a] sm:$0xff]
      %v2067 = vld [vmem:[%s1615 + $0x52] sm:$0xff]
      %v2068 = vld [vmem:[%s1615 + $0x62] sm:$0xff]
      %v2069 = vld [vmem:[%s1615 + $0x6a] sm:$0xff]
      %v2070 = vld [vmem:[%s1615 + $0x7a] sm:$0xff]
      %v2071 = vld [vmem:[%s1615 + $0x82] sm:$0xff]
      %v2072 = vld [vmem:[%s1615 + $0x92] sm:$0xff]
      %v2073 = vld [vmem:[%s1615 + $0x9a] sm:$0xff]
      %v2074 = vld [vmem:[%s1615 + $0xaa] sm:$0xff]
      %v2075 = vld [vmem:[%s1615 + $0xb2] sm:$0xff]
      %v2076 = vld [vmem:[%s1615 + $0xc2] sm:$0xff]
      %v2077 = vld [vmem:[%s1615 + $0xca] sm:$0xff]
      %v2078 = vld [vmem:[%s1615 + $0xda] sm:$0xff]
      %v2079 = vld [vmem:[%s1615 + $0xe2] sm:$0xff]
      %v2080 = vld [vmem:[%s1615 + $0xf2] sm:$0xff]
      %v2081 = vld [vmem:[%s1615 + $0xfa] sm:$0xff]
      %v2082 = vld [vmem:[%s1615 + $0x10a] sm:$0xff]
      %v2083 = vld [vmem:[%s1615 + $0x112] sm:$0xff]
      %v2084 = vld [vmem:[%s1615 + $0x122] sm:$0xff]
      %v2085 = vld [vmem:[%s1615 + $0x12a] sm:$0xff]
      %v2086 = vld [vmem:[%s1615 + $0x13a] sm:$0xff]
      %v2087 = vld [vmem:[%s1615 + $0x142] sm:$0xff]
      %v2088 = vld [vmem:[%s1615 + $0x152] sm:$0xff]
      %v2089 = vld [vmem:[%s1615 + $0x15a] sm:$0xff]
      %v2090 = vld [vmem:[%s1615 + $0x16a] sm:$0xff]
      %v2091 = vld [vmem:[%s1615 + $0x172] sm:$0xff]
      %v2092 = vpack.c.bf16 %v2061, %v2060
      %v2093 = vpack.c.bf16 %v2063, %v2062
      %v2094 = vpack.c.bf16 %v2065, %v2064
      %v2095 = vpack.c.bf16 %v2067, %v2066
      %v2096 = vpack.c.bf16 %v2069, %v2068
      %v2097 = vpack.c.bf16 %v2071, %v2070
      %v2098 = vpack.c.bf16 %v2073, %v2072
      %v2099 = vpack.c.bf16 %v2075, %v2074
      %v2100 = vpack.c.bf16 %v2077, %v2076
      %v2101 = vpack.c.bf16 %v2079, %v2078
      %v2102 = vpack.c.bf16 %v2081, %v2080
      %v2103 = vpack.c.bf16 %v2083, %v2082
      %v2104 = vpack.c.bf16 %v2085, %v2084
      %v2105 = vpack.c.bf16 %v2087, %v2086
      %v2106 = vpack.c.bf16 %v2089, %v2088
      %v2107 = vpack.c.bf16 %v2091, %v2090
      %s2108 = scalar_lea.vmem %s1, 16
      %v2109 = vld [vmem:[%s2108] sm:$0x3]
      %v2111 = vsel %vm226, %v2092, 0
      %v2114 = vsel %vm226, %v2093, 0
      %v2117 = vsel %vm226, %v2094, 0
      %v2120 = vsel %vm226, %v2095, 0
      %v2123 = vsel %vm226, %v2096, 0
      %v2126 = vsel %vm226, %v2097, 0
      %v2129 = vsel %vm226, %v2098, 0
      %v2132 = vsel %vm226, %v2099, 0
      %v2135 = vsel %vm226, %v2100, 0
      %v2138 = vsel %vm226, %v2101, 0
      %v2141 = vsel %vm226, %v2102, 0
      %v2144 = vsel %vm226, %v2103, 0
      %v2147 = vsel %vm226, %v2104, 0
      %v2150 = vsel %vm226, %v2105, 0
      %v2153 = vsel %vm226, %v2106, 0
      %v2156 = vsel %vm226, %v2107, 0
      %v2159 = vsel %vm494, %v2109, 0
      %2161 = vmatpush.bf16.msra.mxu0 0
      %2162 = vmatpush.bf16.msra.mxu0 0
      %2163 = vmatpush.bf16.msra.mxu0 0
      %2164 = vmatpush.bf16.msra.mxu0 0
      %2165 = vmatpush.bf16.msra.mxu0 0
      %2166 = vmatpush.bf16.msra.mxu0 0
      %2167 = vmatpush.bf16.msra.mxu0 0
      %2168 = vmatpush.bf16.msra.mxu0 %v2159
      %2169 = vmatmul.bf16.gmra.mxu0 %v2111
      %v2170 = vpop.f32.mrf.mxu0
      %v2171 = vadd.f32 0.0, %v2170
      %v2172 = vpop.f32.mrf.mxu0
      %v2173 = vadd.f32 0.0, %v2172
      %2174 = vmatmul.bf16.gmra.mxu0 %v2114
      %v2175 = vpop.f32.mrf.mxu0
      %v2176 = vadd.f32 0.0, %v2175
      %v2177 = vpop.f32.mrf.mxu0
      %v2178 = vadd.f32 0.0, %v2177
      %2179 = vmatmul.bf16.gmra.mxu0 %v2117
      %v2180 = vpop.f32.mrf.mxu0
      %v2181 = vadd.f32 0.0, %v2180
      %v2182 = vpop.f32.mrf.mxu0
      %v2183 = vadd.f32 0.0, %v2182
      %2184 = vmatmul.bf16.gmra.mxu0 %v2120
      %v2185 = vpop.f32.mrf.mxu0
      %v2186 = vadd.f32 0.0, %v2185
      %v2187 = vpop.f32.mrf.mxu0
      %v2188 = vadd.f32 0.0, %v2187
      %2189 = vmatmul.bf16.gmra.mxu0 %v2123
      %v2190 = vpop.f32.mrf.mxu0
      %v2191 = vadd.f32 0.0, %v2190
      %v2192 = vpop.f32.mrf.mxu0
      %v2193 = vadd.f32 0.0, %v2192
      %2194 = vmatmul.bf16.gmra.mxu0 %v2126
      %v2195 = vpop.f32.mrf.mxu0
      %v2196 = vadd.f32 0.0, %v2195
      %v2197 = vpop.f32.mrf.mxu0
      %v2198 = vadd.f32 0.0, %v2197
      %2199 = vmatmul.bf16.gmra.mxu0 %v2129
      %v2200 = vpop.f32.mrf.mxu0
      %v2201 = vadd.f32 0.0, %v2200
      %v2202 = vpop.f32.mrf.mxu0
      %v2203 = vadd.f32 0.0, %v2202
      %2204 = vmatmul.bf16.gmra.mxu0 %v2132
      %v2205 = vpop.f32.mrf.mxu0
      %v2206 = vadd.f32 0.0, %v2205
      %v2207 = vpop.f32.mrf.mxu0
      %v2208 = vadd.f32 0.0, %v2207
      %2209 = vmatmul.bf16.gmra.mxu0 %v2135
      %v2210 = vpop.f32.mrf.mxu0
      %v2211 = vadd.f32 0.0, %v2210
      %v2212 = vpop.f32.mrf.mxu0
      %v2213 = vadd.f32 0.0, %v2212
      %2214 = vmatmul.bf16.gmra.mxu0 %v2138
      %v2215 = vpop.f32.mrf.mxu0
      %v2216 = vadd.f32 0.0, %v2215
      %v2217 = vpop.f32.mrf.mxu0
      %v2218 = vadd.f32 0.0, %v2217
      %2219 = vmatmul.bf16.gmra.mxu0 %v2141
      %v2220 = vpop.f32.mrf.mxu0
      %v2221 = vadd.f32 0.0, %v2220
      %v2222 = vpop.f32.mrf.mxu0
      %v2223 = vadd.f32 0.0, %v2222
      %2224 = vmatmul.bf16.gmra.mxu0 %v2144
      %v2225 = vpop.f32.mrf.mxu0
      %v2226 = vadd.f32 0.0, %v2225
      %v2227 = vpop.f32.mrf.mxu0
      %v2228 = vadd.f32 0.0, %v2227
      %2229 = vmatmul.bf16.gmra.mxu0 %v2147
      %v2230 = vpop.f32.mrf.mxu0
      %v2231 = vadd.f32 0.0, %v2230
      %v2232 = vpop.f32.mrf.mxu0
      %v2233 = vadd.f32 0.0, %v2232
      %2234 = vmatmul.bf16.gmra.mxu0 %v2150
      %v2235 = vpop.f32.mrf.mxu0
      %v2236 = vadd.f32 0.0, %v2235
      %v2237 = vpop.f32.mrf.mxu0
      %v2238 = vadd.f32 0.0, %v2237
      %2239 = vmatmul.bf16.gmra.mxu0 %v2153
      %v2240 = vpop.f32.mrf.mxu0
      %v2241 = vadd.f32 0.0, %v2240
      %v2242 = vpop.f32.mrf.mxu0
      %v2243 = vadd.f32 0.0, %v2242
      %2244 = vmatmul.bf16.gmra.mxu0 %v2156
      %v2245 = vpop.f32.mrf.mxu0
      %v2246 = vadd.f32 0.0, %v2245
      %v2247 = vpop.f32.mrf.mxu0
      %v2248 = vadd.f32 0.0, %v2247
      %2249 = vdwg.mxu0
      %v2250 = vadd.f32 %v2028, %v2171
      %v2251 = vadd.f32 %v2029, %v2173
      %v2252 = vadd.f32 %v2030, %v2176
      %v2253 = vadd.f32 %v2031, %v2178
      %v2254 = vadd.f32 %v2032, %v2181
      %v2255 = vadd.f32 %v2033, %v2183
      %v2256 = vadd.f32 %v2034, %v2186
      %v2257 = vadd.f32 %v2035, %v2188
      %v2258 = vadd.f32 %v2036, %v2191
      %v2259 = vadd.f32 %v2037, %v2193
      %v2260 = vadd.f32 %v2038, %v2196
      %v2261 = vadd.f32 %v2039, %v2198
      %v2262 = vadd.f32 %v2040, %v2201
      %v2263 = vadd.f32 %v2041, %v2203
      %v2264 = vadd.f32 %v2042, %v2206
      %v2265 = vadd.f32 %v2043, %v2208
      %v2266 = vadd.f32 %v2044, %v2211
      %v2267 = vadd.f32 %v2045, %v2213
      %v2268 = vadd.f32 %v2046, %v2216
      %v2269 = vadd.f32 %v2047, %v2218
      %v2270 = vadd.f32 %v2048, %v2221
      %v2271 = vadd.f32 %v2049, %v2223
      %v2272 = vadd.f32 %v2050, %v2226
      %v2273 = vadd.f32 %v2051, %v2228
      %v2274 = vadd.f32 %v2052, %v2231
      %v2275 = vadd.f32 %v2053, %v2233
      %v2276 = vadd.f32 %v2054, %v2236
      %v2277 = vadd.f32 %v2055, %v2238
      %v2278 = vadd.f32 %v2056, %v2241
      %v2279 = vadd.f32 %v2057, %v2243
      %v2280 = vadd.f32 %v2058, %v2246
      %v2281 = vadd.f32 %v2059, %v2248
      %v2282 = vld [vmem:[%s2] sm:$0x1]
      %v2284 = vperm.slane %v2282, 0
      %v2286 = vadd.f32 %v2250, %v2284
      %v2287 = vadd.f32 %v2251, %v2284
      %v2288 = vadd.f32 %v2252, %v2284
      %v2289 = vadd.f32 %v2253, %v2284
      %v2290 = vadd.f32 %v2254, %v2284
      %v2291 = vadd.f32 %v2255, %v2284
      %v2292 = vadd.f32 %v2256, %v2284
      %v2293 = vadd.f32 %v2257, %v2284
      %v2294 = vadd.f32 %v2258, %v2284
      %v2295 = vadd.f32 %v2259, %v2284
      %v2296 = vadd.f32 %v2260, %v2284
      %v2297 = vadd.f32 %v2261, %v2284
      %v2298 = vadd.f32 %v2262, %v2284
      %v2299 = vadd.f32 %v2263, %v2284
      %v2300 = vadd.f32 %v2264, %v2284
      %v2301 = vadd.f32 %v2265, %v2284
      %v2302 = vadd.f32 %v2266, %v2284
      %v2303 = vadd.f32 %v2267, %v2284
      %v2304 = vadd.f32 %v2268, %v2284
      %v2305 = vadd.f32 %v2269, %v2284
      %v2306 = vadd.f32 %v2270, %v2284
      %v2307 = vadd.f32 %v2271, %v2284
      %v2308 = vadd.f32 %v2272, %v2284
      %v2309 = vadd.f32 %v2273, %v2284
      %v2310 = vadd.f32 %v2274, %v2284
      %v2311 = vadd.f32 %v2275, %v2284
      %v2312 = vadd.f32 %v2276, %v2284
      %v2313 = vadd.f32 %v2277, %v2284
      %v2314 = vadd.f32 %v2278, %v2284
      %v2315 = vadd.f32 %v2279, %v2284
      %v2316 = vadd.f32 %v2280, %v2284
      %v2317 = vadd.f32 %v2281, %v2284
      %v2318 = vmax.f32 %v2286, 0.0
      %v2319 = vmax.f32 %v2287, 0.0
      %v2320 = vmax.f32 %v2288, 0.0
      %v2321 = vmax.f32 %v2289, 0.0
      %v2322 = vmax.f32 %v2290, 0.0
      %v2323 = vmax.f32 %v2291, 0.0
      %v2324 = vmax.f32 %v2292, 0.0
      %v2325 = vmax.f32 %v2293, 0.0
      %v2326 = vmax.f32 %v2294, 0.0
      %v2327 = vmax.f32 %v2295, 0.0
      %v2328 = vmax.f32 %v2296, 0.0
      %v2329 = vmax.f32 %v2297, 0.0
      %v2330 = vmax.f32 %v2298, 0.0
      %v2331 = vmax.f32 %v2299, 0.0
      %v2332 = vmax.f32 %v2300, 0.0
      %v2333 = vmax.f32 %v2301, 0.0
      %v2334 = vmax.f32 %v2302, 0.0
      %v2335 = vmax.f32 %v2303, 0.0
      %v2336 = vmax.f32 %v2304, 0.0
      %v2337 = vmax.f32 %v2305, 0.0
      %v2338 = vmax.f32 %v2306, 0.0
      %v2339 = vmax.f32 %v2307, 0.0
      %v2340 = vmax.f32 %v2308, 0.0
      %v2341 = vmax.f32 %v2309, 0.0
      %v2342 = vmax.f32 %v2310, 0.0
      %v2343 = vmax.f32 %v2311, 0.0
      %v2344 = vmax.f32 %v2312, 0.0
      %v2345 = vmax.f32 %v2313, 0.0
      %v2346 = vmax.f32 %v2314, 0.0
      %v2347 = vmax.f32 %v2315, 0.0
      %v2348 = vmax.f32 %v2316, 0.0
      %v2349 = vmax.f32 %v2317, 0.0
      %2350 = vst.msk [vmem:[#allocation3] sm:$0xff] %vm226, 0.0
      %2351 = vst.msk [vmem:[#allocation3 + $0x8] sm:$0xff] %vm226, 0.0
      %2352 = vst.msk [vmem:[#allocation3 + $0x10] sm:$0x3] %vm229, 0.0
      %2353 = vst.msk [vmem:[#allocation3 + $0x18] sm:$0xff] %vm226, 0.0
      %2354 = vst.msk [vmem:[#allocation3 + $0x20] sm:$0xff] %vm226, 0.0
      %2355 = vst.msk [vmem:[#allocation3 + $0x28] sm:$0x3] %vm229, 0.0
      %2356 = vst.msk [vmem:[#allocation3 + $0x30] sm:$0xff] %vm226, 0.0
      %2357 = vst.msk [vmem:[#allocation3 + $0x38] sm:$0xff] %vm226, 0.0
      %2358 = vst.msk [vmem:[#allocation3 + $0x40] sm:$0x3] %vm229, 0.0
      %2359 = vst.msk [vmem:[#allocation3 + $0x48] sm:$0xff] %vm226, 0.0
      %2360 = vst.msk [vmem:[#allocation3 + $0x50] sm:$0xff] %vm226, 0.0
      %2361 = vst.msk [vmem:[#allocation3 + $0x58] sm:$0x3] %vm229, 0.0
      %2362 = vst.msk [vmem:[#allocation3 + $0x60] sm:$0xff] %vm226, 0.0
      %2363 = vst.msk [vmem:[#allocation3 + $0x68] sm:$0xff] %vm226, 0.0
      %2364 = vst.msk [vmem:[#allocation3 + $0x70] sm:$0x3] %vm229, 0.0
      %2365 = vst.msk [vmem:[#allocation3 + $0x78] sm:$0xff] %vm226, 0.0
      %2366 = vst.msk [vmem:[#allocation3 + $0x80] sm:$0xff] %vm226, 0.0
      %2367 = vst.msk [vmem:[#allocation3 + $0x88] sm:$0x3] %vm229, 0.0
      %2368 = vst.msk [vmem:[#allocation3 + $0x90] sm:$0xff] %vm226, 0.0
      %2369 = vst.msk [vmem:[#allocation3 + $0x98] sm:$0xff] %vm226, 0.0
      %2370 = vst.msk [vmem:[#allocation3 + $0xa0] sm:$0x3] %vm229, 0.0
      %2371 = vst.msk [vmem:[#allocation3 + $0xa8] sm:$0xff] %vm226, 0.0
      %2372 = vst.msk [vmem:[#allocation3 + $0xb0] sm:$0xff] %vm226, 0.0
      %2373 = vst.msk [vmem:[#allocation3 + $0xb8] sm:$0x3] %vm229, 0.0
      %2374 = vst.msk [vmem:[#allocation3 + $0xc0] sm:$0xff] %vm226, 0.0
      %2375 = vst.msk [vmem:[#allocation3 + $0xc8] sm:$0xff] %vm226, 0.0
      %2376 = vst.msk [vmem:[#allocation3 + $0xd0] sm:$0x3] %vm229, 0.0
      %2377 = vst.msk [vmem:[#allocation3 + $0xd8] sm:$0xff] %vm226, 0.0
      %2378 = vst.msk [vmem:[#allocation3 + $0xe0] sm:$0xff] %vm226, 0.0
      %2379 = vst.msk [vmem:[#allocation3 + $0xe8] sm:$0x3] %vm229, 0.0
      %2380 = vst.msk [vmem:[#allocation3 + $0xf0] sm:$0xff] %vm226, 0.0
      %2381 = vst.msk [vmem:[#allocation3 + $0xf8] sm:$0xff] %vm226, 0.0
      %2382 = vst.msk [vmem:[#allocation3 + $0x100] sm:$0x3] %vm229, 0.0
      %2383 = vst.msk [vmem:[#allocation3 + $0x108] sm:$0xff] %vm226, 0.0
      %2384 = vst.msk [vmem:[#allocation3 + $0x110] sm:$0xff] %vm226, 0.0
      %2385 = vst.msk [vmem:[#allocation3 + $0x118] sm:$0x3] %vm229, 0.0
      %2386 = vst.msk [vmem:[#allocation3 + $0x120] sm:$0xff] %vm226, 0.0
      %2387 = vst.msk [vmem:[#allocation3 + $0x128] sm:$0xff] %vm226, 0.0
      %2388 = vst.msk [vmem:[#allocation3 + $0x130] sm:$0x3] %vm229, 0.0
      %2389 = vst.msk [vmem:[#allocation3 + $0x138] sm:$0xff] %vm226, 0.0
      %2390 = vst.msk [vmem:[#allocation3 + $0x140] sm:$0xff] %vm226, 0.0
      %2391 = vst.msk [vmem:[#allocation3 + $0x148] sm:$0x3] %vm229, 0.0
      %2392 = vst.msk [vmem:[#allocation3 + $0x150] sm:$0xff] %vm226, 0.0
      %2393 = vst.msk [vmem:[#allocation3 + $0x158] sm:$0xff] %vm226, 0.0
      %2394 = vst.msk [vmem:[#allocation3 + $0x160] sm:$0x3] %vm229, 0.0
      %2395 = vst.msk [vmem:[#allocation3 + $0x168] sm:$0xff] %vm226, 0.0
      %2396 = vst.msk [vmem:[#allocation3 + $0x170] sm:$0xff] %vm226, 0.0
      %2397 = vst.msk [vmem:[#allocation3 + $0x178] sm:$0x3] %vm229, 0.0
      %2398 = vst.msk [vmem:[#allocation3 + $0x180] sm:$0xff] %vm226, 0.0
      %2399 = vst.msk [vmem:[#allocation3 + $0x188] sm:$0xff] %vm226, 0.0
      %2400 = vst.msk [vmem:[#allocation3 + $0x190] sm:$0x3] %vm229, 0.0
      %2401 = vst.msk [vmem:[#allocation3 + $0x198] sm:$0xff] %vm226, 0.0
      %2402 = vst.msk [vmem:[#allocation3 + $0x1a0] sm:$0xff] %vm226, 0.0
      %2403 = vst.msk [vmem:[#allocation3 + $0x1a8] sm:$0x3] %vm229, 0.0
      %s2404 = scalar_lea.vmem [#allocation3], 24
      %2405 = vst.msk [vmem:[%s2404 + $0x1] sm:$0xff] %vm226, %v2318
      %2406 = vst.msk [vmem:[%s2404 + $0x9] sm:$0xff] %vm226, %v2319
      %2407 = vst.msk [vmem:[%s2404 + $0x19] sm:$0xff] %vm226, %v2320
      %2408 = vst.msk [vmem:[%s2404 + $0x21] sm:$0xff] %vm226, %v2321
      %2409 = vst.msk [vmem:[%s2404 + $0x31] sm:$0xff] %vm226, %v2322
      %2410 = vst.msk [vmem:[%s2404 + $0x39] sm:$0xff] %vm226, %v2323
      %2411 = vst.msk [vmem:[%s2404 + $0x49] sm:$0xff] %vm226, %v2324
      %2412 = vst.msk [vmem:[%s2404 + $0x51] sm:$0xff] %vm226, %v2325
      %2413 = vst.msk [vmem:[%s2404 + $0x61] sm:$0xff] %vm226, %v2326
      %2414 = vst.msk [vmem:[%s2404 + $0x69] sm:$0xff] %vm226, %v2327
      %2415 = vst.msk [vmem:[%s2404 + $0x79] sm:$0xff] %vm226, %v2328
      %2416 = vst.msk [vmem:[%s2404 + $0x81] sm:$0xff] %vm226, %v2329
      %2417 = vst.msk [vmem:[%s2404 + $0x91] sm:$0xff] %vm226, %v2330
      %2418 = vst.msk [vmem:[%s2404 + $0x99] sm:$0xff] %vm226, %v2331
      %2419 = vst.msk [vmem:[%s2404 + $0xa9] sm:$0xff] %vm226, %v2332
      %2420 = vst.msk [vmem:[%s2404 + $0xb1] sm:$0xff] %vm226, %v2333
      %2421 = vst.msk [vmem:[%s2404 + $0xc1] sm:$0xff] %vm226, %v2334
      %2422 = vst.msk [vmem:[%s2404 + $0xc9] sm:$0xff] %vm226, %v2335
      %2423 = vst.msk [vmem:[%s2404 + $0xd9] sm:$0xff] %vm226, %v2336
      %2424 = vst.msk [vmem:[%s2404 + $0xe1] sm:$0xff] %vm226, %v2337
      %2425 = vst.msk [vmem:[%s2404 + $0xf1] sm:$0xff] %vm226, %v2338
      %2426 = vst.msk [vmem:[%s2404 + $0xf9] sm:$0xff] %vm226, %v2339
      %2427 = vst.msk [vmem:[%s2404 + $0x109] sm:$0xff] %vm226, %v2340
      %2428 = vst.msk [vmem:[%s2404 + $0x111] sm:$0xff] %vm226, %v2341
      %2429 = vst.msk [vmem:[%s2404 + $0x121] sm:$0xff] %vm226, %v2342
      %2430 = vst.msk [vmem:[%s2404 + $0x129] sm:$0xff] %vm226, %v2343
      %2431 = vst.msk [vmem:[%s2404 + $0x139] sm:$0xff] %vm226, %v2344
      %2432 = vst.msk [vmem:[%s2404 + $0x141] sm:$0xff] %vm226, %v2345
      %2433 = vst.msk [vmem:[%s2404 + $0x151] sm:$0xff] %vm226, %v2346
      %2434 = vst.msk [vmem:[%s2404 + $0x159] sm:$0xff] %vm226, %v2347
      %2435 = vst.msk [vmem:[%s2404 + $0x169] sm:$0xff] %vm226, %v2348
      %2436 = vst.msk [vmem:[%s2404 + $0x171] sm:$0xff] %vm226, %v2349
      %v2437 = vld [vmem:[#allocation3] sm:$0xff]
      %v2438 = vld [vmem:[#allocation3 + $0x8] sm:$0xff]
      %v2439 = vld [vmem:[#allocation3 + $0x18] sm:$0xff]
      %v2440 = vld [vmem:[#allocation3 + $0x20] sm:$0xff]
      %v2441 = vld [vmem:[#allocation3 + $0x30] sm:$0xff]
      %v2442 = vld [vmem:[#allocation3 + $0x38] sm:$0xff]
      %v2443 = vld [vmem:[#allocation3 + $0x48] sm:$0xff]
      %v2444 = vld [vmem:[#allocation3 + $0x50] sm:$0xff]
      %v2445 = vld [vmem:[#allocation3 + $0x60] sm:$0xff]
      %v2446 = vld [vmem:[#allocation3 + $0x68] sm:$0xff]
      %v2447 = vld [vmem:[#allocation3 + $0x78] sm:$0xff]
      %v2448 = vld [vmem:[#allocation3 + $0x80] sm:$0xff]
      %v2449 = vld [vmem:[#allocation3 + $0x90] sm:$0xff]
      %v2450 = vld [vmem:[#allocation3 + $0x98] sm:$0xff]
      %v2451 = vld [vmem:[#allocation3 + $0xa8] sm:$0xff]
      %v2452 = vld [vmem:[#allocation3 + $0xb0] sm:$0xff]
      %v2453 = vld [vmem:[#allocation3 + $0xc0] sm:$0xff]
      %v2454 = vld [vmem:[#allocation3 + $0xc8] sm:$0xff]
      %v2455 = vld [vmem:[#allocation3 + $0xd8] sm:$0xff]
      %v2456 = vld [vmem:[#allocation3 + $0xe0] sm:$0xff]
      %v2457 = vld [vmem:[#allocation3 + $0xf0] sm:$0xff]
      %v2458 = vld [vmem:[#allocation3 + $0xf8] sm:$0xff]
      %v2459 = vld [vmem:[#allocation3 + $0x108] sm:$0xff]
      %v2460 = vld [vmem:[#allocation3 + $0x110] sm:$0xff]
      %v2461 = vld [vmem:[#allocation3 + $0x120] sm:$0xff]
      %v2462 = vld [vmem:[#allocation3 + $0x128] sm:$0xff]
      %v2463 = vld [vmem:[#allocation3 + $0x138] sm:$0xff]
      %v2464 = vld [vmem:[#allocation3 + $0x140] sm:$0xff]
      %v2465 = vld [vmem:[#allocation3 + $0x150] sm:$0xff]
      %v2466 = vld [vmem:[#allocation3 + $0x158] sm:$0xff]
      %v2467 = vld [vmem:[#allocation3 + $0x168] sm:$0xff]
      %v2468 = vld [vmem:[#allocation3 + $0x170] sm:$0xff]
      %v2469 = vpack.c.bf16 %v2438, %v2437
      %v2470 = vpack.c.bf16 %v2440, %v2439
      %v2471 = vpack.c.bf16 %v2442, %v2441
      %v2472 = vpack.c.bf16 %v2444, %v2443
      %v2473 = vpack.c.bf16 %v2446, %v2445
      %v2474 = vpack.c.bf16 %v2448, %v2447
      %v2475 = vpack.c.bf16 %v2450, %v2449
      %v2476 = vpack.c.bf16 %v2452, %v2451
      %v2477 = vpack.c.bf16 %v2454, %v2453
      %v2478 = vpack.c.bf16 %v2456, %v2455
      %v2479 = vpack.c.bf16 %v2458, %v2457
      %v2480 = vpack.c.bf16 %v2460, %v2459
      %v2481 = vpack.c.bf16 %v2462, %v2461
      %v2482 = vpack.c.bf16 %v2464, %v2463
      %v2483 = vpack.c.bf16 %v2466, %v2465
      %v2484 = vpack.c.bf16 %v2468, %v2467
      %v2485 = vld [vmem:[%s3] sm:$0x3]
      %v2486 = vld [vmem:[#allocation3 + $0x1] sm:$0xff]
      %v2487 = vld [vmem:[#allocation3 + $0x9] sm:$0xff]
      %v2488 = vld [vmem:[#allocation3 + $0x19] sm:$0xff]
      %v2489 = vld [vmem:[#allocation3 + $0x21] sm:$0xff]
      %v2490 = vld [vmem:[#allocation3 + $0x31] sm:$0xff]
      %v2491 = vld [vmem:[#allocation3 + $0x39] sm:$0xff]
      %v2492 = vld [vmem:[#allocation3 + $0x49] sm:$0xff]
      %v2493 = vld [vmem:[#allocation3 + $0x51] sm:$0xff]
      %v2494 = vld [vmem:[#allocation3 + $0x61] sm:$0xff]
      %v2495 = vld [vmem:[#allocation3 + $0x69] sm:$0xff]
      %v2496 = vld [vmem:[#allocation3 + $0x79] sm:$0xff]
      %v2497 = vld [vmem:[#allocation3 + $0x81] sm:$0xff]
      %v2498 = vld [vmem:[#allocation3 + $0x91] sm:$0xff]
      %v2499 = vld [vmem:[#allocation3 + $0x99] sm:$0xff]
      %v2500 = vld [vmem:[#allocation3 + $0xa9] sm:$0xff]
      %v2501 = vld [vmem:[#allocation3 + $0xb1] sm:$0xff]
      %v2502 = vld [vmem:[#allocation3 + $0xc1] sm:$0xff]
      %v2503 = vld [vmem:[#allocation3 + $0xc9] sm:$0xff]
      %v2504 = vld [vmem:[#allocation3 + $0xd9] sm:$0xff]
      %v2505 = vld [vmem:[#allocation3 + $0xe1] sm:$0xff]
      %v2506 = vld [vmem:[#allocation3 + $0xf1] sm:$0xff]
      %v2507 = vld [vmem:[#allocation3 + $0xf9] sm:$0xff]
      %v2508 = vld [vmem:[#allocation3 + $0x109] sm:$0xff]
      %v2509 = vld [vmem:[#allocation3 + $0x111] sm:$0xff]
      %v2510 = vld [vmem:[#allocation3 + $0x121] sm:$0xff]
      %v2511 = vld [vmem:[#allocation3 + $0x129] sm:$0xff]
      %v2512 = vld [vmem:[#allocation3 + $0x139] sm:$0xff]
      %v2513 = vld [vmem:[#allocation3 + $0x141] sm:$0xff]
      %v2514 = vld [vmem:[#allocation3 + $0x151] sm:$0xff]
      %v2515 = vld [vmem:[#allocation3 + $0x159] sm:$0xff]
      %v2516 = vld [vmem:[#allocation3 + $0x169] sm:$0xff]
      %v2517 = vld [vmem:[#allocation3 + $0x171] sm:$0xff]
      %v2518 = vpack.c.bf16 %v2487, %v2486
      %v2519 = vpack.c.bf16 %v2489, %v2488
      %v2520 = vpack.c.bf16 %v2491, %v2490
      %v2521 = vpack.c.bf16 %v2493, %v2492
      %v2522 = vpack.c.bf16 %v2495, %v2494
      %v2523 = vpack.c.bf16 %v2497, %v2496
      %v2524 = vpack.c.bf16 %v2499, %v2498
      %v2525 = vpack.c.bf16 %v2501, %v2500
      %v2526 = vpack.c.bf16 %v2503, %v2502
      %v2527 = vpack.c.bf16 %v2505, %v2504
      %v2528 = vpack.c.bf16 %v2507, %v2506
      %v2529 = vpack.c.bf16 %v2509, %v2508
      %v2530 = vpack.c.bf16 %v2511, %v2510
      %v2531 = vpack.c.bf16 %v2513, %v2512
      %v2532 = vpack.c.bf16 %v2515, %v2514
      %v2533 = vpack.c.bf16 %v2517, %v2516
      %s2534 = scalar_lea.vmem %s3, 2
      %v2535 = vld [vmem:[%s2534] sm:$0x3]
      %v2537 = vsel %vm226, %v2518, 0
      %v2540 = vsel %vm226, %v2519, 0
      %v2543 = vsel %vm226, %v2520, 0
      %v2546 = vsel %vm226, %v2521, 0
      %v2549 = vsel %vm226, %v2522, 0
      %v2552 = vsel %vm226, %v2523, 0
      %v2555 = vsel %vm226, %v2524, 0
      %v2558 = vsel %vm226, %v2525, 0
      %v2561 = vsel %vm226, %v2526, 0
      %v2564 = vsel %vm226, %v2527, 0
      %v2567 = vsel %vm226, %v2528, 0
      %v2570 = vsel %vm226, %v2529, 0
      %v2573 = vsel %vm226, %v2530, 0
      %v2576 = vsel %vm226, %v2531, 0
      %v2579 = vsel %vm226, %v2532, 0
      %v2582 = vsel %vm226, %v2533, 0
      %v2585 = vsel %vm494, %v2535, 0
      %2587 = vmatpush.bf16.msra.mxu0 0
      %2588 = vmatpush.bf16.msra.mxu0 0
      %2589 = vmatpush.bf16.msra.mxu0 0
      %2590 = vmatpush.bf16.msra.mxu0 0
      %2591 = vmatpush.bf16.msra.mxu0 0
      %2592 = vmatpush.bf16.msra.mxu0 0
      %2593 = vmatpush.bf16.msra.mxu0 0
      %2594 = vmatpush.bf16.msra.mxu0 %v2585
      %2595 = vmatmul.bf16.gmra.mxu0 %v2537
      %v2596 = vpop.f32.mrf.mxu0
      %v2597 = vadd.f32 0.0, %v2596
      %v2598 = vpop.f32.mrf.mxu0
      %v2599 = vadd.f32 0.0, %v2598
      %2600 = vmatmul.bf16.gmra.mxu0 %v2540
      %v2601 = vpop.f32.mrf.mxu0
      %v2602 = vadd.f32 0.0, %v2601
      %v2603 = vpop.f32.mrf.mxu0
      %v2604 = vadd.f32 0.0, %v2603
      %2605 = vmatmul.bf16.gmra.mxu0 %v2543
      %v2606 = vpop.f32.mrf.mxu0
      %v2607 = vadd.f32 0.0, %v2606
      %v2608 = vpop.f32.mrf.mxu0
      %v2609 = vadd.f32 0.0, %v2608
      %2610 = vmatmul.bf16.gmra.mxu0 %v2546
      %v2611 = vpop.f32.mrf.mxu0
      %v2612 = vadd.f32 0.0, %v2611
      %v2613 = vpop.f32.mrf.mxu0
      %v2614 = vadd.f32 0.0, %v2613
      %2615 = vmatmul.bf16.gmra.mxu0 %v2549
      %v2616 = vpop.f32.mrf.mxu0
      %v2617 = vadd.f32 0.0, %v2616
      %v2618 = vpop.f32.mrf.mxu0
      %v2619 = vadd.f32 0.0, %v2618
      %2620 = vmatmul.bf16.gmra.mxu0 %v2552
      %v2621 = vpop.f32.mrf.mxu0
      %v2622 = vadd.f32 0.0, %v2621
      %v2623 = vpop.f32.mrf.mxu0
      %v2624 = vadd.f32 0.0, %v2623
      %2625 = vmatmul.bf16.gmra.mxu0 %v2555
      %v2626 = vpop.f32.mrf.mxu0
      %v2627 = vadd.f32 0.0, %v2626
      %v2628 = vpop.f32.mrf.mxu0
      %v2629 = vadd.f32 0.0, %v2628
      %2630 = vmatmul.bf16.gmra.mxu0 %v2558
      %v2631 = vpop.f32.mrf.mxu0
      %v2632 = vadd.f32 0.0, %v2631
      %v2633 = vpop.f32.mrf.mxu0
      %v2634 = vadd.f32 0.0, %v2633
      %2635 = vmatmul.bf16.gmra.mxu0 %v2561
      %v2636 = vpop.f32.mrf.mxu0
      %v2637 = vadd.f32 0.0, %v2636
      %v2638 = vpop.f32.mrf.mxu0
      %v2639 = vadd.f32 0.0, %v2638
      %2640 = vmatmul.bf16.gmra.mxu0 %v2564
      %v2641 = vpop.f32.mrf.mxu0
      %v2642 = vadd.f32 0.0, %v2641
      %v2643 = vpop.f32.mrf.mxu0
      %v2644 = vadd.f32 0.0, %v2643
      %2645 = vmatmul.bf16.gmra.mxu0 %v2567
      %v2646 = vpop.f32.mrf.mxu0
      %v2647 = vadd.f32 0.0, %v2646
      %v2648 = vpop.f32.mrf.mxu0
      %v2649 = vadd.f32 0.0, %v2648
      %2650 = vmatmul.bf16.gmra.mxu0 %v2570
      %v2651 = vpop.f32.mrf.mxu0
      %v2652 = vadd.f32 0.0, %v2651
      %v2653 = vpop.f32.mrf.mxu0
      %v2654 = vadd.f32 0.0, %v2653
      %2655 = vmatmul.bf16.gmra.mxu0 %v2573
      %v2656 = vpop.f32.mrf.mxu0
      %v2657 = vadd.f32 0.0, %v2656
      %v2658 = vpop.f32.mrf.mxu0
      %v2659 = vadd.f32 0.0, %v2658
      %2660 = vmatmul.bf16.gmra.mxu0 %v2576
      %v2661 = vpop.f32.mrf.mxu0
      %v2662 = vadd.f32 0.0, %v2661
      %v2663 = vpop.f32.mrf.mxu0
      %v2664 = vadd.f32 0.0, %v2663
      %2665 = vmatmul.bf16.gmra.mxu0 %v2579
      %v2666 = vpop.f32.mrf.mxu0
      %v2667 = vadd.f32 0.0, %v2666
      %v2668 = vpop.f32.mrf.mxu0
      %v2669 = vadd.f32 0.0, %v2668
      %2670 = vmatmul.bf16.gmra.mxu0 %v2582
      %v2671 = vpop.f32.mrf.mxu0
      %v2672 = vadd.f32 0.0, %v2671
      %v2673 = vpop.f32.mrf.mxu0
      %v2674 = vadd.f32 0.0, %v2673
      %2675 = vdwg.mxu0
      %v2677 = vsel %vm226, %v2469, 0
      %v2680 = vsel %vm226, %v2470, 0
      %v2683 = vsel %vm226, %v2471, 0
      %v2686 = vsel %vm226, %v2472, 0
      %v2689 = vsel %vm226, %v2473, 0
      %v2692 = vsel %vm226, %v2474, 0
      %v2695 = vsel %vm226, %v2475, 0
      %v2698 = vsel %vm226, %v2476, 0
      %v2701 = vsel %vm226, %v2477, 0
      %v2704 = vsel %vm226, %v2478, 0
      %v2707 = vsel %vm226, %v2479, 0
      %v2710 = vsel %vm226, %v2480, 0
      %v2713 = vsel %vm226, %v2481, 0
      %v2716 = vsel %vm226, %v2482, 0
      %v2719 = vsel %vm226, %v2483, 0
      %v2722 = vsel %vm226, %v2484, 0
      %v2725 = vsel %vm494, %v2485, 0
      %2727 = vmatpush.bf16.msra.mxu0 0
      %2728 = vmatpush.bf16.msra.mxu0 0
      %2729 = vmatpush.bf16.msra.mxu0 0
      %2730 = vmatpush.bf16.msra.mxu0 0
      %2731 = vmatpush.bf16.msra.mxu0 0
      %2732 = vmatpush.bf16.msra.mxu0 0
      %2733 = vmatpush.bf16.msra.mxu0 0
      %2734 = vmatpush.bf16.msra.mxu0 %v2725
      %2735 = vmatmul.bf16.gmra.mxu0 %v2677
      %v2736 = vpop.f32.mrf.mxu0
      %v2737 = vadd.f32 %v2597, %v2736
      %v2738 = vpop.f32.mrf.mxu0
      %v2739 = vadd.f32 %v2599, %v2738
      %2740 = vmatmul.bf16.gmra.mxu0 %v2680
      %v2741 = vpop.f32.mrf.mxu0
      %v2742 = vadd.f32 %v2602, %v2741
      %v2743 = vpop.f32.mrf.mxu0
      %v2744 = vadd.f32 %v2604, %v2743
      %2745 = vmatmul.bf16.gmra.mxu0 %v2683
      %v2746 = vpop.f32.mrf.mxu0
      %v2747 = vadd.f32 %v2607, %v2746
      %v2748 = vpop.f32.mrf.mxu0
      %v2749 = vadd.f32 %v2609, %v2748
      %2750 = vmatmul.bf16.gmra.mxu0 %v2686
      %v2751 = vpop.f32.mrf.mxu0
      %v2752 = vadd.f32 %v2612, %v2751
      %v2753 = vpop.f32.mrf.mxu0
      %v2754 = vadd.f32 %v2614, %v2753
      %2755 = vmatmul.bf16.gmra.mxu0 %v2689
      %v2756 = vpop.f32.mrf.mxu0
      %v2757 = vadd.f32 %v2617, %v2756
      %v2758 = vpop.f32.mrf.mxu0
      %v2759 = vadd.f32 %v2619, %v2758
      %2760 = vmatmul.bf16.gmra.mxu0 %v2692
      %v2761 = vpop.f32.mrf.mxu0
      %v2762 = vadd.f32 %v2622, %v2761
      %v2763 = vpop.f32.mrf.mxu0
      %v2764 = vadd.f32 %v2624, %v2763
      %2765 = vmatmul.bf16.gmra.mxu0 %v2695
      %v2766 = vpop.f32.mrf.mxu0
      %v2767 = vadd.f32 %v2627, %v2766
      %v2768 = vpop.f32.mrf.mxu0
      %v2769 = vadd.f32 %v2629, %v2768
      %2770 = vmatmul.bf16.gmra.mxu0 %v2698
      %v2771 = vpop.f32.mrf.mxu0
      %v2772 = vadd.f32 %v2632, %v2771
      %v2773 = vpop.f32.mrf.mxu0
      %v2774 = vadd.f32 %v2634, %v2773
      %2775 = vmatmul.bf16.gmra.mxu0 %v2701
      %v2776 = vpop.f32.mrf.mxu0
      %v2777 = vadd.f32 %v2637, %v2776
      %v2778 = vpop.f32.mrf.mxu0
      %v2779 = vadd.f32 %v2639, %v2778
      %2780 = vmatmul.bf16.gmra.mxu0 %v2704
      %v2781 = vpop.f32.mrf.mxu0
      %v2782 = vadd.f32 %v2642, %v2781
      %v2783 = vpop.f32.mrf.mxu0
      %v2784 = vadd.f32 %v2644, %v2783
      %2785 = vmatmul.bf16.gmra.mxu0 %v2707
      %v2786 = vpop.f32.mrf.mxu0
      %v2787 = vadd.f32 %v2647, %v2786
      %v2788 = vpop.f32.mrf.mxu0
      %v2789 = vadd.f32 %v2649, %v2788
      %2790 = vmatmul.bf16.gmra.mxu0 %v2710
      %v2791 = vpop.f32.mrf.mxu0
      %v2792 = vadd.f32 %v2652, %v2791
      %v2793 = vpop.f32.mrf.mxu0
      %v2794 = vadd.f32 %v2654, %v2793
      %2795 = vmatmul.bf16.gmra.mxu0 %v2713
      %v2796 = vpop.f32.mrf.mxu0
      %v2797 = vadd.f32 %v2657, %v2796
      %v2798 = vpop.f32.mrf.mxu0
      %v2799 = vadd.f32 %v2659, %v2798
      %2800 = vmatmul.bf16.gmra.mxu0 %v2716
      %v2801 = vpop.f32.mrf.mxu0
      %v2802 = vadd.f32 %v2662, %v2801
      %v2803 = vpop.f32.mrf.mxu0
      %v2804 = vadd.f32 %v2664, %v2803
      %2805 = vmatmul.bf16.gmra.mxu0 %v2719
      %v2806 = vpop.f32.mrf.mxu0
      %v2807 = vadd.f32 %v2667, %v2806
      %v2808 = vpop.f32.mrf.mxu0
      %v2809 = vadd.f32 %v2669, %v2808
      %2810 = vmatmul.bf16.gmra.mxu0 %v2722
      %v2811 = vpop.f32.mrf.mxu0
      %v2812 = vadd.f32 %v2672, %v2811
      %v2813 = vpop.f32.mrf.mxu0
      %v2814 = vadd.f32 %v2674, %v2813
      %2815 = vdwg.mxu0
      %v2816 = vld [vmem:[#allocation3 + $0x2] sm:$0xff]
      %v2817 = vld [vmem:[#allocation3 + $0xa] sm:$0xff]
      %v2818 = vld [vmem:[#allocation3 + $0x1a] sm:$0xff]
      %v2819 = vld [vmem:[#allocation3 + $0x22] sm:$0xff]
      %v2820 = vld [vmem:[#allocation3 + $0x32] sm:$0xff]
      %v2821 = vld [vmem:[#allocation3 + $0x3a] sm:$0xff]
      %v2822 = vld [vmem:[#allocation3 + $0x4a] sm:$0xff]
      %v2823 = vld [vmem:[#allocation3 + $0x52] sm:$0xff]
      %v2824 = vld [vmem:[#allocation3 + $0x62] sm:$0xff]
      %v2825 = vld [vmem:[#allocation3 + $0x6a] sm:$0xff]
      %v2826 = vld [vmem:[#allocation3 + $0x7a] sm:$0xff]
      %v2827 = vld [vmem:[#allocation3 + $0x82] sm:$0xff]
      %v2828 = vld [vmem:[#allocation3 + $0x92] sm:$0xff]
      %v2829 = vld [vmem:[#allocation3 + $0x9a] sm:$0xff]
      %v2830 = vld [vmem:[#allocation3 + $0xaa] sm:$0xff]
      %v2831 = vld [vmem:[#allocation3 + $0xb2] sm:$0xff]
      %v2832 = vld [vmem:[#allocation3 + $0xc2] sm:$0xff]
      %v2833 = vld [vmem:[#allocation3 + $0xca] sm:$0xff]
      %v2834 = vld [vmem:[#allocation3 + $0xda] sm:$0xff]
      %v2835 = vld [vmem:[#allocation3 + $0xe2] sm:$0xff]
      %v2836 = vld [vmem:[#allocation3 + $0xf2] sm:$0xff]
      %v2837 = vld [vmem:[#allocation3 + $0xfa] sm:$0xff]
      %v2838 = vld [vmem:[#allocation3 + $0x10a] sm:$0xff]
      %v2839 = vld [vmem:[#allocation3 + $0x112] sm:$0xff]
      %v2840 = vld [vmem:[#allocation3 + $0x122] sm:$0xff]
      %v2841 = vld [vmem:[#allocation3 + $0x12a] sm:$0xff]
      %v2842 = vld [vmem:[#allocation3 + $0x13a] sm:$0xff]
      %v2843 = vld [vmem:[#allocation3 + $0x142] sm:$0xff]
      %v2844 = vld [vmem:[#allocation3 + $0x152] sm:$0xff]
      %v2845 = vld [vmem:[#allocation3 + $0x15a] sm:$0xff]
      %v2846 = vld [vmem:[#allocation3 + $0x16a] sm:$0xff]
      %v2847 = vld [vmem:[#allocation3 + $0x172] sm:$0xff]
      %v2848 = vpack.c.bf16 %v2817, %v2816
      %v2849 = vpack.c.bf16 %v2819, %v2818
      %v2850 = vpack.c.bf16 %v2821, %v2820
      %v2851 = vpack.c.bf16 %v2823, %v2822
      %v2852 = vpack.c.bf16 %v2825, %v2824
      %v2853 = vpack.c.bf16 %v2827, %v2826
      %v2854 = vpack.c.bf16 %v2829, %v2828
      %v2855 = vpack.c.bf16 %v2831, %v2830
      %v2856 = vpack.c.bf16 %v2833, %v2832
      %v2857 = vpack.c.bf16 %v2835, %v2834
      %v2858 = vpack.c.bf16 %v2837, %v2836
      %v2859 = vpack.c.bf16 %v2839, %v2838
      %v2860 = vpack.c.bf16 %v2841, %v2840
      %v2861 = vpack.c.bf16 %v2843, %v2842
      %v2862 = vpack.c.bf16 %v2845, %v2844
      %v2863 = vpack.c.bf16 %v2847, %v2846
      %s2864 = scalar_lea.vmem %s3, 4
      %v2865 = vld [vmem:[%s2864] sm:$0x3]
      %v2867 = vsel %vm226, %v2848, 0
      %v2870 = vsel %vm226, %v2849, 0
      %v2873 = vsel %vm226, %v2850, 0
      %v2876 = vsel %vm226, %v2851, 0
      %v2879 = vsel %vm226, %v2852, 0
      %v2882 = vsel %vm226, %v2853, 0
      %v2885 = vsel %vm226, %v2854, 0
      %v2888 = vsel %vm226, %v2855, 0
      %v2891 = vsel %vm226, %v2856, 0
      %v2894 = vsel %vm226, %v2857, 0
      %v2897 = vsel %vm226, %v2858, 0
      %v2900 = vsel %vm226, %v2859, 0
      %v2903 = vsel %vm226, %v2860, 0
      %v2906 = vsel %vm226, %v2861, 0
      %v2909 = vsel %vm226, %v2862, 0
      %v2912 = vsel %vm226, %v2863, 0
      %v2915 = vsel %vm494, %v2865, 0
      %2917 = vmatpush.bf16.msra.mxu0 0
      %2918 = vmatpush.bf16.msra.mxu0 0
      %2919 = vmatpush.bf16.msra.mxu0 0
      %2920 = vmatpush.bf16.msra.mxu0 0
      %2921 = vmatpush.bf16.msra.mxu0 0
      %2922 = vmatpush.bf16.msra.mxu0 0
      %2923 = vmatpush.bf16.msra.mxu0 0
      %2924 = vmatpush.bf16.msra.mxu0 %v2915
      %2925 = vmatmul.bf16.gmra.mxu0 %v2867
      %v2926 = vpop.f32.mrf.mxu0
      %v2927 = vadd.f32 0.0, %v2926
      %v2928 = vpop.f32.mrf.mxu0
      %v2929 = vadd.f32 0.0, %v2928
      %2930 = vmatmul.bf16.gmra.mxu0 %v2870
      %v2931 = vpop.f32.mrf.mxu0
      %v2932 = vadd.f32 0.0, %v2931
      %v2933 = vpop.f32.mrf.mxu0
      %v2934 = vadd.f32 0.0, %v2933
      %2935 = vmatmul.bf16.gmra.mxu0 %v2873
      %v2936 = vpop.f32.mrf.mxu0
      %v2937 = vadd.f32 0.0, %v2936
      %v2938 = vpop.f32.mrf.mxu0
      %v2939 = vadd.f32 0.0, %v2938
      %2940 = vmatmul.bf16.gmra.mxu0 %v2876
      %v2941 = vpop.f32.mrf.mxu0
      %v2942 = vadd.f32 0.0, %v2941
      %v2943 = vpop.f32.mrf.mxu0
      %v2944 = vadd.f32 0.0, %v2943
      %2945 = vmatmul.bf16.gmra.mxu0 %v2879
      %v2946 = vpop.f32.mrf.mxu0
      %v2947 = vadd.f32 0.0, %v2946
      %v2948 = vpop.f32.mrf.mxu0
      %v2949 = vadd.f32 0.0, %v2948
      %2950 = vmatmul.bf16.gmra.mxu0 %v2882
      %v2951 = vpop.f32.mrf.mxu0
      %v2952 = vadd.f32 0.0, %v2951
      %v2953 = vpop.f32.mrf.mxu0
      %v2954 = vadd.f32 0.0, %v2953
      %2955 = vmatmul.bf16.gmra.mxu0 %v2885
      %v2956 = vpop.f32.mrf.mxu0
      %v2957 = vadd.f32 0.0, %v2956
      %v2958 = vpop.f32.mrf.mxu0
      %v2959 = vadd.f32 0.0, %v2958
      %2960 = vmatmul.bf16.gmra.mxu0 %v2888
      %v2961 = vpop.f32.mrf.mxu0
      %v2962 = vadd.f32 0.0, %v2961
      %v2963 = vpop.f32.mrf.mxu0
      %v2964 = vadd.f32 0.0, %v2963
      %2965 = vmatmul.bf16.gmra.mxu0 %v2891
      %v2966 = vpop.f32.mrf.mxu0
      %v2967 = vadd.f32 0.0, %v2966
      %v2968 = vpop.f32.mrf.mxu0
      %v2969 = vadd.f32 0.0, %v2968
      %2970 = vmatmul.bf16.gmra.mxu0 %v2894
      %v2971 = vpop.f32.mrf.mxu0
      %v2972 = vadd.f32 0.0, %v2971
      %v2973 = vpop.f32.mrf.mxu0
      %v2974 = vadd.f32 0.0, %v2973
      %2975 = vmatmul.bf16.gmra.mxu0 %v2897
      %v2976 = vpop.f32.mrf.mxu0
      %v2977 = vadd.f32 0.0, %v2976
      %v2978 = vpop.f32.mrf.mxu0
      %v2979 = vadd.f32 0.0, %v2978
      %2980 = vmatmul.bf16.gmra.mxu0 %v2900
      %v2981 = vpop.f32.mrf.mxu0
      %v2982 = vadd.f32 0.0, %v2981
      %v2983 = vpop.f32.mrf.mxu0
      %v2984 = vadd.f32 0.0, %v2983
      %2985 = vmatmul.bf16.gmra.mxu0 %v2903
      %v2986 = vpop.f32.mrf.mxu0
      %v2987 = vadd.f32 0.0, %v2986
      %v2988 = vpop.f32.mrf.mxu0
      %v2989 = vadd.f32 0.0, %v2988
      %2990 = vmatmul.bf16.gmra.mxu0 %v2906
      %v2991 = vpop.f32.mrf.mxu0
      %v2992 = vadd.f32 0.0, %v2991
      %v2993 = vpop.f32.mrf.mxu0
      %v2994 = vadd.f32 0.0, %v2993
      %2995 = vmatmul.bf16.gmra.mxu0 %v2909
      %v2996 = vpop.f32.mrf.mxu0
      %v2997 = vadd.f32 0.0, %v2996
      %v2998 = vpop.f32.mrf.mxu0
      %v2999 = vadd.f32 0.0, %v2998
      %3000 = vmatmul.bf16.gmra.mxu0 %v2912
      %v3001 = vpop.f32.mrf.mxu0
      %v3002 = vadd.f32 0.0, %v3001
      %v3003 = vpop.f32.mrf.mxu0
      %v3004 = vadd.f32 0.0, %v3003
      %3005 = vdwg.mxu0
      %v3006 = vadd.f32 %v2737, %v2927
      %v3007 = vadd.f32 %v2739, %v2929
      %v3008 = vadd.f32 %v2742, %v2932
      %v3009 = vadd.f32 %v2744, %v2934
      %v3010 = vadd.f32 %v2747, %v2937
      %v3011 = vadd.f32 %v2749, %v2939
      %v3012 = vadd.f32 %v2752, %v2942
      %v3013 = vadd.f32 %v2754, %v2944
      %v3014 = vadd.f32 %v2757, %v2947
      %v3015 = vadd.f32 %v2759, %v2949
      %v3016 = vadd.f32 %v2762, %v2952
      %v3017 = vadd.f32 %v2764, %v2954
      %v3018 = vadd.f32 %v2767, %v2957
      %v3019 = vadd.f32 %v2769, %v2959
      %v3020 = vadd.f32 %v2772, %v2962
      %v3021 = vadd.f32 %v2774, %v2964
      %v3022 = vadd.f32 %v2777, %v2967
      %v3023 = vadd.f32 %v2779, %v2969
      %v3024 = vadd.f32 %v2782, %v2972
      %v3025 = vadd.f32 %v2784, %v2974
      %v3026 = vadd.f32 %v2787, %v2977
      %v3027 = vadd.f32 %v2789, %v2979
      %v3028 = vadd.f32 %v2792, %v2982
      %v3029 = vadd.f32 %v2794, %v2984
      %v3030 = vadd.f32 %v2797, %v2987
      %v3031 = vadd.f32 %v2799, %v2989
      %v3032 = vadd.f32 %v2802, %v2992
      %v3033 = vadd.f32 %v2804, %v2994
      %v3034 = vadd.f32 %v2807, %v2997
      %v3035 = vadd.f32 %v2809, %v2999
      %v3036 = vadd.f32 %v2812, %v3002
      %v3037 = vadd.f32 %v2814, %v3004
      %v3038 = vld [vmem:[%s2404] sm:$0xff]
      %v3039 = vld [vmem:[%s2404 + $0x8] sm:$0xff]
      %v3040 = vld [vmem:[%s2404 + $0x18] sm:$0xff]
      %v3041 = vld [vmem:[%s2404 + $0x20] sm:$0xff]
      %v3042 = vld [vmem:[%s2404 + $0x30] sm:$0xff]
      %v3043 = vld [vmem:[%s2404 + $0x38] sm:$0xff]
      %v3044 = vld [vmem:[%s2404 + $0x48] sm:$0xff]
      %v3045 = vld [vmem:[%s2404 + $0x50] sm:$0xff]
      %v3046 = vld [vmem:[%s2404 + $0x60] sm:$0xff]
      %v3047 = vld [vmem:[%s2404 + $0x68] sm:$0xff]
      %v3048 = vld [vmem:[%s2404 + $0x78] sm:$0xff]
      %v3049 = vld [vmem:[%s2404 + $0x80] sm:$0xff]
      %v3050 = vld [vmem:[%s2404 + $0x90] sm:$0xff]
      %v3051 = vld [vmem:[%s2404 + $0x98] sm:$0xff]
      %v3052 = vld [vmem:[%s2404 + $0xa8] sm:$0xff]
      %v3053 = vld [vmem:[%s2404 + $0xb0] sm:$0xff]
      %v3054 = vld [vmem:[%s2404 + $0xc0] sm:$0xff]
      %v3055 = vld [vmem:[%s2404 + $0xc8] sm:$0xff]
      %v3056 = vld [vmem:[%s2404 + $0xd8] sm:$0xff]
      %v3057 = vld [vmem:[%s2404 + $0xe0] sm:$0xff]
      %v3058 = vld [vmem:[%s2404 + $0xf0] sm:$0xff]
      %v3059 = vld [vmem:[%s2404 + $0xf8] sm:$0xff]
      %v3060 = vld [vmem:[%s2404 + $0x108] sm:$0xff]
      %v3061 = vld [vmem:[%s2404 + $0x110] sm:$0xff]
      %v3062 = vld [vmem:[%s2404 + $0x120] sm:$0xff]
      %v3063 = vld [vmem:[%s2404 + $0x128] sm:$0xff]
      %v3064 = vld [vmem:[%s2404 + $0x138] sm:$0xff]
      %v3065 = vld [vmem:[%s2404 + $0x140] sm:$0xff]
      %v3066 = vld [vmem:[%s2404 + $0x150] sm:$0xff]
      %v3067 = vld [vmem:[%s2404 + $0x158] sm:$0xff]
      %v3068 = vld [vmem:[%s2404 + $0x168] sm:$0xff]
      %v3069 = vld [vmem:[%s2404 + $0x170] sm:$0xff]
      %v3070 = vpack.c.bf16 %v3039, %v3038
      %v3071 = vpack.c.bf16 %v3041, %v3040
      %v3072 = vpack.c.bf16 %v3043, %v3042
      %v3073 = vpack.c.bf16 %v3045, %v3044
      %v3074 = vpack.c.bf16 %v3047, %v3046
      %v3075 = vpack.c.bf16 %v3049, %v3048
      %v3076 = vpack.c.bf16 %v3051, %v3050
      %v3077 = vpack.c.bf16 %v3053, %v3052
      %v3078 = vpack.c.bf16 %v3055, %v3054
      %v3079 = vpack.c.bf16 %v3057, %v3056
      %v3080 = vpack.c.bf16 %v3059, %v3058
      %v3081 = vpack.c.bf16 %v3061, %v3060
      %v3082 = vpack.c.bf16 %v3063, %v3062
      %v3083 = vpack.c.bf16 %v3065, %v3064
      %v3084 = vpack.c.bf16 %v3067, %v3066
      %v3085 = vpack.c.bf16 %v3069, %v3068
      %s3086 = scalar_lea.vmem %s3, 6
      %v3087 = vld [vmem:[%s3086] sm:$0x3]
      %v3089 = vsel %vm226, %v3070, 0
      %v3092 = vsel %vm226, %v3071, 0
      %v3095 = vsel %vm226, %v3072, 0
      %v3098 = vsel %vm226, %v3073, 0
      %v3101 = vsel %vm226, %v3074, 0
      %v3104 = vsel %vm226, %v3075, 0
      %v3107 = vsel %vm226, %v3076, 0
      %v3110 = vsel %vm226, %v3077, 0
      %v3113 = vsel %vm226, %v3078, 0
      %v3116 = vsel %vm226, %v3079, 0
      %v3119 = vsel %vm226, %v3080, 0
      %v3122 = vsel %vm226, %v3081, 0
      %v3125 = vsel %vm226, %v3082, 0
      %v3128 = vsel %vm226, %v3083, 0
      %v3131 = vsel %vm226, %v3084, 0
      %v3134 = vsel %vm226, %v3085, 0
      %v3137 = vsel %vm494, %v3087, 0
      %3139 = vmatpush.bf16.msra.mxu0 0
      %3140 = vmatpush.bf16.msra.mxu0 0
      %3141 = vmatpush.bf16.msra.mxu0 0
      %3142 = vmatpush.bf16.msra.mxu0 0
      %3143 = vmatpush.bf16.msra.mxu0 0
      %3144 = vmatpush.bf16.msra.mxu0 0
      %3145 = vmatpush.bf16.msra.mxu0 0
      %3146 = vmatpush.bf16.msra.mxu0 %v3137
      %3147 = vmatmul.bf16.gmra.mxu0 %v3089
      %v3148 = vpop.f32.mrf.mxu0
      %v3149 = vadd.f32 0.0, %v3148
      %v3150 = vpop.f32.mrf.mxu0
      %v3151 = vadd.f32 0.0, %v3150
      %3152 = vmatmul.bf16.gmra.mxu0 %v3092
      %v3153 = vpop.f32.mrf.mxu0
      %v3154 = vadd.f32 0.0, %v3153
      %v3155 = vpop.f32.mrf.mxu0
      %v3156 = vadd.f32 0.0, %v3155
      %3157 = vmatmul.bf16.gmra.mxu0 %v3095
      %v3158 = vpop.f32.mrf.mxu0
      %v3159 = vadd.f32 0.0, %v3158
      %v3160 = vpop.f32.mrf.mxu0
      %v3161 = vadd.f32 0.0, %v3160
      %3162 = vmatmul.bf16.gmra.mxu0 %v3098
      %v3163 = vpop.f32.mrf.mxu0
      %v3164 = vadd.f32 0.0, %v3163
      %v3165 = vpop.f32.mrf.mxu0
      %v3166 = vadd.f32 0.0, %v3165
      %3167 = vmatmul.bf16.gmra.mxu0 %v3101
      %v3168 = vpop.f32.mrf.mxu0
      %v3169 = vadd.f32 0.0, %v3168
      %v3170 = vpop.f32.mrf.mxu0
      %v3171 = vadd.f32 0.0, %v3170
      %3172 = vmatmul.bf16.gmra.mxu0 %v3104
      %v3173 = vpop.f32.mrf.mxu0
      %v3174 = vadd.f32 0.0, %v3173
      %v3175 = vpop.f32.mrf.mxu0
      %v3176 = vadd.f32 0.0, %v3175
      %3177 = vmatmul.bf16.gmra.mxu0 %v3107
      %v3178 = vpop.f32.mrf.mxu0
      %v3179 = vadd.f32 0.0, %v3178
      %v3180 = vpop.f32.mrf.mxu0
      %v3181 = vadd.f32 0.0, %v3180
      %3182 = vmatmul.bf16.gmra.mxu0 %v3110
      %v3183 = vpop.f32.mrf.mxu0
      %v3184 = vadd.f32 0.0, %v3183
      %v3185 = vpop.f32.mrf.mxu0
      %v3186 = vadd.f32 0.0, %v3185
      %3187 = vmatmul.bf16.gmra.mxu0 %v3113
      %v3188 = vpop.f32.mrf.mxu0
      %v3189 = vadd.f32 0.0, %v3188
      %v3190 = vpop.f32.mrf.mxu0
      %v3191 = vadd.f32 0.0, %v3190
      %3192 = vmatmul.bf16.gmra.mxu0 %v3116
      %v3193 = vpop.f32.mrf.mxu0
      %v3194 = vadd.f32 0.0, %v3193
      %v3195 = vpop.f32.mrf.mxu0
      %v3196 = vadd.f32 0.0, %v3195
      %3197 = vmatmul.bf16.gmra.mxu0 %v3119
      %v3198 = vpop.f32.mrf.mxu0
      %v3199 = vadd.f32 0.0, %v3198
      %v3200 = vpop.f32.mrf.mxu0
      %v3201 = vadd.f32 0.0, %v3200
      %3202 = vmatmul.bf16.gmra.mxu0 %v3122
      %v3203 = vpop.f32.mrf.mxu0
      %v3204 = vadd.f32 0.0, %v3203
      %v3205 = vpop.f32.mrf.mxu0
      %v3206 = vadd.f32 0.0, %v3205
      %3207 = vmatmul.bf16.gmra.mxu0 %v3125
      %v3208 = vpop.f32.mrf.mxu0
      %v3209 = vadd.f32 0.0, %v3208
      %v3210 = vpop.f32.mrf.mxu0
      %v3211 = vadd.f32 0.0, %v3210
      %3212 = vmatmul.bf16.gmra.mxu0 %v3128
      %v3213 = vpop.f32.mrf.mxu0
      %v3214 = vadd.f32 0.0, %v3213
      %v3215 = vpop.f32.mrf.mxu0
      %v3216 = vadd.f32 0.0, %v3215
      %3217 = vmatmul.bf16.gmra.mxu0 %v3131
      %v3218 = vpop.f32.mrf.mxu0
      %v3219 = vadd.f32 0.0, %v3218
      %v3220 = vpop.f32.mrf.mxu0
      %v3221 = vadd.f32 0.0, %v3220
      %3222 = vmatmul.bf16.gmra.mxu0 %v3134
      %v3223 = vpop.f32.mrf.mxu0
      %v3224 = vadd.f32 0.0, %v3223
      %v3225 = vpop.f32.mrf.mxu0
      %v3226 = vadd.f32 0.0, %v3225
      %3227 = vdwg.mxu0
      %v3228 = vadd.f32 %v3006, %v3149
      %v3229 = vadd.f32 %v3007, %v3151
      %v3230 = vadd.f32 %v3008, %v3154
      %v3231 = vadd.f32 %v3009, %v3156
      %v3232 = vadd.f32 %v3010, %v3159
      %v3233 = vadd.f32 %v3011, %v3161
      %v3234 = vadd.f32 %v3012, %v3164
      %v3235 = vadd.f32 %v3013, %v3166
      %v3236 = vadd.f32 %v3014, %v3169
      %v3237 = vadd.f32 %v3015, %v3171
      %v3238 = vadd.f32 %v3016, %v3174
      %v3239 = vadd.f32 %v3017, %v3176
      %v3240 = vadd.f32 %v3018, %v3179
      %v3241 = vadd.f32 %v3019, %v3181
      %v3242 = vadd.f32 %v3020, %v3184
      %v3243 = vadd.f32 %v3021, %v3186
      %v3244 = vadd.f32 %v3022, %v3189
      %v3245 = vadd.f32 %v3023, %v3191
      %v3246 = vadd.f32 %v3024, %v3194
      %v3247 = vadd.f32 %v3025, %v3196
      %v3248 = vadd.f32 %v3026, %v3199
      %v3249 = vadd.f32 %v3027, %v3201
      %v3250 = vadd.f32 %v3028, %v3204
      %v3251 = vadd.f32 %v3029, %v3206
      %v3252 = vadd.f32 %v3030, %v3209
      %v3253 = vadd.f32 %v3031, %v3211
      %v3254 = vadd.f32 %v3032, %v3214
      %v3255 = vadd.f32 %v3033, %v3216
      %v3256 = vadd.f32 %v3034, %v3219
      %v3257 = vadd.f32 %v3035, %v3221
      %v3258 = vadd.f32 %v3036, %v3224
      %v3259 = vadd.f32 %v3037, %v3226
      %v3260 = vld [vmem:[%s2404 + $0x1] sm:$0xff]
      %v3261 = vld [vmem:[%s2404 + $0x9] sm:$0xff]
      %v3262 = vld [vmem:[%s2404 + $0x19] sm:$0xff]
      %v3263 = vld [vmem:[%s2404 + $0x21] sm:$0xff]
      %v3264 = vld [vmem:[%s2404 + $0x31] sm:$0xff]
      %v3265 = vld [vmem:[%s2404 + $0x39] sm:$0xff]
      %v3266 = vld [vmem:[%s2404 + $0x49] sm:$0xff]
      %v3267 = vld [vmem:[%s2404 + $0x51] sm:$0xff]
      %v3268 = vld [vmem:[%s2404 + $0x61] sm:$0xff]
      %v3269 = vld [vmem:[%s2404 + $0x69] sm:$0xff]
      %v3270 = vld [vmem:[%s2404 + $0x79] sm:$0xff]
      %v3271 = vld [vmem:[%s2404 + $0x81] sm:$0xff]
      %v3272 = vld [vmem:[%s2404 + $0x91] sm:$0xff]
      %v3273 = vld [vmem:[%s2404 + $0x99] sm:$0xff]
      %v3274 = vld [vmem:[%s2404 + $0xa9] sm:$0xff]
      %v3275 = vld [vmem:[%s2404 + $0xb1] sm:$0xff]
      %v3276 = vld [vmem:[%s2404 + $0xc1] sm:$0xff]
      %v3277 = vld [vmem:[%s2404 + $0xc9] sm:$0xff]
      %v3278 = vld [vmem:[%s2404 + $0xd9] sm:$0xff]
      %v3279 = vld [vmem:[%s2404 + $0xe1] sm:$0xff]
      %v3280 = vld [vmem:[%s2404 + $0xf1] sm:$0xff]
      %v3281 = vld [vmem:[%s2404 + $0xf9] sm:$0xff]
      %v3282 = vld [vmem:[%s2404 + $0x109] sm:$0xff]
      %v3283 = vld [vmem:[%s2404 + $0x111] sm:$0xff]
      %v3284 = vld [vmem:[%s2404 + $0x121] sm:$0xff]
      %v3285 = vld [vmem:[%s2404 + $0x129] sm:$0xff]
      %v3286 = vld [vmem:[%s2404 + $0x139] sm:$0xff]
      %v3287 = vld [vmem:[%s2404 + $0x141] sm:$0xff]
      %v3288 = vld [vmem:[%s2404 + $0x151] sm:$0xff]
      %v3289 = vld [vmem:[%s2404 + $0x159] sm:$0xff]
      %v3290 = vld [vmem:[%s2404 + $0x169] sm:$0xff]
      %v3291 = vld [vmem:[%s2404 + $0x171] sm:$0xff]
      %v3292 = vpack.c.bf16 %v3261, %v3260
      %v3293 = vpack.c.bf16 %v3263, %v3262
      %v3294 = vpack.c.bf16 %v3265, %v3264
      %v3295 = vpack.c.bf16 %v3267, %v3266
      %v3296 = vpack.c.bf16 %v3269, %v3268
      %v3297 = vpack.c.bf16 %v3271, %v3270
      %v3298 = vpack.c.bf16 %v3273, %v3272
      %v3299 = vpack.c.bf16 %v3275, %v3274
      %v3300 = vpack.c.bf16 %v3277, %v3276
      %v3301 = vpack.c.bf16 %v3279, %v3278
      %v3302 = vpack.c.bf16 %v3281, %v3280
      %v3303 = vpack.c.bf16 %v3283, %v3282
      %v3304 = vpack.c.bf16 %v3285, %v3284
      %v3305 = vpack.c.bf16 %v3287, %v3286
      %v3306 = vpack.c.bf16 %v3289, %v3288
      %v3307 = vpack.c.bf16 %v3291, %v3290
      %s3308 = scalar_lea.vmem %s3, 8
      %v3309 = vld [vmem:[%s3308] sm:$0x3]
      %v3311 = vsel %vm226, %v3292, 0
      %v3314 = vsel %vm226, %v3293, 0
      %v3317 = vsel %vm226, %v3294, 0
      %v3320 = vsel %vm226, %v3295, 0
      %v3323 = vsel %vm226, %v3296, 0
      %v3326 = vsel %vm226, %v3297, 0
      %v3329 = vsel %vm226, %v3298, 0
      %v3332 = vsel %vm226, %v3299, 0
      %v3335 = vsel %vm226, %v3300, 0
      %v3338 = vsel %vm226, %v3301, 0
      %v3341 = vsel %vm226, %v3302, 0
      %v3344 = vsel %vm226, %v3303, 0
      %v3347 = vsel %vm226, %v3304, 0
      %v3350 = vsel %vm226, %v3305, 0
      %v3353 = vsel %vm226, %v3306, 0
      %v3356 = vsel %vm226, %v3307, 0
      %v3359 = vsel %vm494, %v3309, 0
      %3361 = vmatpush.bf16.msra.mxu0 0
      %3362 = vmatpush.bf16.msra.mxu0 0
      %3363 = vmatpush.bf16.msra.mxu0 0
      %3364 = vmatpush.bf16.msra.mxu0 0
      %3365 = vmatpush.bf16.msra.mxu0 0
      %3366 = vmatpush.bf16.msra.mxu0 0
      %3367 = vmatpush.bf16.msra.mxu0 0
      %3368 = vmatpush.bf16.msra.mxu0 %v3359
      %3369 = vmatmul.bf16.gmra.mxu0 %v3311
      %v3370 = vpop.f32.mrf.mxu0
      %v3371 = vadd.f32 0.0, %v3370
      %v3372 = vpop.f32.mrf.mxu0
      %v3373 = vadd.f32 0.0, %v3372
      %3374 = vmatmul.bf16.gmra.mxu0 %v3314
      %v3375 = vpop.f32.mrf.mxu0
      %v3376 = vadd.f32 0.0, %v3375
      %v3377 = vpop.f32.mrf.mxu0
      %v3378 = vadd.f32 0.0, %v3377
      %3379 = vmatmul.bf16.gmra.mxu0 %v3317
      %v3380 = vpop.f32.mrf.mxu0
      %v3381 = vadd.f32 0.0, %v3380
      %v3382 = vpop.f32.mrf.mxu0
      %v3383 = vadd.f32 0.0, %v3382
      %3384 = vmatmul.bf16.gmra.mxu0 %v3320
      %v3385 = vpop.f32.mrf.mxu0
      %v3386 = vadd.f32 0.0, %v3385
      %v3387 = vpop.f32.mrf.mxu0
      %v3388 = vadd.f32 0.0, %v3387
      %3389 = vmatmul.bf16.gmra.mxu0 %v3323
      %v3390 = vpop.f32.mrf.mxu0
      %v3391 = vadd.f32 0.0, %v3390
      %v3392 = vpop.f32.mrf.mxu0
      %v3393 = vadd.f32 0.0, %v3392
      %3394 = vmatmul.bf16.gmra.mxu0 %v3326
      %v3395 = vpop.f32.mrf.mxu0
      %v3396 = vadd.f32 0.0, %v3395
      %v3397 = vpop.f32.mrf.mxu0
      %v3398 = vadd.f32 0.0, %v3397
      %3399 = vmatmul.bf16.gmra.mxu0 %v3329
      %v3400 = vpop.f32.mrf.mxu0
      %v3401 = vadd.f32 0.0, %v3400
      %v3402 = vpop.f32.mrf.mxu0
      %v3403 = vadd.f32 0.0, %v3402
      %3404 = vmatmul.bf16.gmra.mxu0 %v3332
      %v3405 = vpop.f32.mrf.mxu0
      %v3406 = vadd.f32 0.0, %v3405
      %v3407 = vpop.f32.mrf.mxu0
      %v3408 = vadd.f32 0.0, %v3407
      %3409 = vmatmul.bf16.gmra.mxu0 %v3335
      %v3410 = vpop.f32.mrf.mxu0
      %v3411 = vadd.f32 0.0, %v3410
      %v3412 = vpop.f32.mrf.mxu0
      %v3413 = vadd.f32 0.0, %v3412
      %3414 = vmatmul.bf16.gmra.mxu0 %v3338
      %v3415 = vpop.f32.mrf.mxu0
      %v3416 = vadd.f32 0.0, %v3415
      %v3417 = vpop.f32.mrf.mxu0
      %v3418 = vadd.f32 0.0, %v3417
      %3419 = vmatmul.bf16.gmra.mxu0 %v3341
      %v3420 = vpop.f32.mrf.mxu0
      %v3421 = vadd.f32 0.0, %v3420
      %v3422 = vpop.f32.mrf.mxu0
      %v3423 = vadd.f32 0.0, %v3422
      %3424 = vmatmul.bf16.gmra.mxu0 %v3344
      %v3425 = vpop.f32.mrf.mxu0
      %v3426 = vadd.f32 0.0, %v3425
      %v3427 = vpop.f32.mrf.mxu0
      %v3428 = vadd.f32 0.0, %v3427
      %3429 = vmatmul.bf16.gmra.mxu0 %v3347
      %v3430 = vpop.f32.mrf.mxu0
      %v3431 = vadd.f32 0.0, %v3430
      %v3432 = vpop.f32.mrf.mxu0
      %v3433 = vadd.f32 0.0, %v3432
      %3434 = vmatmul.bf16.gmra.mxu0 %v3350
      %v3435 = vpop.f32.mrf.mxu0
      %v3436 = vadd.f32 0.0, %v3435
      %v3437 = vpop.f32.mrf.mxu0
      %v3438 = vadd.f32 0.0, %v3437
      %3439 = vmatmul.bf16.gmra.mxu0 %v3353
      %v3440 = vpop.f32.mrf.mxu0
      %v3441 = vadd.f32 0.0, %v3440
      %v3442 = vpop.f32.mrf.mxu0
      %v3443 = vadd.f32 0.0, %v3442
      %3444 = vmatmul.bf16.gmra.mxu0 %v3356
      %v3445 = vpop.f32.mrf.mxu0
      %v3446 = vadd.f32 0.0, %v3445
      %v3447 = vpop.f32.mrf.mxu0
      %v3448 = vadd.f32 0.0, %v3447
      %3449 = vdwg.mxu0
      %v3450 = vadd.f32 %v3228, %v3371
      %v3451 = vadd.f32 %v3229, %v3373
      %v3452 = vadd.f32 %v3230, %v3376
      %v3453 = vadd.f32 %v3231, %v3378
      %v3454 = vadd.f32 %v3232, %v3381
      %v3455 = vadd.f32 %v3233, %v3383
      %v3456 = vadd.f32 %v3234, %v3386
      %v3457 = vadd.f32 %v3235, %v3388
      %v3458 = vadd.f32 %v3236, %v3391
      %v3459 = vadd.f32 %v3237, %v3393
      %v3460 = vadd.f32 %v3238, %v3396
      %v3461 = vadd.f32 %v3239, %v3398
      %v3462 = vadd.f32 %v3240, %v3401
      %v3463 = vadd.f32 %v3241, %v3403
      %v3464 = vadd.f32 %v3242, %v3406
      %v3465 = vadd.f32 %v3243, %v3408
      %v3466 = vadd.f32 %v3244, %v3411
      %v3467 = vadd.f32 %v3245, %v3413
      %v3468 = vadd.f32 %v3246, %v3416
      %v3469 = vadd.f32 %v3247, %v3418
      %v3470 = vadd.f32 %v3248, %v3421
      %v3471 = vadd.f32 %v3249, %v3423
      %v3472 = vadd.f32 %v3250, %v3426
      %v3473 = vadd.f32 %v3251, %v3428
      %v3474 = vadd.f32 %v3252, %v3431
      %v3475 = vadd.f32 %v3253, %v3433
      %v3476 = vadd.f32 %v3254, %v3436
      %v3477 = vadd.f32 %v3255, %v3438
      %v3478 = vadd.f32 %v3256, %v3441
      %v3479 = vadd.f32 %v3257, %v3443
      %v3480 = vadd.f32 %v3258, %v3446
      %v3481 = vadd.f32 %v3259, %v3448
      %v3482 = vld [vmem:[%s2404 + $0x2] sm:$0xff]
      %v3483 = vld [vmem:[%s2404 + $0xa] sm:$0xff]
      %v3484 = vld [vmem:[%s2404 + $0x1a] sm:$0xff]
      %v3485 = vld [vmem:[%s2404 + $0x22] sm:$0xff]
      %v3486 = vld [vmem:[%s2404 + $0x32] sm:$0xff]
      %v3487 = vld [vmem:[%s2404 + $0x3a] sm:$0xff]
      %v3488 = vld [vmem:[%s2404 + $0x4a] sm:$0xff]
      %v3489 = vld [vmem:[%s2404 + $0x52] sm:$0xff]
      %v3490 = vld [vmem:[%s2404 + $0x62] sm:$0xff]
      %v3491 = vld [vmem:[%s2404 + $0x6a] sm:$0xff]
      %v3492 = vld [vmem:[%s2404 + $0x7a] sm:$0xff]
      %v3493 = vld [vmem:[%s2404 + $0x82] sm:$0xff]
      %v3494 = vld [vmem:[%s2404 + $0x92] sm:$0xff]
      %v3495 = vld [vmem:[%s2404 + $0x9a] sm:$0xff]
      %v3496 = vld [vmem:[%s2404 + $0xaa] sm:$0xff]
      %v3497 = vld [vmem:[%s2404 + $0xb2] sm:$0xff]
      %v3498 = vld [vmem:[%s2404 + $0xc2] sm:$0xff]
      %v3499 = vld [vmem:[%s2404 + $0xca] sm:$0xff]
      %v3500 = vld [vmem:[%s2404 + $0xda] sm:$0xff]
      %v3501 = vld [vmem:[%s2404 + $0xe2] sm:$0xff]
      %v3502 = vld [vmem:[%s2404 + $0xf2] sm:$0xff]
      %v3503 = vld [vmem:[%s2404 + $0xfa] sm:$0xff]
      %v3504 = vld [vmem:[%s2404 + $0x10a] sm:$0xff]
      %v3505 = vld [vmem:[%s2404 + $0x112] sm:$0xff]
      %v3506 = vld [vmem:[%s2404 + $0x122] sm:$0xff]
      %v3507 = vld [vmem:[%s2404 + $0x12a] sm:$0xff]
      %v3508 = vld [vmem:[%s2404 + $0x13a] sm:$0xff]
      %v3509 = vld [vmem:[%s2404 + $0x142] sm:$0xff]
      %v3510 = vld [vmem:[%s2404 + $0x152] sm:$0xff]
      %v3511 = vld [vmem:[%s2404 + $0x15a] sm:$0xff]
      %v3512 = vld [vmem:[%s2404 + $0x16a] sm:$0xff]
      %v3513 = vld [vmem:[%s2404 + $0x172] sm:$0xff]
      %v3514 = vpack.c.bf16 %v3483, %v3482
      %v3515 = vpack.c.bf16 %v3485, %v3484
      %v3516 = vpack.c.bf16 %v3487, %v3486
      %v3517 = vpack.c.bf16 %v3489, %v3488
      %v3518 = vpack.c.bf16 %v3491, %v3490
      %v3519 = vpack.c.bf16 %v3493, %v3492
      %v3520 = vpack.c.bf16 %v3495, %v3494
      %v3521 = vpack.c.bf16 %v3497, %v3496
      %v3522 = vpack.c.bf16 %v3499, %v3498
      %v3523 = vpack.c.bf16 %v3501, %v3500
      %v3524 = vpack.c.bf16 %v3503, %v3502
      %v3525 = vpack.c.bf16 %v3505, %v3504
      %v3526 = vpack.c.bf16 %v3507, %v3506
      %v3527 = vpack.c.bf16 %v3509, %v3508
      %v3528 = vpack.c.bf16 %v3511, %v3510
      %v3529 = vpack.c.bf16 %v3513, %v3512
      %s3530 = scalar_lea.vmem %s3, 10
      %v3531 = vld [vmem:[%s3530] sm:$0x3]
      %v3533 = vsel %vm226, %v3514, 0
      %v3536 = vsel %vm226, %v3515, 0
      %v3539 = vsel %vm226, %v3516, 0
      %v3542 = vsel %vm226, %v3517, 0
      %v3545 = vsel %vm226, %v3518, 0
      %v3548 = vsel %vm226, %v3519, 0
      %v3551 = vsel %vm226, %v3520, 0
      %v3554 = vsel %vm226, %v3521, 0
      %v3557 = vsel %vm226, %v3522, 0
      %v3560 = vsel %vm226, %v3523, 0
      %v3563 = vsel %vm226, %v3524, 0
      %v3566 = vsel %vm226, %v3525, 0
      %v3569 = vsel %vm226, %v3526, 0
      %v3572 = vsel %vm226, %v3527, 0
      %v3575 = vsel %vm226, %v3528, 0
      %v3578 = vsel %vm226, %v3529, 0
      %v3581 = vsel %vm494, %v3531, 0
      %3583 = vmatpush.bf16.msra.mxu0 0
      %3584 = vmatpush.bf16.msra.mxu0 0
      %3585 = vmatpush.bf16.msra.mxu0 0
      %3586 = vmatpush.bf16.msra.mxu0 0
      %3587 = vmatpush.bf16.msra.mxu0 0
      %3588 = vmatpush.bf16.msra.mxu0 0
      %3589 = vmatpush.bf16.msra.mxu0 0
      %3590 = vmatpush.bf16.msra.mxu0 %v3581
      %3591 = vmatmul.bf16.gmra.mxu0 %v3533
      %v3592 = vpop.f32.mrf.mxu0
      %v3593 = vadd.f32 0.0, %v3592
      %v3594 = vpop.f32.mrf.mxu0
      %v3595 = vadd.f32 0.0, %v3594
      %3596 = vmatmul.bf16.gmra.mxu0 %v3536
      %v3597 = vpop.f32.mrf.mxu0
      %v3598 = vadd.f32 0.0, %v3597
      %v3599 = vpop.f32.mrf.mxu0
      %v3600 = vadd.f32 0.0, %v3599
      %3601 = vmatmul.bf16.gmra.mxu0 %v3539
      %v3602 = vpop.f32.mrf.mxu0
      %v3603 = vadd.f32 0.0, %v3602
      %v3604 = vpop.f32.mrf.mxu0
      %v3605 = vadd.f32 0.0, %v3604
      %3606 = vmatmul.bf16.gmra.mxu0 %v3542
      %v3607 = vpop.f32.mrf.mxu0
      %v3608 = vadd.f32 0.0, %v3607
      %v3609 = vpop.f32.mrf.mxu0
      %v3610 = vadd.f32 0.0, %v3609
      %3611 = vmatmul.bf16.gmra.mxu0 %v3545
      %v3612 = vpop.f32.mrf.mxu0
      %v3613 = vadd.f32 0.0, %v3612
      %v3614 = vpop.f32.mrf.mxu0
      %v3615 = vadd.f32 0.0, %v3614
      %3616 = vmatmul.bf16.gmra.mxu0 %v3548
      %v3617 = vpop.f32.mrf.mxu0
      %v3618 = vadd.f32 0.0, %v3617
      %v3619 = vpop.f32.mrf.mxu0
      %v3620 = vadd.f32 0.0, %v3619
      %3621 = vmatmul.bf16.gmra.mxu0 %v3551
      %v3622 = vpop.f32.mrf.mxu0
      %v3623 = vadd.f32 0.0, %v3622
      %v3624 = vpop.f32.mrf.mxu0
      %v3625 = vadd.f32 0.0, %v3624
      %3626 = vmatmul.bf16.gmra.mxu0 %v3554
      %v3627 = vpop.f32.mrf.mxu0
      %v3628 = vadd.f32 0.0, %v3627
      %v3629 = vpop.f32.mrf.mxu0
      %v3630 = vadd.f32 0.0, %v3629
      %3631 = vmatmul.bf16.gmra.mxu0 %v3557
      %v3632 = vpop.f32.mrf.mxu0
      %v3633 = vadd.f32 0.0, %v3632
      %v3634 = vpop.f32.mrf.mxu0
      %v3635 = vadd.f32 0.0, %v3634
      %3636 = vmatmul.bf16.gmra.mxu0 %v3560
      %v3637 = vpop.f32.mrf.mxu0
      %v3638 = vadd.f32 0.0, %v3637
      %v3639 = vpop.f32.mrf.mxu0
      %v3640 = vadd.f32 0.0, %v3639
      %3641 = vmatmul.bf16.gmra.mxu0 %v3563
      %v3642 = vpop.f32.mrf.mxu0
      %v3643 = vadd.f32 0.0, %v3642
      %v3644 = vpop.f32.mrf.mxu0
      %v3645 = vadd.f32 0.0, %v3644
      %3646 = vmatmul.bf16.gmra.mxu0 %v3566
      %v3647 = vpop.f32.mrf.mxu0
      %v3648 = vadd.f32 0.0, %v3647
      %v3649 = vpop.f32.mrf.mxu0
      %v3650 = vadd.f32 0.0, %v3649
      %3651 = vmatmul.bf16.gmra.mxu0 %v3569
      %v3652 = vpop.f32.mrf.mxu0
      %v3653 = vadd.f32 0.0, %v3652
      %v3654 = vpop.f32.mrf.mxu0
      %v3655 = vadd.f32 0.0, %v3654
      %3656 = vmatmul.bf16.gmra.mxu0 %v3572
      %v3657 = vpop.f32.mrf.mxu0
      %v3658 = vadd.f32 0.0, %v3657
      %v3659 = vpop.f32.mrf.mxu0
      %v3660 = vadd.f32 0.0, %v3659
      %3661 = vmatmul.bf16.gmra.mxu0 %v3575
      %v3662 = vpop.f32.mrf.mxu0
      %v3663 = vadd.f32 0.0, %v3662
      %v3664 = vpop.f32.mrf.mxu0
      %v3665 = vadd.f32 0.0, %v3664
      %3666 = vmatmul.bf16.gmra.mxu0 %v3578
      %v3667 = vpop.f32.mrf.mxu0
      %v3668 = vadd.f32 0.0, %v3667
      %v3669 = vpop.f32.mrf.mxu0
      %v3670 = vadd.f32 0.0, %v3669
      %3671 = vdwg.mxu0
      %v3672 = vadd.f32 %v3450, %v3593
      %v3673 = vadd.f32 %v3451, %v3595
      %v3674 = vadd.f32 %v3452, %v3598
      %v3675 = vadd.f32 %v3453, %v3600
      %v3676 = vadd.f32 %v3454, %v3603
      %v3677 = vadd.f32 %v3455, %v3605
      %v3678 = vadd.f32 %v3456, %v3608
      %v3679 = vadd.f32 %v3457, %v3610
      %v3680 = vadd.f32 %v3458, %v3613
      %v3681 = vadd.f32 %v3459, %v3615
      %v3682 = vadd.f32 %v3460, %v3618
      %v3683 = vadd.f32 %v3461, %v3620
      %v3684 = vadd.f32 %v3462, %v3623
      %v3685 = vadd.f32 %v3463, %v3625
      %v3686 = vadd.f32 %v3464, %v3628
      %v3687 = vadd.f32 %v3465, %v3630
      %v3688 = vadd.f32 %v3466, %v3633
      %v3689 = vadd.f32 %v3467, %v3635
      %v3690 = vadd.f32 %v3468, %v3638
      %v3691 = vadd.f32 %v3469, %v3640
      %v3692 = vadd.f32 %v3470, %v3643
      %v3693 = vadd.f32 %v3471, %v3645
      %v3694 = vadd.f32 %v3472, %v3648
      %v3695 = vadd.f32 %v3473, %v3650
      %v3696 = vadd.f32 %v3474, %v3653
      %v3697 = vadd.f32 %v3475, %v3655
      %v3698 = vadd.f32 %v3476, %v3658
      %v3699 = vadd.f32 %v3477, %v3660
      %v3700 = vadd.f32 %v3478, %v3663
      %v3701 = vadd.f32 %v3479, %v3665
      %v3702 = vadd.f32 %v3480, %v3668
      %v3703 = vadd.f32 %v3481, %v3670
      %s3704 = scalar_lea.vmem [#allocation3], 48
      %v3705 = vld [vmem:[%s3704] sm:$0xff]
      %v3706 = vld [vmem:[%s3704 + $0x8] sm:$0xff]
      %v3707 = vld [vmem:[%s3704 + $0x18] sm:$0xff]
      %v3708 = vld [vmem:[%s3704 + $0x20] sm:$0xff]
      %v3709 = vld [vmem:[%s3704 + $0x30] sm:$0xff]
      %v3710 = vld [vmem:[%s3704 + $0x38] sm:$0xff]
      %v3711 = vld [vmem:[%s3704 + $0x48] sm:$0xff]
      %v3712 = vld [vmem:[%s3704 + $0x50] sm:$0xff]
      %v3713 = vld [vmem:[%s3704 + $0x60] sm:$0xff]
      %v3714 = vld [vmem:[%s3704 + $0x68] sm:$0xff]
      %v3715 = vld [vmem:[%s3704 + $0x78] sm:$0xff]
      %v3716 = vld [vmem:[%s3704 + $0x80] sm:$0xff]
      %v3717 = vld [vmem:[%s3704 + $0x90] sm:$0xff]
      %v3718 = vld [vmem:[%s3704 + $0x98] sm:$0xff]
      %v3719 = vld [vmem:[%s3704 + $0xa8] sm:$0xff]
      %v3720 = vld [vmem:[%s3704 + $0xb0] sm:$0xff]
      %v3721 = vld [vmem:[%s3704 + $0xc0] sm:$0xff]
      %v3722 = vld [vmem:[%s3704 + $0xc8] sm:$0xff]
      %v3723 = vld [vmem:[%s3704 + $0xd8] sm:$0xff]
      %v3724 = vld [vmem:[%s3704 + $0xe0] sm:$0xff]
      %v3725 = vld [vmem:[%s3704 + $0xf0] sm:$0xff]
      %v3726 = vld [vmem:[%s3704 + $0xf8] sm:$0xff]
      %v3727 = vld [vmem:[%s3704 + $0x108] sm:$0xff]
      %v3728 = vld [vmem:[%s3704 + $0x110] sm:$0xff]
      %v3729 = vld [vmem:[%s3704 + $0x120] sm:$0xff]
      %v3730 = vld [vmem:[%s3704 + $0x128] sm:$0xff]
      %v3731 = vld [vmem:[%s3704 + $0x138] sm:$0xff]
      %v3732 = vld [vmem:[%s3704 + $0x140] sm:$0xff]
      %v3733 = vld [vmem:[%s3704 + $0x150] sm:$0xff]
      %v3734 = vld [vmem:[%s3704 + $0x158] sm:$0xff]
      %v3735 = vld [vmem:[%s3704 + $0x168] sm:$0xff]
      %v3736 = vld [vmem:[%s3704 + $0x170] sm:$0xff]
      %v3737 = vpack.c.bf16 %v3706, %v3705
      %v3738 = vpack.c.bf16 %v3708, %v3707
      %v3739 = vpack.c.bf16 %v3710, %v3709
      %v3740 = vpack.c.bf16 %v3712, %v3711
      %v3741 = vpack.c.bf16 %v3714, %v3713
      %v3742 = vpack.c.bf16 %v3716, %v3715
      %v3743 = vpack.c.bf16 %v3718, %v3717
      %v3744 = vpack.c.bf16 %v3720, %v3719
      %v3745 = vpack.c.bf16 %v3722, %v3721
      %v3746 = vpack.c.bf16 %v3724, %v3723
      %v3747 = vpack.c.bf16 %v3726, %v3725
      %v3748 = vpack.c.bf16 %v3728, %v3727
      %v3749 = vpack.c.bf16 %v3730, %v3729
      %v3750 = vpack.c.bf16 %v3732, %v3731
      %v3751 = vpack.c.bf16 %v3734, %v3733
      %v3752 = vpack.c.bf16 %v3736, %v3735
      %s3753 = scalar_lea.vmem %s3, 12
      %v3754 = vld [vmem:[%s3753] sm:$0x3]
      %v3756 = vsel %vm226, %v3737, 0
      %v3759 = vsel %vm226, %v3738, 0
      %v3762 = vsel %vm226, %v3739, 0
      %v3765 = vsel %vm226, %v3740, 0
      %v3768 = vsel %vm226, %v3741, 0
      %v3771 = vsel %vm226, %v3742, 0
      %v3774 = vsel %vm226, %v3743, 0
      %v3777 = vsel %vm226, %v3744, 0
      %v3780 = vsel %vm226, %v3745, 0
      %v3783 = vsel %vm226, %v3746, 0
      %v3786 = vsel %vm226, %v3747, 0
      %v3789 = vsel %vm226, %v3748, 0
      %v3792 = vsel %vm226, %v3749, 0
      %v3795 = vsel %vm226, %v3750, 0
      %v3798 = vsel %vm226, %v3751, 0
      %v3801 = vsel %vm226, %v3752, 0
      %v3804 = vsel %vm494, %v3754, 0
      %3806 = vmatpush.bf16.msra.mxu0 0
      %3807 = vmatpush.bf16.msra.mxu0 0
      %3808 = vmatpush.bf16.msra.mxu0 0
      %3809 = vmatpush.bf16.msra.mxu0 0
      %3810 = vmatpush.bf16.msra.mxu0 0
      %3811 = vmatpush.bf16.msra.mxu0 0
      %3812 = vmatpush.bf16.msra.mxu0 0
      %3813 = vmatpush.bf16.msra.mxu0 %v3804
      %3814 = vmatmul.bf16.gmra.mxu0 %v3756
      %v3815 = vpop.f32.mrf.mxu0
      %v3816 = vadd.f32 0.0, %v3815
      %v3817 = vpop.f32.mrf.mxu0
      %v3818 = vadd.f32 0.0, %v3817
      %3819 = vmatmul.bf16.gmra.mxu0 %v3759
      %v3820 = vpop.f32.mrf.mxu0
      %v3821 = vadd.f32 0.0, %v3820
      %v3822 = vpop.f32.mrf.mxu0
      %v3823 = vadd.f32 0.0, %v3822
      %3824 = vmatmul.bf16.gmra.mxu0 %v3762
      %v3825 = vpop.f32.mrf.mxu0
      %v3826 = vadd.f32 0.0, %v3825
      %v3827 = vpop.f32.mrf.mxu0
      %v3828 = vadd.f32 0.0, %v3827
      %3829 = vmatmul.bf16.gmra.mxu0 %v3765
      %v3830 = vpop.f32.mrf.mxu0
      %v3831 = vadd.f32 0.0, %v3830
      %v3832 = vpop.f32.mrf.mxu0
      %v3833 = vadd.f32 0.0, %v3832
      %3834 = vmatmul.bf16.gmra.mxu0 %v3768
      %v3835 = vpop.f32.mrf.mxu0
      %v3836 = vadd.f32 0.0, %v3835
      %v3837 = vpop.f32.mrf.mxu0
      %v3838 = vadd.f32 0.0, %v3837
      %3839 = vmatmul.bf16.gmra.mxu0 %v3771
      %v3840 = vpop.f32.mrf.mxu0
      %v3841 = vadd.f32 0.0, %v3840
      %v3842 = vpop.f32.mrf.mxu0
      %v3843 = vadd.f32 0.0, %v3842
      %3844 = vmatmul.bf16.gmra.mxu0 %v3774
      %v3845 = vpop.f32.mrf.mxu0
      %v3846 = vadd.f32 0.0, %v3845
      %v3847 = vpop.f32.mrf.mxu0
      %v3848 = vadd.f32 0.0, %v3847
      %3849 = vmatmul.bf16.gmra.mxu0 %v3777
      %v3850 = vpop.f32.mrf.mxu0
      %v3851 = vadd.f32 0.0, %v3850
      %v3852 = vpop.f32.mrf.mxu0
      %v3853 = vadd.f32 0.0, %v3852
      %3854 = vmatmul.bf16.gmra.mxu0 %v3780
      %v3855 = vpop.f32.mrf.mxu0
      %v3856 = vadd.f32 0.0, %v3855
      %v3857 = vpop.f32.mrf.mxu0
      %v3858 = vadd.f32 0.0, %v3857
      %3859 = vmatmul.bf16.gmra.mxu0 %v3783
      %v3860 = vpop.f32.mrf.mxu0
      %v3861 = vadd.f32 0.0, %v3860
      %v3862 = vpop.f32.mrf.mxu0
      %v3863 = vadd.f32 0.0, %v3862
      %3864 = vmatmul.bf16.gmra.mxu0 %v3786
      %v3865 = vpop.f32.mrf.mxu0
      %v3866 = vadd.f32 0.0, %v3865
      %v3867 = vpop.f32.mrf.mxu0
      %v3868 = vadd.f32 0.0, %v3867
      %3869 = vmatmul.bf16.gmra.mxu0 %v3789
      %v3870 = vpop.f32.mrf.mxu0
      %v3871 = vadd.f32 0.0, %v3870
      %v3872 = vpop.f32.mrf.mxu0
      %v3873 = vadd.f32 0.0, %v3872
      %3874 = vmatmul.bf16.gmra.mxu0 %v3792
      %v3875 = vpop.f32.mrf.mxu0
      %v3876 = vadd.f32 0.0, %v3875
      %v3877 = vpop.f32.mrf.mxu0
      %v3878 = vadd.f32 0.0, %v3877
      %3879 = vmatmul.bf16.gmra.mxu0 %v3795
      %v3880 = vpop.f32.mrf.mxu0
      %v3881 = vadd.f32 0.0, %v3880
      %v3882 = vpop.f32.mrf.mxu0
      %v3883 = vadd.f32 0.0, %v3882
      %3884 = vmatmul.bf16.gmra.mxu0 %v3798
      %v3885 = vpop.f32.mrf.mxu0
      %v3886 = vadd.f32 0.0, %v3885
      %v3887 = vpop.f32.mrf.mxu0
      %v3888 = vadd.f32 0.0, %v3887
      %3889 = vmatmul.bf16.gmra.mxu0 %v3801
      %v3890 = vpop.f32.mrf.mxu0
      %v3891 = vadd.f32 0.0, %v3890
      %v3892 = vpop.f32.mrf.mxu0
      %v3893 = vadd.f32 0.0, %v3892
      %3894 = vdwg.mxu0
      %v3895 = vadd.f32 %v3672, %v3816
      %v3896 = vadd.f32 %v3673, %v3818
      %v3897 = vadd.f32 %v3674, %v3821
      %v3898 = vadd.f32 %v3675, %v3823
      %v3899 = vadd.f32 %v3676, %v3826
      %v3900 = vadd.f32 %v3677, %v3828
      %v3901 = vadd.f32 %v3678, %v3831
      %v3902 = vadd.f32 %v3679, %v3833
      %v3903 = vadd.f32 %v3680, %v3836
      %v3904 = vadd.f32 %v3681, %v3838
      %v3905 = vadd.f32 %v3682, %v3841
      %v3906 = vadd.f32 %v3683, %v3843
      %v3907 = vadd.f32 %v3684, %v3846
      %v3908 = vadd.f32 %v3685, %v3848
      %v3909 = vadd.f32 %v3686, %v3851
      %v3910 = vadd.f32 %v3687, %v3853
      %v3911 = vadd.f32 %v3688, %v3856
      %v3912 = vadd.f32 %v3689, %v3858
      %v3913 = vadd.f32 %v3690, %v3861
      %v3914 = vadd.f32 %v3691, %v3863
      %v3915 = vadd.f32 %v3692, %v3866
      %v3916 = vadd.f32 %v3693, %v3868
      %v3917 = vadd.f32 %v3694, %v3871
      %v3918 = vadd.f32 %v3695, %v3873
      %v3919 = vadd.f32 %v3696, %v3876
      %v3920 = vadd.f32 %v3697, %v3878
      %v3921 = vadd.f32 %v3698, %v3881
      %v3922 = vadd.f32 %v3699, %v3883
      %v3923 = vadd.f32 %v3700, %v3886
      %v3924 = vadd.f32 %v3701, %v3888
      %v3925 = vadd.f32 %v3702, %v3891
      %v3926 = vadd.f32 %v3703, %v3893
      %v3927 = vld [vmem:[%s3704 + $0x1] sm:$0xff]
      %v3928 = vld [vmem:[%s3704 + $0x9] sm:$0xff]
      %v3929 = vld [vmem:[%s3704 + $0x19] sm:$0xff]
      %v3930 = vld [vmem:[%s3704 + $0x21] sm:$0xff]
      %v3931 = vld [vmem:[%s3704 + $0x31] sm:$0xff]
      %v3932 = vld [vmem:[%s3704 + $0x39] sm:$0xff]
      %v3933 = vld [vmem:[%s3704 + $0x49] sm:$0xff]
      %v3934 = vld [vmem:[%s3704 + $0x51] sm:$0xff]
      %v3935 = vld [vmem:[%s3704 + $0x61] sm:$0xff]
      %v3936 = vld [vmem:[%s3704 + $0x69] sm:$0xff]
      %v3937 = vld [vmem:[%s3704 + $0x79] sm:$0xff]
      %v3938 = vld [vmem:[%s3704 + $0x81] sm:$0xff]
      %v3939 = vld [vmem:[%s3704 + $0x91] sm:$0xff]
      %v3940 = vld [vmem:[%s3704 + $0x99] sm:$0xff]
      %v3941 = vld [vmem:[%s3704 + $0xa9] sm:$0xff]
      %v3942 = vld [vmem:[%s3704 + $0xb1] sm:$0xff]
      %v3943 = vld [vmem:[%s3704 + $0xc1] sm:$0xff]
      %v3944 = vld [vmem:[%s3704 + $0xc9] sm:$0xff]
      %v3945 = vld [vmem:[%s3704 + $0xd9] sm:$0xff]
      %v3946 = vld [vmem:[%s3704 + $0xe1] sm:$0xff]
      %v3947 = vld [vmem:[%s3704 + $0xf1] sm:$0xff]
      %v3948 = vld [vmem:[%s3704 + $0xf9] sm:$0xff]
      %v3949 = vld [vmem:[%s3704 + $0x109] sm:$0xff]
      %v3950 = vld [vmem:[%s3704 + $0x111] sm:$0xff]
      %v3951 = vld [vmem:[%s3704 + $0x121] sm:$0xff]
      %v3952 = vld [vmem:[%s3704 + $0x129] sm:$0xff]
      %v3953 = vld [vmem:[%s3704 + $0x139] sm:$0xff]
      %v3954 = vld [vmem:[%s3704 + $0x141] sm:$0xff]
      %v3955 = vld [vmem:[%s3704 + $0x151] sm:$0xff]
      %v3956 = vld [vmem:[%s3704 + $0x159] sm:$0xff]
      %v3957 = vld [vmem:[%s3704 + $0x169] sm:$0xff]
      %v3958 = vld [vmem:[%s3704 + $0x171] sm:$0xff]
      %v3959 = vpack.c.bf16 %v3928, %v3927
      %v3960 = vpack.c.bf16 %v3930, %v3929
      %v3961 = vpack.c.bf16 %v3932, %v3931
      %v3962 = vpack.c.bf16 %v3934, %v3933
      %v3963 = vpack.c.bf16 %v3936, %v3935
      %v3964 = vpack.c.bf16 %v3938, %v3937
      %v3965 = vpack.c.bf16 %v3940, %v3939
      %v3966 = vpack.c.bf16 %v3942, %v3941
      %v3967 = vpack.c.bf16 %v3944, %v3943
      %v3968 = vpack.c.bf16 %v3946, %v3945
      %v3969 = vpack.c.bf16 %v3948, %v3947
      %v3970 = vpack.c.bf16 %v3950, %v3949
      %v3971 = vpack.c.bf16 %v3952, %v3951
      %v3972 = vpack.c.bf16 %v3954, %v3953
      %v3973 = vpack.c.bf16 %v3956, %v3955
      %v3974 = vpack.c.bf16 %v3958, %v3957
      %s3975 = scalar_lea.vmem %s3, 14
      %v3976 = vld [vmem:[%s3975] sm:$0x3]
      %v3978 = vsel %vm226, %v3959, 0
      %v3981 = vsel %vm226, %v3960, 0
      %v3984 = vsel %vm226, %v3961, 0
      %v3987 = vsel %vm226, %v3962, 0
      %v3990 = vsel %vm226, %v3963, 0
      %v3993 = vsel %vm226, %v3964, 0
      %v3996 = vsel %vm226, %v3965, 0
      %v3999 = vsel %vm226, %v3966, 0
      %v4002 = vsel %vm226, %v3967, 0
      %v4005 = vsel %vm226, %v3968, 0
      %v4008 = vsel %vm226, %v3969, 0
      %v4011 = vsel %vm226, %v3970, 0
      %v4014 = vsel %vm226, %v3971, 0
      %v4017 = vsel %vm226, %v3972, 0
      %v4020 = vsel %vm226, %v3973, 0
      %v4023 = vsel %vm226, %v3974, 0
      %v4026 = vsel %vm494, %v3976, 0
      %4028 = vmatpush.bf16.msra.mxu0 0
      %4029 = vmatpush.bf16.msra.mxu0 0
      %4030 = vmatpush.bf16.msra.mxu0 0
      %4031 = vmatpush.bf16.msra.mxu0 0
      %4032 = vmatpush.bf16.msra.mxu0 0
      %4033 = vmatpush.bf16.msra.mxu0 0
      %4034 = vmatpush.bf16.msra.mxu0 0
      %4035 = vmatpush.bf16.msra.mxu0 %v4026
      %4036 = vmatmul.bf16.gmra.mxu0 %v3978
      %v4037 = vpop.f32.mrf.mxu0
      %v4038 = vadd.f32 0.0, %v4037
      %v4039 = vpop.f32.mrf.mxu0
      %v4040 = vadd.f32 0.0, %v4039
      %4041 = vmatmul.bf16.gmra.mxu0 %v3981
      %v4042 = vpop.f32.mrf.mxu0
      %v4043 = vadd.f32 0.0, %v4042
      %v4044 = vpop.f32.mrf.mxu0
      %v4045 = vadd.f32 0.0, %v4044
      %4046 = vmatmul.bf16.gmra.mxu0 %v3984
      %v4047 = vpop.f32.mrf.mxu0
      %v4048 = vadd.f32 0.0, %v4047
      %v4049 = vpop.f32.mrf.mxu0
      %v4050 = vadd.f32 0.0, %v4049
      %4051 = vmatmul.bf16.gmra.mxu0 %v3987
      %v4052 = vpop.f32.mrf.mxu0
      %v4053 = vadd.f32 0.0, %v4052
      %v4054 = vpop.f32.mrf.mxu0
      %v4055 = vadd.f32 0.0, %v4054
      %4056 = vmatmul.bf16.gmra.mxu0 %v3990
      %v4057 = vpop.f32.mrf.mxu0
      %v4058 = vadd.f32 0.0, %v4057
      %v4059 = vpop.f32.mrf.mxu0
      %v4060 = vadd.f32 0.0, %v4059
      %4061 = vmatmul.bf16.gmra.mxu0 %v3993
      %v4062 = vpop.f32.mrf.mxu0
      %v4063 = vadd.f32 0.0, %v4062
      %v4064 = vpop.f32.mrf.mxu0
      %v4065 = vadd.f32 0.0, %v4064
      %4066 = vmatmul.bf16.gmra.mxu0 %v3996
      %v4067 = vpop.f32.mrf.mxu0
      %v4068 = vadd.f32 0.0, %v4067
      %v4069 = vpop.f32.mrf.mxu0
      %v4070 = vadd.f32 0.0, %v4069
      %4071 = vmatmul.bf16.gmra.mxu0 %v3999
      %v4072 = vpop.f32.mrf.mxu0
      %v4073 = vadd.f32 0.0, %v4072
      %v4074 = vpop.f32.mrf.mxu0
      %v4075 = vadd.f32 0.0, %v4074
      %4076 = vmatmul.bf16.gmra.mxu0 %v4002
      %v4077 = vpop.f32.mrf.mxu0
      %v4078 = vadd.f32 0.0, %v4077
      %v4079 = vpop.f32.mrf.mxu0
      %v4080 = vadd.f32 0.0, %v4079
      %4081 = vmatmul.bf16.gmra.mxu0 %v4005
      %v4082 = vpop.f32.mrf.mxu0
      %v4083 = vadd.f32 0.0, %v4082
      %v4084 = vpop.f32.mrf.mxu0
      %v4085 = vadd.f32 0.0, %v4084
      %4086 = vmatmul.bf16.gmra.mxu0 %v4008
      %v4087 = vpop.f32.mrf.mxu0
      %v4088 = vadd.f32 0.0, %v4087
      %v4089 = vpop.f32.mrf.mxu0
      %v4090 = vadd.f32 0.0, %v4089
      %4091 = vmatmul.bf16.gmra.mxu0 %v4011
      %v4092 = vpop.f32.mrf.mxu0
      %v4093 = vadd.f32 0.0, %v4092
      %v4094 = vpop.f32.mrf.mxu0
      %v4095 = vadd.f32 0.0, %v4094
      %4096 = vmatmul.bf16.gmra.mxu0 %v4014
      %v4097 = vpop.f32.mrf.mxu0
      %v4098 = vadd.f32 0.0, %v4097
      %v4099 = vpop.f32.mrf.mxu0
      %v4100 = vadd.f32 0.0, %v4099
      %4101 = vmatmul.bf16.gmra.mxu0 %v4017
      %v4102 = vpop.f32.mrf.mxu0
      %v4103 = vadd.f32 0.0, %v4102
      %v4104 = vpop.f32.mrf.mxu0
      %v4105 = vadd.f32 0.0, %v4104
      %4106 = vmatmul.bf16.gmra.mxu0 %v4020
      %v4107 = vpop.f32.mrf.mxu0
      %v4108 = vadd.f32 0.0, %v4107
      %v4109 = vpop.f32.mrf.mxu0
      %v4110 = vadd.f32 0.0, %v4109
      %4111 = vmatmul.bf16.gmra.mxu0 %v4023
      %v4112 = vpop.f32.mrf.mxu0
      %v4113 = vadd.f32 0.0, %v4112
      %v4114 = vpop.f32.mrf.mxu0
      %v4115 = vadd.f32 0.0, %v4114
      %4116 = vdwg.mxu0
      %v4117 = vadd.f32 %v3895, %v4038
      %v4118 = vadd.f32 %v3896, %v4040
      %v4119 = vadd.f32 %v3897, %v4043
      %v4120 = vadd.f32 %v3898, %v4045
      %v4121 = vadd.f32 %v3899, %v4048
      %v4122 = vadd.f32 %v3900, %v4050
      %v4123 = vadd.f32 %v3901, %v4053
      %v4124 = vadd.f32 %v3902, %v4055
      %v4125 = vadd.f32 %v3903, %v4058
      %v4126 = vadd.f32 %v3904, %v4060
      %v4127 = vadd.f32 %v3905, %v4063
      %v4128 = vadd.f32 %v3906, %v4065
      %v4129 = vadd.f32 %v3907, %v4068
      %v4130 = vadd.f32 %v3908, %v4070
      %v4131 = vadd.f32 %v3909, %v4073
      %v4132 = vadd.f32 %v3910, %v4075
      %v4133 = vadd.f32 %v3911, %v4078
      %v4134 = vadd.f32 %v3912, %v4080
      %v4135 = vadd.f32 %v3913, %v4083
      %v4136 = vadd.f32 %v3914, %v4085
      %v4137 = vadd.f32 %v3915, %v4088
      %v4138 = vadd.f32 %v3916, %v4090
      %v4139 = vadd.f32 %v3917, %v4093
      %v4140 = vadd.f32 %v3918, %v4095
      %v4141 = vadd.f32 %v3919, %v4098
      %v4142 = vadd.f32 %v3920, %v4100
      %v4143 = vadd.f32 %v3921, %v4103
      %v4144 = vadd.f32 %v3922, %v4105
      %v4145 = vadd.f32 %v3923, %v4108
      %v4146 = vadd.f32 %v3924, %v4110
      %v4147 = vadd.f32 %v3925, %v4113
      %v4148 = vadd.f32 %v3926, %v4115
      %v4149 = vld [vmem:[%s3704 + $0x2] sm:$0xff]
      %v4150 = vld [vmem:[%s3704 + $0xa] sm:$0xff]
      %v4151 = vld [vmem:[%s3704 + $0x1a] sm:$0xff]
      %v4152 = vld [vmem:[%s3704 + $0x22] sm:$0xff]
      %v4153 = vld [vmem:[%s3704 + $0x32] sm:$0xff]
      %v4154 = vld [vmem:[%s3704 + $0x3a] sm:$0xff]
      %v4155 = vld [vmem:[%s3704 + $0x4a] sm:$0xff]
      %v4156 = vld [vmem:[%s3704 + $0x52] sm:$0xff]
      %v4157 = vld [vmem:[%s3704 + $0x62] sm:$0xff]
      %v4158 = vld [vmem:[%s3704 + $0x6a] sm:$0xff]
      %v4159 = vld [vmem:[%s3704 + $0x7a] sm:$0xff]
      %v4160 = vld [vmem:[%s3704 + $0x82] sm:$0xff]
      %v4161 = vld [vmem:[%s3704 + $0x92] sm:$0xff]
      %v4162 = vld [vmem:[%s3704 + $0x9a] sm:$0xff]
      %v4163 = vld [vmem:[%s3704 + $0xaa] sm:$0xff]
      %v4164 = vld [vmem:[%s3704 + $0xb2] sm:$0xff]
      %v4165 = vld [vmem:[%s3704 + $0xc2] sm:$0xff]
      %v4166 = vld [vmem:[%s3704 + $0xca] sm:$0xff]
      %v4167 = vld [vmem:[%s3704 + $0xda] sm:$0xff]
      %v4168 = vld [vmem:[%s3704 + $0xe2] sm:$0xff]
      %v4169 = vld [vmem:[%s3704 + $0xf2] sm:$0xff]
      %v4170 = vld [vmem:[%s3704 + $0xfa] sm:$0xff]
      %v4171 = vld [vmem:[%s3704 + $0x10a] sm:$0xff]
      %v4172 = vld [vmem:[%s3704 + $0x112] sm:$0xff]
      %v4173 = vld [vmem:[%s3704 + $0x122] sm:$0xff]
      %v4174 = vld [vmem:[%s3704 + $0x12a] sm:$0xff]
      %v4175 = vld [vmem:[%s3704 + $0x13a] sm:$0xff]
      %v4176 = vld [vmem:[%s3704 + $0x142] sm:$0xff]
      %v4177 = vld [vmem:[%s3704 + $0x152] sm:$0xff]
      %v4178 = vld [vmem:[%s3704 + $0x15a] sm:$0xff]
      %v4179 = vld [vmem:[%s3704 + $0x16a] sm:$0xff]
      %v4180 = vld [vmem:[%s3704 + $0x172] sm:$0xff]
      %v4181 = vpack.c.bf16 %v4150, %v4149
      %v4182 = vpack.c.bf16 %v4152, %v4151
      %v4183 = vpack.c.bf16 %v4154, %v4153
      %v4184 = vpack.c.bf16 %v4156, %v4155
      %v4185 = vpack.c.bf16 %v4158, %v4157
      %v4186 = vpack.c.bf16 %v4160, %v4159
      %v4187 = vpack.c.bf16 %v4162, %v4161
      %v4188 = vpack.c.bf16 %v4164, %v4163
      %v4189 = vpack.c.bf16 %v4166, %v4165
      %v4190 = vpack.c.bf16 %v4168, %v4167
      %v4191 = vpack.c.bf16 %v4170, %v4169
      %v4192 = vpack.c.bf16 %v4172, %v4171
      %v4193 = vpack.c.bf16 %v4174, %v4173
      %v4194 = vpack.c.bf16 %v4176, %v4175
      %v4195 = vpack.c.bf16 %v4178, %v4177
      %v4196 = vpack.c.bf16 %v4180, %v4179
      %s4197 = scalar_lea.vmem %s3, 16
      %v4198 = vld [vmem:[%s4197] sm:$0x3]
      %v4200 = vsel %vm226, %v4181, 0
      %v4203 = vsel %vm226, %v4182, 0
      %v4206 = vsel %vm226, %v4183, 0
      %v4209 = vsel %vm226, %v4184, 0
      %v4212 = vsel %vm226, %v4185, 0
      %v4215 = vsel %vm226, %v4186, 0
      %v4218 = vsel %vm226, %v4187, 0
      %v4221 = vsel %vm226, %v4188, 0
      %v4224 = vsel %vm226, %v4189, 0
      %v4227 = vsel %vm226, %v4190, 0
      %v4230 = vsel %vm226, %v4191, 0
      %v4233 = vsel %vm226, %v4192, 0
      %v4236 = vsel %vm226, %v4193, 0
      %v4239 = vsel %vm226, %v4194, 0
      %v4242 = vsel %vm226, %v4195, 0
      %v4245 = vsel %vm226, %v4196, 0
      %v4248 = vsel %vm494, %v4198, 0
      %4250 = vmatpush.bf16.msra.mxu0 0
      %4251 = vmatpush.bf16.msra.mxu0 0
      %4252 = vmatpush.bf16.msra.mxu0 0
      %4253 = vmatpush.bf16.msra.mxu0 0
      %4254 = vmatpush.bf16.msra.mxu0 0
      %4255 = vmatpush.bf16.msra.mxu0 0
      %4256 = vmatpush.bf16.msra.mxu0 0
      %4257 = vmatpush.bf16.msra.mxu0 %v4248
      %4258 = vmatmul.bf16.gmra.mxu0 %v4200
      %v4259 = vpop.f32.mrf.mxu0
      %v4260 = vadd.f32 0.0, %v4259
      %v4261 = vpop.f32.mrf.mxu0
      %v4262 = vadd.f32 0.0, %v4261
      %4263 = vmatmul.bf16.gmra.mxu0 %v4203
      %v4264 = vpop.f32.mrf.mxu0
      %v4265 = vadd.f32 0.0, %v4264
      %v4266 = vpop.f32.mrf.mxu0
      %v4267 = vadd.f32 0.0, %v4266
      %4268 = vmatmul.bf16.gmra.mxu0 %v4206
      %v4269 = vpop.f32.mrf.mxu0
      %v4270 = vadd.f32 0.0, %v4269
      %v4271 = vpop.f32.mrf.mxu0
      %v4272 = vadd.f32 0.0, %v4271
      %4273 = vmatmul.bf16.gmra.mxu0 %v4209
      %v4274 = vpop.f32.mrf.mxu0
      %v4275 = vadd.f32 0.0, %v4274
      %v4276 = vpop.f32.mrf.mxu0
      %v4277 = vadd.f32 0.0, %v4276
      %4278 = vmatmul.bf16.gmra.mxu0 %v4212
      %v4279 = vpop.f32.mrf.mxu0
      %v4280 = vadd.f32 0.0, %v4279
      %v4281 = vpop.f32.mrf.mxu0
      %v4282 = vadd.f32 0.0, %v4281
      %4283 = vmatmul.bf16.gmra.mxu0 %v4215
      %v4284 = vpop.f32.mrf.mxu0
      %v4285 = vadd.f32 0.0, %v4284
      %v4286 = vpop.f32.mrf.mxu0
      %v4287 = vadd.f32 0.0, %v4286
      %4288 = vmatmul.bf16.gmra.mxu0 %v4218
      %v4289 = vpop.f32.mrf.mxu0
      %v4290 = vadd.f32 0.0, %v4289
      %v4291 = vpop.f32.mrf.mxu0
      %v4292 = vadd.f32 0.0, %v4291
      %4293 = vmatmul.bf16.gmra.mxu0 %v4221
      %v4294 = vpop.f32.mrf.mxu0
      %v4295 = vadd.f32 0.0, %v4294
      %v4296 = vpop.f32.mrf.mxu0
      %v4297 = vadd.f32 0.0, %v4296
      %4298 = vmatmul.bf16.gmra.mxu0 %v4224
      %v4299 = vpop.f32.mrf.mxu0
      %v4300 = vadd.f32 0.0, %v4299
      %v4301 = vpop.f32.mrf.mxu0
      %v4302 = vadd.f32 0.0, %v4301
      %4303 = vmatmul.bf16.gmra.mxu0 %v4227
      %v4304 = vpop.f32.mrf.mxu0
      %v4305 = vadd.f32 0.0, %v4304
      %v4306 = vpop.f32.mrf.mxu0
      %v4307 = vadd.f32 0.0, %v4306
      %4308 = vmatmul.bf16.gmra.mxu0 %v4230
      %v4309 = vpop.f32.mrf.mxu0
      %v4310 = vadd.f32 0.0, %v4309
      %v4311 = vpop.f32.mrf.mxu0
      %v4312 = vadd.f32 0.0, %v4311
      %4313 = vmatmul.bf16.gmra.mxu0 %v4233
      %v4314 = vpop.f32.mrf.mxu0
      %v4315 = vadd.f32 0.0, %v4314
      %v4316 = vpop.f32.mrf.mxu0
      %v4317 = vadd.f32 0.0, %v4316
      %4318 = vmatmul.bf16.gmra.mxu0 %v4236
      %v4319 = vpop.f32.mrf.mxu0
      %v4320 = vadd.f32 0.0, %v4319
      %v4321 = vpop.f32.mrf.mxu0
      %v4322 = vadd.f32 0.0, %v4321
      %4323 = vmatmul.bf16.gmra.mxu0 %v4239
      %v4324 = vpop.f32.mrf.mxu0
      %v4325 = vadd.f32 0.0, %v4324
      %v4326 = vpop.f32.mrf.mxu0
      %v4327 = vadd.f32 0.0, %v4326
      %4328 = vmatmul.bf16.gmra.mxu0 %v4242
      %v4329 = vpop.f32.mrf.mxu0
      %v4330 = vadd.f32 0.0, %v4329
      %v4331 = vpop.f32.mrf.mxu0
      %v4332 = vadd.f32 0.0, %v4331
      %4333 = vmatmul.bf16.gmra.mxu0 %v4245
      %v4334 = vpop.f32.mrf.mxu0
      %v4335 = vadd.f32 0.0, %v4334
      %v4336 = vpop.f32.mrf.mxu0
      %v4337 = vadd.f32 0.0, %v4336
      %4338 = vdwg.mxu0
      %v4339 = vadd.f32 %v4117, %v4260
      %v4340 = vadd.f32 %v4118, %v4262
      %v4341 = vadd.f32 %v4119, %v4265
      %v4342 = vadd.f32 %v4120, %v4267
      %v4343 = vadd.f32 %v4121, %v4270
      %v4344 = vadd.f32 %v4122, %v4272
      %v4345 = vadd.f32 %v4123, %v4275
      %v4346 = vadd.f32 %v4124, %v4277
      %v4347 = vadd.f32 %v4125, %v4280
      %v4348 = vadd.f32 %v4126, %v4282
      %v4349 = vadd.f32 %v4127, %v4285
      %v4350 = vadd.f32 %v4128, %v4287
      %v4351 = vadd.f32 %v4129, %v4290
      %v4352 = vadd.f32 %v4130, %v4292
      %v4353 = vadd.f32 %v4131, %v4295
      %v4354 = vadd.f32 %v4132, %v4297
      %v4355 = vadd.f32 %v4133, %v4300
      %v4356 = vadd.f32 %v4134, %v4302
      %v4357 = vadd.f32 %v4135, %v4305
      %v4358 = vadd.f32 %v4136, %v4307
      %v4359 = vadd.f32 %v4137, %v4310
      %v4360 = vadd.f32 %v4138, %v4312
      %v4361 = vadd.f32 %v4139, %v4315
      %v4362 = vadd.f32 %v4140, %v4317
      %v4363 = vadd.f32 %v4141, %v4320
      %v4364 = vadd.f32 %v4142, %v4322
      %v4365 = vadd.f32 %v4143, %v4325
      %v4366 = vadd.f32 %v4144, %v4327
      %v4367 = vadd.f32 %v4145, %v4330
      %v4368 = vadd.f32 %v4146, %v4332
      %v4369 = vadd.f32 %v4147, %v4335
      %v4370 = vadd.f32 %v4148, %v4337
      %v4371 = vld [vmem:[%s4] sm:$0x1]
      %v4373 = vperm.slane %v4371, 0
      %v4375 = vadd.f32 %v4339, %v4373
      %v4376 = vadd.f32 %v4340, %v4373
      %v4377 = vadd.f32 %v4341, %v4373
      %v4378 = vadd.f32 %v4342, %v4373
      %v4379 = vadd.f32 %v4343, %v4373
      %v4380 = vadd.f32 %v4344, %v4373
      %v4381 = vadd.f32 %v4345, %v4373
      %v4382 = vadd.f32 %v4346, %v4373
      %v4383 = vadd.f32 %v4347, %v4373
      %v4384 = vadd.f32 %v4348, %v4373
      %v4385 = vadd.f32 %v4349, %v4373
      %v4386 = vadd.f32 %v4350, %v4373
      %v4387 = vadd.f32 %v4351, %v4373
      %v4388 = vadd.f32 %v4352, %v4373
      %v4389 = vadd.f32 %v4353, %v4373
      %v4390 = vadd.f32 %v4354, %v4373
      %v4391 = vadd.f32 %v4355, %v4373
      %v4392 = vadd.f32 %v4356, %v4373
      %v4393 = vadd.f32 %v4357, %v4373
      %v4394 = vadd.f32 %v4358, %v4373
      %v4395 = vadd.f32 %v4359, %v4373
      %v4396 = vadd.f32 %v4360, %v4373
      %v4397 = vadd.f32 %v4361, %v4373
      %v4398 = vadd.f32 %v4362, %v4373
      %v4399 = vadd.f32 %v4363, %v4373
      %v4400 = vadd.f32 %v4364, %v4373
      %v4401 = vadd.f32 %v4365, %v4373
      %v4402 = vadd.f32 %v4366, %v4373
      %v4403 = vadd.f32 %v4367, %v4373
      %v4404 = vadd.f32 %v4368, %v4373
      %v4405 = vadd.f32 %v4369, %v4373
      %v4406 = vadd.f32 %v4370, %v4373
      %v4407 = vld [vmem:[%s219] sm:$0xff]
      %v4408 = vld [vmem:[%s219 + $0x8] sm:$0xff]
      %v4409 = vld [vmem:[%s219 + $0x10] sm:$0xff]
      %v4410 = vld [vmem:[%s219 + $0x18] sm:$0xff]
      %v4411 = vld [vmem:[%s219 + $0x20] sm:$0xff]
      %v4412 = vld [vmem:[%s219 + $0x28] sm:$0xff]
      %v4413 = vld [vmem:[%s219 + $0x30] sm:$0xff]
      %v4414 = vld [vmem:[%s219 + $0x38] sm:$0xff]
      %v4415 = vld [vmem:[%s219 + $0x40] sm:$0xff]
      %v4416 = vld [vmem:[%s219 + $0x48] sm:$0xff]
      %v4417 = vld [vmem:[%s219 + $0x50] sm:$0xff]
      %v4418 = vld [vmem:[%s219 + $0x58] sm:$0xff]
      %v4419 = vld [vmem:[%s219 + $0x60] sm:$0xff]
      %v4420 = vld [vmem:[%s219 + $0x68] sm:$0xff]
      %v4421 = vld [vmem:[%s219 + $0x70] sm:$0xff]
      %v4422 = vld [vmem:[%s219 + $0x78] sm:$0xff]
      %v4423 = vld [vmem:[%s219 + $0x80] sm:$0xff]
      %v4424 = vld [vmem:[%s219 + $0x88] sm:$0xff]
      %v4425 = vld [vmem:[%s219 + $0x90] sm:$0xff]
      %v4426 = vld [vmem:[%s219 + $0x98] sm:$0xff]
      %v4427 = vld [vmem:[%s219 + $0xa0] sm:$0xff]
      %v4428 = vld [vmem:[%s219 + $0xa8] sm:$0xff]
      %v4429 = vld [vmem:[%s219 + $0xb0] sm:$0xff]
      %v4430 = vld [vmem:[%s219 + $0xb8] sm:$0xff]
      %v4431 = vld [vmem:[%s219 + $0xc0] sm:$0xff]
      %v4432 = vld [vmem:[%s219 + $0xc8] sm:$0xff]
      %v4433 = vld [vmem:[%s219 + $0xd0] sm:$0xff]
      %v4434 = vld [vmem:[%s219 + $0xd8] sm:$0xff]
      %v4435 = vld [vmem:[%s219 + $0xe0] sm:$0xff]
      %v4436 = vld [vmem:[%s219 + $0xe8] sm:$0xff]
      %v4437 = vld [vmem:[%s219 + $0xf0] sm:$0xff]
      %v4438 = vld [vmem:[%s219 + $0xf8] sm:$0xff]
      %v4439 = vadd.f32 %v4375, %v4407
      %v4440 = vadd.f32 %v4376, %v4408
      %v4441 = vadd.f32 %v4377, %v4409
      %v4442 = vadd.f32 %v4378, %v4410
      %v4443 = vadd.f32 %v4379, %v4411
      %v4444 = vadd.f32 %v4380, %v4412
      %v4445 = vadd.f32 %v4381, %v4413
      %v4446 = vadd.f32 %v4382, %v4414
      %v4447 = vadd.f32 %v4383, %v4415
      %v4448 = vadd.f32 %v4384, %v4416
      %v4449 = vadd.f32 %v4385, %v4417
      %v4450 = vadd.f32 %v4386, %v4418
      %v4451 = vadd.f32 %v4387, %v4419
      %v4452 = vadd.f32 %v4388, %v4420
      %v4453 = vadd.f32 %v4389, %v4421
      %v4454 = vadd.f32 %v4390, %v4422
      %v4455 = vadd.f32 %v4391, %v4423
      %v4456 = vadd.f32 %v4392, %v4424
      %v4457 = vadd.f32 %v4393, %v4425
      %v4458 = vadd.f32 %v4394, %v4426
      %v4459 = vadd.f32 %v4395, %v4427
      %v4460 = vadd.f32 %v4396, %v4428
      %v4461 = vadd.f32 %v4397, %v4429
      %v4462 = vadd.f32 %v4398, %v4430
      %v4463 = vadd.f32 %v4399, %v4431
      %v4464 = vadd.f32 %v4400, %v4432
      %v4465 = vadd.f32 %v4401, %v4433
      %v4466 = vadd.f32 %v4402, %v4434
      %v4467 = vadd.f32 %v4403, %v4435
      %v4468 = vadd.f32 %v4404, %v4436
      %v4469 = vadd.f32 %v4405, %v4437
      %v4470 = vadd.f32 %v4406, %v4438
      %v4471 = vmax.f32 %v4439, 0.0
      %v4472 = vmax.f32 %v4440, 0.0
      %v4473 = vmax.f32 %v4441, 0.0
      %v4474 = vmax.f32 %v4442, 0.0
      %v4475 = vmax.f32 %v4443, 0.0
      %v4476 = vmax.f32 %v4444, 0.0
      %v4477 = vmax.f32 %v4445, 0.0
      %v4478 = vmax.f32 %v4446, 0.0
      %v4479 = vmax.f32 %v4447, 0.0
      %v4480 = vmax.f32 %v4448, 0.0
      %v4481 = vmax.f32 %v4449, 0.0
      %v4482 = vmax.f32 %v4450, 0.0
      %v4483 = vmax.f32 %v4451, 0.0
      %v4484 = vmax.f32 %v4452, 0.0
      %v4485 = vmax.f32 %v4453, 0.0
      %v4486 = vmax.f32 %v4454, 0.0
      %v4487 = vmax.f32 %v4455, 0.0
      %v4488 = vmax.f32 %v4456, 0.0
      %v4489 = vmax.f32 %v4457, 0.0
      %v4490 = vmax.f32 %v4458, 0.0
      %v4491 = vmax.f32 %v4459, 0.0
      %v4492 = vmax.f32 %v4460, 0.0
      %v4493 = vmax.f32 %v4461, 0.0
      %v4494 = vmax.f32 %v4462, 0.0
      %v4495 = vmax.f32 %v4463, 0.0
      %v4496 = vmax.f32 %v4464, 0.0
      %v4497 = vmax.f32 %v4465, 0.0
      %v4498 = vmax.f32 %v4466, 0.0
      %v4499 = vmax.f32 %v4467, 0.0
      %v4500 = vmax.f32 %v4468, 0.0
      %v4501 = vmax.f32 %v4469, 0.0
      %v4502 = vmax.f32 %v4470, 0.0
      %4503 = vst.msk [vmem:[%s224] sm:$0xff] %vm226, %v4471
      %4504 = vst.msk [vmem:[%s224 + $0x8] sm:$0xff] %vm226, %v4472
      %4505 = vst.msk [vmem:[%s224 + $0x10] sm:$0xff] %vm226, %v4473
      %4506 = vst.msk [vmem:[%s224 + $0x18] sm:$0xff] %vm226, %v4474
      %4507 = vst.msk [vmem:[%s224 + $0x20] sm:$0xff] %vm226, %v4475
      %4508 = vst.msk [vmem:[%s224 + $0x28] sm:$0xff] %vm226, %v4476
      %4509 = vst.msk [vmem:[%s224 + $0x30] sm:$0xff] %vm226, %v4477
      %4510 = vst.msk [vmem:[%s224 + $0x38] sm:$0xff] %vm226, %v4478
      %4511 = vst.msk [vmem:[%s224 + $0x40] sm:$0xff] %vm226, %v4479
      %4512 = vst.msk [vmem:[%s224 + $0x48] sm:$0xff] %vm226, %v4480
      %4513 = vst.msk [vmem:[%s224 + $0x50] sm:$0xff] %vm226, %v4481
      %4514 = vst.msk [vmem:[%s224 + $0x58] sm:$0xff] %vm226, %v4482
      %4515 = vst.msk [vmem:[%s224 + $0x60] sm:$0xff] %vm226, %v4483
      %4516 = vst.msk [vmem:[%s224 + $0x68] sm:$0xff] %vm226, %v4484
      %4517 = vst.msk [vmem:[%s224 + $0x70] sm:$0xff] %vm226, %v4485
      %4518 = vst.msk [vmem:[%s224 + $0x78] sm:$0xff] %vm226, %v4486
      %4519 = vst.msk [vmem:[%s224 + $0x80] sm:$0xff] %vm226, %v4487
      %4520 = vst.msk [vmem:[%s224 + $0x88] sm:$0xff] %vm226, %v4488
      %4521 = vst.msk [vmem:[%s224 + $0x90] sm:$0xff] %vm226, %v4489
      %4522 = vst.msk [vmem:[%s224 + $0x98] sm:$0xff] %vm226, %v4490
      %4523 = vst.msk [vmem:[%s224 + $0xa0] sm:$0xff] %vm226, %v4491
      %4524 = vst.msk [vmem:[%s224 + $0xa8] sm:$0xff] %vm226, %v4492
      %4525 = vst.msk [vmem:[%s224 + $0xb0] sm:$0xff] %vm226, %v4493
      %4526 = vst.msk [vmem:[%s224 + $0xb8] sm:$0xff] %vm226, %v4494
      %4527 = vst.msk [vmem:[%s224 + $0xc0] sm:$0xff] %vm226, %v4495
      %4528 = vst.msk [vmem:[%s224 + $0xc8] sm:$0xff] %vm226, %v4496
      %4529 = vst.msk [vmem:[%s224 + $0xd0] sm:$0xff] %vm226, %v4497
      %4530 = vst.msk [vmem:[%s224 + $0xd8] sm:$0xff] %vm226, %v4498
      %4531 = vst.msk [vmem:[%s224 + $0xe0] sm:$0xff] %vm226, %v4499
      %4532 = vst.msk [vmem:[%s224 + $0xe8] sm:$0xff] %vm226, %v4500
      %4533 = vst.msk [vmem:[%s224 + $0xf0] sm:$0xff] %vm226, %v4501
      %4534 = vst.msk [vmem:[%s224 + $0xf8] sm:$0xff] %vm226, %v4502
      %p4535 = scmp.lt.s32.totalorder %s16, 1
      %s4536 = scalar_select %p4535, %s16, 1
      %s4537 = smul.addr %s4536, 32
      %s4538 = smul.addr %s4537, 8
      %s4539 = scalar_lea.vmem %s5, %s4538
      // Predicated region
      $region41: #{tpu_custom_call.1} parent=39 // pred_check
        %p4540 = pneg %p144
      $region42: #{tpu_custom_call.1} parent=39 // pred_check_branch
        %4542 = sbr.rel (%p4540) target = $region44
      $region43: #{tpu_custom_call.1} parent=39 // pred_region
        _
      $region44: #{tpu_custom_call.1} parent=39 // pred_fallthru
        _
    $region40: #{tpu_custom_call.1} parent=5 // pred_fallthru
      _
    %p4543 = scmp.le.s32.totalorder 2, %s11
    // Predicated region
    $region45: #{tpu_custom_call.1} parent=5 // pred_check
      %p4544 = pneg %p4543
    $region46: #{tpu_custom_call.1} parent=5 // pred_check_branch
      %4546 = sbr.rel (%p4544) target = $region48
    $region47: #{tpu_custom_call.1} parent=5 // pred_region
      %s4547 = ssub.s32 %s11, 2
      // Predicated region
      $region49: #{tpu_custom_call.1} parent=47 // pred_check
        %p4548 = pneg %p150
      $region50: #{tpu_custom_call.1} parent=47 // pred_check_branch
        %4550 = sbr.rel (%p4548) target = $region52
      $region51: #{tpu_custom_call.1} parent=47 // pred_region
        %p4551 = scmp.lt.s32.totalorder %s17, 1
        %s4552 = scalar_select %p4551, %s17, 1
        %s4553 = smul.addr %s4552, 32
        %s4554 = smul.addr %s4553, 8
        %s4555 = scalar_lea.vmem %s5, %s4554
      $region52: #{tpu_custom_call.1} parent=47 // pred_fallthru
        _
    $region48: #{tpu_custom_call.1} parent=5 // pred_fallthru
      _
  $region6: #{tpu_custom_call.1} parent=0 // loop_footer
    %s15 = sadd.s32 1, %s11
  $region7: #{tpu_custom_call.1} parent=0 // loop_footer_branch
    %10 = sbr.rel target = $region3
  $region8: #{tpu_custom_call.1} parent=0 // loop_exit
    _

</llo_original>
